<compile_context>
chip_gen: v5e
topology: v5e:2x2
jax: 0.10.0
libtpu: 0.0.40
codegen_flags: <defaults>
</compile_context>

<pallas_src>
import jax
import jax.numpy as jnp
from jax.experimental import pallas as pl
from jax.experimental.pallas import tpu as pltpu


def _make_fused_kernel(H, W, C0, C1, C2):
    """Fused 4-layer MiniUNet kernel for one batch element per grid step."""
    Hp, Wp = H + 2, W + 2
    HW = H * W

    def _im2col_x(x_ref):
        # x_ref: (1, Hp, Wp, C0) padded input (f32).
        taps = []
        for ky in range(3):
            for kx in range(3):
                taps.append(
                    x_ref[0, ky:ky + H, kx:kx + W, :].reshape(HW, C0))
        return jnp.concatenate(taps, axis=-1)          # (HW, 9*C0)

    def _im2col_scratch(p_ref, C):
        # p_ref: (Hp, Wp, C) zero-haloed activation scratch (f32).
        taps = []
        for ky in range(3):
            for kx in range(3):
                taps.append(
                    p_ref[ky:ky + H, kx:kx + W, :].reshape(HW, C))
        return jnp.concatenate(taps, axis=-1)          # (HW, 9*C)

    def kernel(x_ref, w1_ref, b1_ref, w2_ref, b2_ref, w3_ref, b3_ref,
               w4_ref, b4_ref, o_ref, p1_ref, p2_ref):
        # Zero the halo scratch every step (cheap: ~120 KiB of VMEM stores);
        # doing it per-step keeps the kernel correct even when the "parallel"
        # batch axis is split across TensorCores.
        p1_ref[...] = jnp.zeros_like(p1_ref)
        p2_ref[...] = jnp.zeros_like(p2_ref)

        # ---- enc0: 3x3 conv C0 -> C1 + ReLU  (single matmul, K = 9*C0) ----
        patch = _im2col_x(x_ref).astype(jnp.bfloat16)
        y = jnp.dot(patch, w1_ref[...], preferred_element_type=jnp.float32)
        y = jnp.maximum(y + b1_ref[...], 0.0)                    # (HW, C1) f32
        p1_ref[1:1 + H, 1:1 + W, :] = y.reshape(H, W, C1)

        # ---- enc1: 3x3 conv C1 -> C2 + ReLU  (K = 9*C1) ----
        patch = _im2col_scratch(p1_ref, C1).astype(jnp.bfloat16)
        y = jnp.dot(patch, w2_ref[...], preferred_element_type=jnp.float32)
        y = jnp.maximum(y + b2_ref[...], 0.0)                    # (HW, C2) f32
        p2_ref[1:1 + H, 1:1 + W, :] = y.reshape(H, W, C2)

        # ---- dec0: 3x3 conv C2 -> C1 + ReLU  (K = 9*C2) ----
        patch = _im2col_scratch(p2_ref, C2).astype(jnp.bfloat16)
        y = jnp.dot(patch, w3_ref[...], preferred_element_type=jnp.float32)
        y = jnp.maximum(y + b3_ref[...], 0.0)                    # (HW, C1) f32

        # ---- dec1: 1x1 conv C1 -> 1, fused epilogue ----
        out = jnp.dot(y.astype(jnp.bfloat16), w4_ref[...],
                      preferred_element_type=jnp.float32) + b4_ref[...]
        # Lane-dense store: (HW, 1) -> (1, 1, HW), last dim multiple of 128.
        o_ref[...] = out.reshape(1, 1, HW)

    return kernel


def init_params(key):
    """Deterministic parameter init with shapes from MiniUNet.__init__ (HWIO)."""
    ks = jax.random.split(key, 8)

    def conv_init(kw, kb, kh, kwid, cin, cout):
        fan_in = kh * kwid * cin
        scale = 1.0 / jnp.sqrt(fan_in)
        w = jax.random.uniform(kw, (kh, kwid, cin, cout), jnp.float32,
                               -scale, scale)
        b = jax.random.uniform(kb, (cout,), jnp.float32, -scale, scale)
        return w, b

    return {
        "enc0": conv_init(ks[0], ks[1], 3, 3, 3, 32),    # Conv2d(3, 32, 3, pad=1)
        "enc1": conv_init(ks[2], ks[3], 3, 3, 32, 64),   # Conv2d(32, 64, 3, pad=1)
        "dec0": conv_init(ks[4], ks[5], 3, 3, 64, 32),   # Conv2d(64, 32, 3, pad=1)
        "dec1": conv_init(ks[6], ks[7], 1, 1, 32, 1),    # Conv2d(32, 1, 1)
    }


@jax.jit
def mini_unet_forward(x_nchw, params):
    """Matches MiniUNet.forward (encoder conv+relu x2, decoder conv+relu, conv1x1)."""
    N, Cin, H, W = x_nchw.shape
    Hp, Wp = H + 2, W + 2
    HW = H * W

    # NCHW -> NHWC and 'same' halo pad for the 3x3 convs (layout glue in XLA).
    x = jnp.transpose(x_nchw, (0, 2, 3, 1))
    x = jnp.pad(x, ((0, 0), (1, 1), (1, 1), (0, 0)))     # (N, Hp, Wp, Cin) f32

    # Pack weights: HWIO (3,3,ci,co) -> im2col-K-major (9*ci, co), bf16.
    def pack_w(w):
        kh, kw, ci, co = w.shape
        return w.reshape(kh * kw * ci, co).astype(jnp.bfloat16)

    w1, b1 = params["enc0"]
    w2, b2 = params["enc1"]
    w3, b3 = params["dec0"]
    w4, b4 = params["dec1"]
    w1p, w2p, w3p, w4p = pack_w(w1), pack_w(w2), pack_w(w3), pack_w(w4)
    b1p = b1.reshape(1, -1)
    b2p = b2.reshape(1, -1)
    b3p = b3.reshape(1, -1)
    b4p = b4.reshape(1, -1)

    C1 = w1.shape[-1]   # 32
    C2 = w2.shape[-1]   # 64
    C3 = w3.shape[-1]   # 32
    C4 = w4.shape[-1]   # 1

    kernel = _make_fused_kernel(H, W, Cin, C1, C2)

    flops = 2 * N * HW * (9 * Cin * C1 + 9 * C1 * C2 + 9 * C2 * C3 + C3 * C4)
    bytes_accessed = (
        x.size * 4
        + (w1p.size + w2p.size + w3p.size + w4p.size) * 2
        + (b1p.size + b2p.size + b3p.size + b4p.size) * 4
        + N * HW * 4)

    out = pl.pallas_call(
        kernel,
        out_shape=jax.ShapeDtypeStruct((N, 1, HW), jnp.float32),
        grid_spec=pltpu.PrefetchScalarGridSpec(
            num_scalar_prefetch=0,
            grid=(N,),
            in_specs=[
                pl.BlockSpec((1, Hp, Wp, Cin), lambda n: (n, 0, 0, 0)),
                pl.BlockSpec(w1p.shape, lambda n: (0, 0)),
                pl.BlockSpec(b1p.shape, lambda n: (0, 0)),
                pl.BlockSpec(w2p.shape, lambda n: (0, 0)),
                pl.BlockSpec(b2p.shape, lambda n: (0, 0)),
                pl.BlockSpec(w3p.shape, lambda n: (0, 0)),
                pl.BlockSpec(b3p.shape, lambda n: (0, 0)),
                pl.BlockSpec(w4p.shape, lambda n: (0, 0)),
                pl.BlockSpec(b4p.shape, lambda n: (0, 0)),
            ],
            out_specs=pl.BlockSpec((1, 1, HW), lambda n: (n, 0, 0)),
            scratch_shapes=[
                pltpu.VMEM((Hp, Wp, C1), jnp.float32),   # enc0 output + halo
                pltpu.VMEM((Hp, Wp, C2), jnp.float32),   # enc1 output + halo
            ],
        ),
        compiler_params=pltpu.CompilerParams(
            dimension_semantics=("parallel",)),
        cost_estimate=pl.CostEstimate(
            flops=flops, transcendentals=0, bytes_accessed=bytes_accessed),
    )(x, w1p, b1p, w2p, b2p, w3p, b3p, w4p, b4p)

    # (N, 1, H*W) -> NCHW (N, 1, H, W): pure reshape since the channel dim is 1.
    return out.reshape(N, 1, H, W)


def _reference_forward(x_nchw, params):
    """Pure-JAX f32 reference using lax.conv_general_dilated."""
    x = jnp.transpose(x_nchw, (0, 2, 3, 1))

    def conv(x, w, b, relu):
        y = jax.lax.conv_general_dilated(
            x, w, window_strides=(1, 1), padding="SAME",
            dimension_numbers=("NHWC", "HWIO", "NHWC"))
        y = y + b
        return jnp.maximum(y, 0.0) if relu else y

    w, b = params["enc0"]; x = conv(x, w, b, True)
    w, b = params["enc1"]; x = conv(x, w, b, True)
    w, b = params["dec0"]; x = conv(x, w, b, True)
    w, b = params["dec1"]; x = conv(x, w, b, False)
    return jnp.transpose(x, (0, 3, 1, 2))


if __name__ == "__main__":
    key = jax.random.PRNGKey(0)
    k_param, k_x = jax.random.split(key)

    params = init_params(k_param)
    # Small input consistent with the module: NCHW, 3 input channels.
    x = jax.random.normal(k_x, (2, 3, 16, 16), jnp.float32)

    out = jax.block_until_ready(mini_unet_forward(x, params))
    assert out.shape == (2, 1, 16, 16), out.shape

    ref = jax.block_until_ready(_reference_forward(x, params))
    err = float(jnp.max(jnp.abs(out - ref)))
    # bf16 MXU operands with f32 accumulation: use a correspondingly looser
    # tolerance than the pure-f32 version (observed error is ~1e-2 or below).
    assert jnp.allclose(out, ref, atol=3e-2, rtol=3e-2), err

    print("KERNEL_OK")
</pallas_src>

<mosaic_0001>
module attributes {stable_mosaic.version = 11 : i64} {
  func.func @kernel(%arg0: i32, %arg1: memref<1x18x18x3xf32, #tpu.memory_space<vmem>>, %arg2: memref<27x32xbf16, #tpu.memory_space<vmem>>, %arg3: memref<1x32xf32, #tpu.memory_space<vmem>>, %arg4: memref<288x64xbf16, #tpu.memory_space<vmem>>, %arg5: memref<1x64xf32, #tpu.memory_space<vmem>>, %arg6: memref<576x32xbf16, #tpu.memory_space<vmem>>, %arg7: memref<1x32xf32, #tpu.memory_space<vmem>>, %arg8: memref<32x1xbf16, #tpu.memory_space<vmem>>, %arg9: memref<1x1xf32, #tpu.memory_space<vmem>>, %arg10: memref<1x1x256xf32, #tpu.memory_space<vmem>>, %arg11: memref<18x18x32xf32, #tpu.memory_space<vmem>>, %arg12: memref<18x18x64xf32, #tpu.memory_space<vmem>>) attributes {dimension_semantics = [#tpu.dimension_semantics<parallel>], iteration_bounds = array<i64: 2>, scalar_prefetch = 0 : i64, scratch_operands = 2 : i64, tpu.core_type = #tpu.core_type<tc>, window_params = [{transform_indices = @transform_0, window_bounds = array<i64: 1, 18, 18, 3>}, {pipeline_mode = #tpu.pipeline_mode<synchronous>, transform_indices = @transform_1, window_bounds = array<i64: 27, 32>}, {pipeline_mode = #tpu.pipeline_mode<synchronous>, transform_indices = @transform_2, window_bounds = array<i64: 1, 32>}, {pipeline_mode = #tpu.pipeline_mode<synchronous>, transform_indices = @transform_3, window_bounds = array<i64: 288, 64>}, {pipeline_mode = #tpu.pipeline_mode<synchronous>, transform_indices = @transform_4, window_bounds = array<i64: 1, 64>}, {pipeline_mode = #tpu.pipeline_mode<synchronous>, transform_indices = @transform_5, window_bounds = array<i64: 576, 32>}, {pipeline_mode = #tpu.pipeline_mode<synchronous>, transform_indices = @transform_6, window_bounds = array<i64: 1, 32>}, {pipeline_mode = #tpu.pipeline_mode<synchronous>, transform_indices = @transform_7, window_bounds = array<i64: 32, 1>}, {pipeline_mode = #tpu.pipeline_mode<synchronous>, transform_indices = @transform_8, window_bounds = array<i64: 1, 1>}, {transform_indices = @transform_9, window_bounds = array<i64: 1, 1, 256>}]} {
    %cst = arith.constant 0.000000e+00 : f32
    %0 = vector.broadcast %cst : f32 to vector<18x18x32xf32>
    %c0 = arith.constant 0 : index
    %c0_0 = arith.constant 0 : index
    %c0_1 = arith.constant 0 : index
    %1 = vector.load %arg11[%c0, %c0_0, %c0_1] : memref<18x18x32xf32, #tpu.memory_space<vmem>>, vector<18x18x32xf32>
    tpu.vector_store %arg11[%c0, %c0_0, %c0_1], %0 {strides = array<i32>} : memref<18x18x32xf32, #tpu.memory_space<vmem>>, vector<18x18x32xf32>,
    %cst_2 = arith.constant 0.000000e+00 : f32
    %2 = vector.broadcast %cst_2 : f32 to vector<18x18x64xf32>
    %c0_3 = arith.constant 0 : index
    %c0_4 = arith.constant 0 : index
    %c0_5 = arith.constant 0 : index
    %3 = vector.load %arg12[%c0_3, %c0_4, %c0_5] : memref<18x18x64xf32, #tpu.memory_space<vmem>>, vector<18x18x64xf32>
    tpu.vector_store %arg12[%c0_3, %c0_4, %c0_5], %2 {strides = array<i32>} : memref<18x18x64xf32, #tpu.memory_space<vmem>>, vector<18x18x64xf32>,
    %c0_6 = arith.constant 0 : index
    %c0_7 = arith.constant 0 : index
    %c0_8 = arith.constant 0 : index
    %c0_9 = arith.constant 0 : index
    %4 = vector.load %arg1[%c0_6, %c0_7, %c0_8, %c0_9] : memref<1x18x18x3xf32, #tpu.memory_space<vmem>>, vector<1x16x16x3xf32>
    %5 = vector.shape_cast %4 : vector<1x16x16x3xf32> to vector<16x16x3xf32>
    %6 = vector.shape_cast %5 : vector<16x16x3xf32> to vector<256x3xf32>
    %c0_10 = arith.constant 0 : index
    %c0_11 = arith.constant 0 : index
    %c1 = arith.constant 1 : index
    %c0_12 = arith.constant 0 : index
    %7 = vector.load %arg1[%c0_10, %c0_11, %c1, %c0_12] : memref<1x18x18x3xf32, #tpu.memory_space<vmem>>, vector<1x16x16x3xf32>
    %8 = vector.shape_cast %7 : vector<1x16x16x3xf32> to vector<16x16x3xf32>
    %9 = vector.shape_cast %8 : vector<16x16x3xf32> to vector<256x3xf32>
    %c0_13 = arith.constant 0 : index
    %c0_14 = arith.constant 0 : index
    %c2 = arith.constant 2 : index
    %c0_15 = arith.constant 0 : index
    %10 = vector.load %arg1[%c0_13, %c0_14, %c2, %c0_15] : memref<1x18x18x3xf32, #tpu.memory_space<vmem>>, vector<1x16x16x3xf32>
    %11 = vector.shape_cast %10 : vector<1x16x16x3xf32> to vector<16x16x3xf32>
    %12 = vector.shape_cast %11 : vector<16x16x3xf32> to vector<256x3xf32>
    %c0_16 = arith.constant 0 : index
    %c1_17 = arith.constant 1 : index
    %c0_18 = arith.constant 0 : index
    %c0_19 = arith.constant 0 : index
    %13 = vector.load %arg1[%c0_16, %c1_17, %c0_18, %c0_19] : memref<1x18x18x3xf32, #tpu.memory_space<vmem>>, vector<1x16x16x3xf32>
    %14 = vector.shape_cast %13 : vector<1x16x16x3xf32> to vector<16x16x3xf32>
    %15 = vector.shape_cast %14 : vector<16x16x3xf32> to vector<256x3xf32>
    %c0_20 = arith.constant 0 : index
    %c1_21 = arith.constant 1 : index
    %c1_22 = arith.constant 1 : index
    %c0_23 = arith.constant 0 : index
    %16 = vector.load %arg1[%c0_20, %c1_21, %c1_22, %c0_23] : memref<1x18x18x3xf32, #tpu.memory_space<vmem>>, vector<1x16x16x3xf32>
    %17 = vector.shape_cast %16 : vector<1x16x16x3xf32> to vector<16x16x3xf32>
    %18 = vector.shape_cast %17 : vector<16x16x3xf32> to vector<256x3xf32>
    %c0_24 = arith.constant 0 : index
    %c1_25 = arith.constant 1 : index
    %c2_26 = arith.constant 2 : index
    %c0_27 = arith.constant 0 : index
    %19 = vector.load %arg1[%c0_24, %c1_25, %c2_26, %c0_27] : memref<1x18x18x3xf32, #tpu.memory_space<vmem>>, vector<1x16x16x3xf32>
    %20 = vector.shape_cast %19 : vector<1x16x16x3xf32> to vector<16x16x3xf32>
    %21 = vector.shape_cast %20 : vector<16x16x3xf32> to vector<256x3xf32>
    %c0_28 = arith.constant 0 : index
    %c2_29 = arith.constant 2 : index
    %c0_30 = arith.constant 0 : index
    %c0_31 = arith.constant 0 : index
    %22 = vector.load %arg1[%c0_28, %c2_29, %c0_30, %c0_31] : memref<1x18x18x3xf32, #tpu.memory_space<vmem>>, vector<1x16x16x3xf32>
    %23 = vector.shape_cast %22 : vector<1x16x16x3xf32> to vector<16x16x3xf32>
    %24 = vector.shape_cast %23 : vector<16x16x3xf32> to vector<256x3xf32>
    %c0_32 = arith.constant 0 : index
    %c2_33 = arith.constant 2 : index
    %c1_34 = arith.constant 1 : index
    %c0_35 = arith.constant 0 : index
    %25 = vector.load %arg1[%c0_32, %c2_33, %c1_34, %c0_35] : memref<1x18x18x3xf32, #tpu.memory_space<vmem>>, vector<1x16x16x3xf32>
    %26 = vector.shape_cast %25 : vector<1x16x16x3xf32> to vector<16x16x3xf32>
    %27 = vector.shape_cast %26 : vector<16x16x3xf32> to vector<256x3xf32>
    %c0_36 = arith.constant 0 : index
    %c2_37 = arith.constant 2 : index
    %c2_38 = arith.constant 2 : index
    %c0_39 = arith.constant 0 : index
    %28 = vector.load %arg1[%c0_36, %c2_37, %c2_38, %c0_39] : memref<1x18x18x3xf32, #tpu.memory_space<vmem>>, vector<1x16x16x3xf32>
    %29 = vector.shape_cast %28 : vector<1x16x16x3xf32> to vector<16x16x3xf32>
    %30 = vector.shape_cast %29 : vector<16x16x3xf32> to vector<256x3xf32>
    %31 = tpu.concatenate %6, %9, %12, %15, %18, %21, %24, %27, %30 in 1 : vector<256x3xf32>, vector<256x3xf32>, vector<256x3xf32>, vector<256x3xf32>, vector<256x3xf32>, vector<256x3xf32>, vector<256x3xf32>, vector<256x3xf32>, vector<256x3xf32> -> vector<256x27xf32>
    %32 = arith.truncf %31 : vector<256x27xf32> to vector<256x27xbf16>
    %c0_40 = arith.constant 0 : index
    %c0_41 = arith.constant 0 : index
    %33 = vector.load %arg2[%c0_40, %c0_41] : memref<27x32xbf16, #tpu.memory_space<vmem>>, vector<27x32xbf16>
    %cst_42 = arith.constant dense<0.000000e+00> : vector<256x32xf32>
    %34 = tpu.matmul %32, %33, %cst_42 {dimension_numbers = #tpu.dot_dimension_numbers<[1], [0], [0], [1], [0, 0, 1, 1], [], []>} : vector<256x27xbf16>, vector<27x32xbf16>, vector<256x32xf32> -> vector<256x32xf32>
    %c0_43 = arith.constant 0 : index
    %c0_44 = arith.constant 0 : index
    %35 = vector.load %arg3[%c0_43, %c0_44] : memref<1x32xf32, #tpu.memory_space<vmem>>, vector<1x32xf32>
    %36 = vector.broadcast %35 : vector<1x32xf32> to vector<256x32xf32>
    %37 = arith.addf %34, %36 : vector<256x32xf32>
    %cst_45 = arith.constant 0.000000e+00 : f32
    %38 = vector.broadcast %cst_45 : f32 to vector<256x32xf32>
    %39 = arith.maximumf %37, %38 : vector<256x32xf32>
    %40 = vector.shape_cast %39 : vector<256x32xf32> to vector<16x16x32xf32>
    %c1_46 = arith.constant 1 : index
    %c1_47 = arith.constant 1 : index
    %c0_48 = arith.constant 0 : index
    %41 = vector.load %arg11[%c1_46, %c1_47, %c0_48] : memref<18x18x32xf32, #tpu.memory_space<vmem>>, vector<16x16x32xf32>
    tpu.vector_store %arg11[%c1_46, %c1_47, %c0_48], %40 {strides = array<i32>} : memref<18x18x32xf32, #tpu.memory_space<vmem>>, vector<16x16x32xf32>,
    %c0_49 = arith.constant 0 : index
    %c0_50 = arith.constant 0 : index
    %c0_51 = arith.constant 0 : index
    %42 = vector.load %arg11[%c0_49, %c0_50, %c0_51] : memref<18x18x32xf32, #tpu.memory_space<vmem>>, vector<16x16x32xf32>
    %43 = vector.shape_cast %42 : vector<16x16x32xf32> to vector<256x32xf32>
    %c0_52 = arith.constant 0 : index
    %c1_53 = arith.constant 1 : index
    %c0_54 = arith.constant 0 : index
    %44 = vector.load %arg11[%c0_52, %c1_53, %c0_54] : memref<18x18x32xf32, #tpu.memory_space<vmem>>, vector<16x16x32xf32>
    %45 = vector.shape_cast %44 : vector<16x16x32xf32> to vector<256x32xf32>
    %c0_55 = arith.constant 0 : index
    %c2_56 = arith.constant 2 : index
    %c0_57 = arith.constant 0 : index
    %46 = vector.load %arg11[%c0_55, %c2_56, %c0_57] : memref<18x18x32xf32, #tpu.memory_space<vmem>>, vector<16x16x32xf32>
    %47 = vector.shape_cast %46 : vector<16x16x32xf32> to vector<256x32xf32>
    %c1_58 = arith.constant 1 : index
    %c0_59 = arith.constant 0 : index
    %c0_60 = arith.constant 0 : index
    %48 = vector.load %arg11[%c1_58, %c0_59, %c0_60] : memref<18x18x32xf32, #tpu.memory_space<vmem>>, vector<16x16x32xf32>
    %49 = vector.shape_cast %48 : vector<16x16x32xf32> to vector<256x32xf32>
    %c1_61 = arith.constant 1 : index
    %c1_62 = arith.constant 1 : index
    %c0_63 = arith.constant 0 : index
    %50 = vector.load %arg11[%c1_61, %c1_62, %c0_63] : memref<18x18x32xf32, #tpu.memory_space<vmem>>, vector<16x16x32xf32>
    %51 = vector.shape_cast %50 : vector<16x16x32xf32> to vector<256x32xf32>
    %c1_64 = arith.constant 1 : index
    %c2_65 = arith.constant 2 : index
    %c0_66 = arith.constant 0 : index
    %52 = vector.load %arg11[%c1_64, %c2_65, %c0_66] : memref<18x18x32xf32, #tpu.memory_space<vmem>>, vector<16x16x32xf32>
    %53 = vector.shape_cast %52 : vector<16x16x32xf32> to vector<256x32xf32>
    %c2_67 = arith.constant 2 : index
    %c0_68 = arith.constant 0 : index
    %c0_69 = arith.constant 0 : index
    %54 = vector.load %arg11[%c2_67, %c0_68, %c0_69] : memref<18x18x32xf32, #tpu.memory_space<vmem>>, vector<16x16x32xf32>
    %55 = vector.shape_cast %54 : vector<16x16x32xf32> to vector<256x32xf32>
    %c2_70 = arith.constant 2 : index
    %c1_71 = arith.constant 1 : index
    %c0_72 = arith.constant 0 : index
    %56 = vector.load %arg11[%c2_70, %c1_71, %c0_72] : memref<18x18x32xf32, #tpu.memory_space<vmem>>, vector<16x16x32xf32>
    %57 = vector.shape_cast %56 : vector<16x16x32xf32> to vector<256x32xf32>
    %c2_73 = arith.constant 2 : index
    %c2_74 = arith.constant 2 : index
    %c0_75 = arith.constant 0 : index
    %58 = vector.load %arg11[%c2_73, %c2_74, %c0_75] : memref<18x18x32xf32, #tpu.memory_space<vmem>>, vector<16x16x32xf32>
    %59 = vector.shape_cast %58 : vector<16x16x32xf32> to vector<256x32xf32>
    %60 = tpu.concatenate %43, %45, %47, %49, %51, %53, %55, %57, %59 in 1 : vector<256x32xf32>, vector<256x32xf32>, vector<256x32xf32>, vector<256x32xf32>, vector<256x32xf32>, vector<256x32xf32>, vector<256x32xf32>, vector<256x32xf32>, vector<256x32xf32> -> vector<256x288xf32>
    %61 = arith.truncf %60 : vector<256x288xf32> to vector<256x288xbf16>
    %c0_76 = arith.constant 0 : index
    %c0_77 = arith.constant 0 : index
    %62 = vector.load %arg4[%c0_76, %c0_77] : memref<288x64xbf16, #tpu.memory_space<vmem>>, vector<288x64xbf16>
    %cst_78 = arith.constant dense<0.000000e+00> : vector<256x64xf32>
    %63 = tpu.matmul %61, %62, %cst_78 {dimension_numbers = #tpu.dot_dimension_numbers<[1], [0], [0], [1], [0, 0, 1, 1], [], []>} : vector<256x288xbf16>, vector<288x64xbf16>, vector<256x64xf32> -> vector<256x64xf32>
    %c0_79 = arith.constant 0 : index
    %c0_80 = arith.constant 0 : index
    %64 = vector.load %arg5[%c0_79, %c0_80] : memref<1x64xf32, #tpu.memory_space<vmem>>, vector<1x64xf32>
    %65 = vector.broadcast %64 : vector<1x64xf32> to vector<256x64xf32>
    %66 = arith.addf %63, %65 : vector<256x64xf32>
    %cst_81 = arith.constant 0.000000e+00 : f32
    %67 = vector.broadcast %cst_81 : f32 to vector<256x64xf32>
    %68 = arith.maximumf %66, %67 : vector<256x64xf32>
    %69 = vector.shape_cast %68 : vector<256x64xf32> to vector<16x16x64xf32>
    %c1_82 = arith.constant 1 : index
    %c1_83 = arith.constant 1 : index
    %c0_84 = arith.constant 0 : index
    %70 = vector.load %arg12[%c1_82, %c1_83, %c0_84] : memref<18x18x64xf32, #tpu.memory_space<vmem>>, vector<16x16x64xf32>
    tpu.vector_store %arg12[%c1_82, %c1_83, %c0_84], %69 {strides = array<i32>} : memref<18x18x64xf32, #tpu.memory_space<vmem>>, vector<16x16x64xf32>,
    %c0_85 = arith.constant 0 : index
    %c0_86 = arith.constant 0 : index
    %c0_87 = arith.constant 0 : index
    %71 = vector.load %arg12[%c0_85, %c0_86, %c0_87] : memref<18x18x64xf32, #tpu.memory_space<vmem>>, vector<16x16x64xf32>
    %72 = vector.shape_cast %71 : vector<16x16x64xf32> to vector<256x64xf32>
    %c0_88 = arith.constant 0 : index
    %c1_89 = arith.constant 1 : index
    %c0_90 = arith.constant 0 : index
    %73 = vector.load %arg12[%c0_88, %c1_89, %c0_90] : memref<18x18x64xf32, #tpu.memory_space<vmem>>, vector<16x16x64xf32>
    %74 = vector.shape_cast %73 : vector<16x16x64xf32> to vector<256x64xf32>
    %c0_91 = arith.constant 0 : index
    %c2_92 = arith.constant 2 : index
    %c0_93 = arith.constant 0 : index
    %75 = vector.load %arg12[%c0_91, %c2_92, %c0_93] : memref<18x18x64xf32, #tpu.memory_space<vmem>>, vector<16x16x64xf32>
    %76 = vector.shape_cast %75 : vector<16x16x64xf32> to vector<256x64xf32>
    %c1_94 = arith.constant 1 : index
    %c0_95 = arith.constant 0 : index
    %c0_96 = arith.constant 0 : index
    %77 = vector.load %arg12[%c1_94, %c0_95, %c0_96] : memref<18x18x64xf32, #tpu.memory_space<vmem>>, vector<16x16x64xf32>
    %78 = vector.shape_cast %77 : vector<16x16x64xf32> to vector<256x64xf32>
    %c1_97 = arith.constant 1 : index
    %c1_98 = arith.constant 1 : index
    %c0_99 = arith.constant 0 : index
    %79 = vector.load %arg12[%c1_97, %c1_98, %c0_99] : memref<18x18x64xf32, #tpu.memory_space<vmem>>, vector<16x16x64xf32>
    %80 = vector.shape_cast %79 : vector<16x16x64xf32> to vector<256x64xf32>
    %c1_100 = arith.constant 1 : index
    %c2_101 = arith.constant 2 : index
    %c0_102 = arith.constant 0 : index
    %81 = vector.load %arg12[%c1_100, %c2_101, %c0_102] : memref<18x18x64xf32, #tpu.memory_space<vmem>>, vector<16x16x64xf32>
    %82 = vector.shape_cast %81 : vector<16x16x64xf32> to vector<256x64xf32>
    %c2_103 = arith.constant 2 : index
    %c0_104 = arith.constant 0 : index
    %c0_105 = arith.constant 0 : index
    %83 = vector.load %arg12[%c2_103, %c0_104, %c0_105] : memref<18x18x64xf32, #tpu.memory_space<vmem>>, vector<16x16x64xf32>
    %84 = vector.shape_cast %83 : vector<16x16x64xf32> to vector<256x64xf32>
    %c2_106 = arith.constant 2 : index
    %c1_107 = arith.constant 1 : index
    %c0_108 = arith.constant 0 : index
    %85 = vector.load %arg12[%c2_106, %c1_107, %c0_108] : memref<18x18x64xf32, #tpu.memory_space<vmem>>, vector<16x16x64xf32>
    %86 = vector.shape_cast %85 : vector<16x16x64xf32> to vector<256x64xf32>
    %c2_109 = arith.constant 2 : index
    %c2_110 = arith.constant 2 : index
    %c0_111 = arith.constant 0 : index
    %87 = vector.load %arg12[%c2_109, %c2_110, %c0_111] : memref<18x18x64xf32, #tpu.memory_space<vmem>>, vector<16x16x64xf32>
    %88 = vector.shape_cast %87 : vector<16x16x64xf32> to vector<256x64xf32>
    %89 = tpu.concatenate %72, %74, %76, %78, %80, %82, %84, %86, %88 in 1 : vector<256x64xf32>, vector<256x64xf32>, vector<256x64xf32>, vector<256x64xf32>, vector<256x64xf32>, vector<256x64xf32>, vector<256x64xf32>, vector<256x64xf32>, vector<256x64xf32> -> vector<256x576xf32>
    %90 = arith.truncf %89 : vector<256x576xf32> to vector<256x576xbf16>
    %c0_112 = arith.constant 0 : index
    %c0_113 = arith.constant 0 : index
    %91 = vector.load %arg6[%c0_112, %c0_113] : memref<576x32xbf16, #tpu.memory_space<vmem>>, vector<576x32xbf16>
    %cst_114 = arith.constant dense<0.000000e+00> : vector<256x32xf32>
    %92 = tpu.matmul %90, %91, %cst_114 {dimension_numbers = #tpu.dot_dimension_numbers<[1], [0], [0], [1], [0, 0, 1, 1], [], []>} : vector<256x576xbf16>, vector<576x32xbf16>, vector<256x32xf32> -> vector<256x32xf32>
    %c0_115 = arith.constant 0 : index
    %c0_116 = arith.constant 0 : index
    %93 = vector.load %arg7[%c0_115, %c0_116] : memref<1x32xf32, #tpu.memory_space<vmem>>, vector<1x32xf32>
    %94 = vector.broadcast %93 : vector<1x32xf32> to vector<256x32xf32>
    %95 = arith.addf %92, %94 : vector<256x32xf32>
    %cst_117 = arith.constant 0.000000e+00 : f32
    %96 = vector.broadcast %cst_117 : f32 to vector<256x32xf32>
    %97 = arith.maximumf %95, %96 : vector<256x32xf32>
    %98 = arith.truncf %97 : vector<256x32xf32> to vector<256x32xbf16>
    %c0_118 = arith.constant 0 : index
    %c0_119 = arith.constant 0 : index
    %99 = vector.load %arg8[%c0_118, %c0_119] : memref<32x1xbf16, #tpu.memory_space<vmem>>, vector<32x1xbf16>
    %cst_120 = arith.constant dense<0.000000e+00> : vector<256x1xf32>
    %100 = tpu.matmul %98, %99, %cst_120 {dimension_numbers = #tpu.dot_dimension_numbers<[1], [0], [0], [1], [0, 0, 1, 1], [], []>} : vector<256x32xbf16>, vector<32x1xbf16>, vector<256x1xf32> -> vector<256x1xf32>
    %c0_121 = arith.constant 0 : index
    %c0_122 = arith.constant 0 : index
    %101 = vector.load %arg9[%c0_121, %c0_122] : memref<1x1xf32, #tpu.memory_space<vmem>>, vector<1x1xf32>
    %102 = vector.broadcast %101 : vector<1x1xf32> to vector<256x1xf32>
    %103 = arith.addf %100, %102 : vector<256x1xf32>
    %104 = vector.shape_cast %103 : vector<256x1xf32> to vector<1x1x256xf32>
    %c0_123 = arith.constant 0 : index
    %c0_124 = arith.constant 0 : index
    %c0_125 = arith.constant 0 : index
    %105 = vector.load %arg10[%c0_123, %c0_124, %c0_125] : memref<1x1x256xf32, #tpu.memory_space<vmem>>, vector<1x1x256xf32>
    tpu.vector_store %arg10[%c0_123, %c0_124, %c0_125], %104 {strides = array<i32>} : memref<1x1x256xf32, #tpu.memory_space<vmem>>, vector<1x1x256xf32>,
    return
  }
  func.func @transform_0(%arg0: i32) -> (i32, i32, i32, i32) {
    %c0_i32 = arith.constant 0 : i32
    %c0_i32_0 = arith.constant 0 : i32
    %c0_i32_1 = arith.constant 0 : i32
    %c0_i32_2 = arith.constant 0 : i32
    return %arg0, %c0_i32, %c0_i32_0, %c0_i32_1 : i32, i32, i32, i32
  }
  func.func @transform_1(%arg0: i32) -> (i32, i32) {
    %c0_i32 = arith.constant 0 : i32
    %c0_i32_0 = arith.constant 0 : i32
    %c0_i32_1 = arith.constant 0 : i32
    return %c0_i32, %c0_i32_0 : i32, i32
  }
  func.func @transform_2(%arg0: i32) -> (i32, i32) {
    %c0_i32 = arith.constant 0 : i32
    %c0_i32_0 = arith.constant 0 : i32
    %c0_i32_1 = arith.constant 0 : i32
    return %c0_i32, %c0_i32_0 : i32, i32
  }
  func.func @transform_3(%arg0: i32) -> (i32, i32) {
    %c0_i32 = arith.constant 0 : i32
    %c0_i32_0 = arith.constant 0 : i32
    %c0_i32_1 = arith.constant 0 : i32
    return %c0_i32, %c0_i32_0 : i32, i32
  }
  func.func @transform_4(%arg0: i32) -> (i32, i32) {
    %c0_i32 = arith.constant 0 : i32
    %c0_i32_0 = arith.constant 0 : i32
    %c0_i32_1 = arith.constant 0 : i32
    return %c0_i32, %c0_i32_0 : i32, i32
  }
  func.func @transform_5(%arg0: i32) -> (i32, i32) {
    %c0_i32 = arith.constant 0 : i32
    %c0_i32_0 = arith.constant 0 : i32
    %c0_i32_1 = arith.constant 0 : i32
    return %c0_i32, %c0_i32_0 : i32, i32
  }
  func.func @transform_6(%arg0: i32) -> (i32, i32) {
    %c0_i32 = arith.constant 0 : i32
    %c0_i32_0 = arith.constant 0 : i32
    %c0_i32_1 = arith.constant 0 : i32
    return %c0_i32, %c0_i32_0 : i32, i32
  }
  func.func @transform_7(%arg0: i32) -> (i32, i32) {
    %c0_i32 = arith.constant 0 : i32
    %c0_i32_0 = arith.constant 0 : i32
    %c0_i32_1 = arith.constant 0 : i32
    return %c0_i32, %c0_i32_0 : i32, i32
  }
  func.func @transform_8(%arg0: i32) -> (i32, i32) {
    %c0_i32 = arith.constant 0 : i32
    %c0_i32_0 = arith.constant 0 : i32
    %c0_i32_1 = arith.constant 0 : i32
    return %c0_i32, %c0_i32_0 : i32, i32
  }
  func.func @transform_9(%arg0: i32) -> (i32, i32, i32) {
    %c0_i32 = arith.constant 0 : i32
    %c0_i32_0 = arith.constant 0 : i32
    %c0_i32_1 = arith.constant 0 : i32
    return %arg0, %c0_i32, %c0_i32_0 : i32, i32, i32
  }
}

</mosaic_0001>

<llo_original>
// kernel: mini_unet_forward.1
$region0: #{mini_unet_forward.1}
  #allocation0 [shape = 'u32[]', space=smem, size = 0x4, offset = 0x4, fixed_abs, tag = 'smem constant byte address 0x4 - core index']
  #allocation1 [shape = 'u32[72,128]{1,0:T(1,128)}', space=vmem, size = 0x9000, scoped, tag = 'internal scratch']
  #allocation2 [shape = 'f32[18,18,32]{2,1,0:T(8,128)}', space=vmem, size = 0x36000, scoped, tag = 'scratch operand']
  #allocation3 [shape = 'f32[18,18,64]{2,1,0:T(8,128)}', space=vmem, size = 0x36000, scoped, tag = 'scratch operand']
  #allocation4 [shape = 'f32[1,1]{1,0:T(1,128)S(1)}', space=vmem, size = 0x200, scoped, tag = 'scoped memory for mini_unet_forward.1']
  %s0 = inlined_call_operand.vmem [shape: f32[2,18,18,3], index: 0, kind: input, shape index: {}]
  %s1 = inlined_call_operand.vmem [shape: bf16[27,32], index: 1, kind: input, shape index: {}]
  %s2 = inlined_call_operand.vmem [shape: f32[1,32], index: 2, kind: input, shape index: {}]
  %s3 = inlined_call_operand.vmem [shape: bf16[288,64], index: 3, kind: input, shape index: {}]
  %s4 = inlined_call_operand.vmem [shape: f32[1,64], index: 4, kind: input, shape index: {}]
  %s5 = inlined_call_operand.vmem [shape: bf16[576,32], index: 5, kind: input, shape index: {}]
  %s6 = inlined_call_operand.vmem [shape: f32[1,32], index: 6, kind: input, shape index: {}]
  %s7 = inlined_call_operand.vmem [shape: bf16[32,1], index: 7, kind: input, shape index: {}]
  %s8 = inlined_call_operand.<no memory space> [shape: f32[1,1], index: 8, kind: input, shape index: {}]
  %s9 = inlined_call_operand.vmem [shape: f32[2,1,256], index: 9, kind: output, shape index: {}]
  %s10 = sld [smem:[#allocation0]]
  $region69: #{mini_unet_forward.1} parent=0
    _
  %s12 = ssub.s32 1, %s10
  %s13 = scalar_select 0, %s12, %s10
  %v14 = vstv %s8
  %15 = vst [vmem:[#allocation4] sm:$0x1] %v14
  loop: start=0, step=1, limit=4
  $region2: #{mini_unet_forward.1} parent=0 // loop_pre_header
    _
  $region3: #{mini_unet_forward.1} parent=0 // loop_header
    %s17 = sphi 0, %s21
    %p18 = scmp.ge.s32.totalorder %s17, 4
    %s27 = sphi 0, %s29
    %s30 = sphi 0, %s27
    %s31 = sphi 0, %s30
    %s47 = sphi 0, %s31
    %s51 = sphi 0, %s51
    %s53 = sphi 0, %s51
    %s54 = sphi 0, %s53
    %s68 = sphi 0, %s54
    %s72 = sphi 0, %s72
    %s74 = sphi 0, %s72
    %s75 = sphi 0, %s74
    %s89 = sphi 0, %s75
    %s93 = sphi 0, %s93
    %s95 = sphi 0, %s93
    %s96 = sphi 0, %s95
    %s110 = sphi 0, %s96
    %s114 = sphi 0, %s114
    %s116 = sphi 0, %s114
    %s117 = sphi 0, %s116
    %s131 = sphi 0, %s117
    %s135 = sphi 0, %s135
    %s137 = sphi 0, %s135
    %s138 = sphi 0, %s137
    %s152 = sphi 0, %s138
    %s156 = sphi 0, %s156
    %s158 = sphi 0, %s156
    %s159 = sphi 0, %s158
    %s173 = sphi 0, %s159
    %s177 = sphi 0, %s177
    %s179 = sphi 0, %s177
    %s180 = sphi 0, %s179
    %s194 = sphi 0, %s180
    %s198 = sphi 0, %s198
    %s200 = sphi 0, %s198
    %s201 = sphi 0, %s200
    %s215 = sphi 0, %s201
    %s221 = sphi 0, %s223
    %s224 = sphi 0, %s221
    %s225 = sphi 0, %s224
    %s241 = sphi 0, %s225
  $region4: #{mini_unet_forward.1} parent=0 // loop_header_branch
    %20 = sbr.rel (%p18) target = $region8
  $region5: #{mini_unet_forward.1} parent=0 // loop_body
    %s22 = ssub.s32 %s17, 1
    %s23 = ssub.s32 %s17, 2
    %s24 = sadd.s32 %s17, 1
    %s25 = ssub.s32 %s17, %s24
    %p26 = scmp.eq.s32.totalorder %s25, 0
    %s28 = sadd.s32 %s27, 1
    %s29 = scalar_select %p26, %s27, %s28
    %p32 = pneg %p26
    %p33 = scmp.eq.s32.totalorder %s17, 1
    %p34 = por %p32, %p33
    %p35 = scmp.ne.s32.totalorder %s27, %s30
    %p36 = scmp.eq.s32.totalorder %s17, 0
    %p37 = por %p35, %p36
    %p38 = scmp.ne.s32.totalorder %s27, %s30
    %p39 = scmp.eq.s32.totalorder %s22, 1
    %p40 = por %p38, %p39
    %p41 = scmp.ne.s32.totalorder %s30, %s31
    %p42 = scmp.eq.s32.totalorder %s22, 0
    %p43 = por %p41, %p42
    %p44 = scmp.ne.s32.totalorder %s30, %s31
    %p45 = scmp.eq.s32.totalorder %s23, 1
    %p46 = por %p44, %p45
    %p48 = scmp.ne.s32.totalorder %s31, %s47
    %p49 = scmp.eq.s32.totalorder %s23, 0
    %p50 = por %p48, %p49
    %s52 = sadd.s32 %s51, 1
    %p55 = scmp.eq.s32.totalorder %s17, 1
    %p56 = scmp.ne.s32.totalorder %s51, %s53
    %p57 = scmp.eq.s32.totalorder %s17, 0
    %p58 = por %p56, %p57
    %p59 = scmp.ne.s32.totalorder %s51, %s53
    %p60 = scmp.eq.s32.totalorder %s22, 1
    %p61 = por %p59, %p60
    %p62 = scmp.ne.s32.totalorder %s53, %s54
    %p63 = scmp.eq.s32.totalorder %s22, 0
    %p64 = por %p62, %p63
    %p65 = scmp.ne.s32.totalorder %s53, %s54
    %p66 = scmp.eq.s32.totalorder %s23, 1
    %p67 = por %p65, %p66
    %p69 = scmp.ne.s32.totalorder %s54, %s68
    %p70 = scmp.eq.s32.totalorder %s23, 0
    %p71 = por %p69, %p70
    %s73 = sadd.s32 %s72, 1
    %p76 = scmp.eq.s32.totalorder %s17, 1
    %p77 = scmp.ne.s32.totalorder %s72, %s74
    %p78 = scmp.eq.s32.totalorder %s17, 0
    %p79 = por %p77, %p78
    %p80 = scmp.ne.s32.totalorder %s72, %s74
    %p81 = scmp.eq.s32.totalorder %s22, 1
    %p82 = por %p80, %p81
    %p83 = scmp.ne.s32.totalorder %s74, %s75
    %p84 = scmp.eq.s32.totalorder %s22, 0
    %p85 = por %p83, %p84
    %p86 = scmp.ne.s32.totalorder %s74, %s75
    %p87 = scmp.eq.s32.totalorder %s23, 1
    %p88 = por %p86, %p87
    %p90 = scmp.ne.s32.totalorder %s75, %s89
    %p91 = scmp.eq.s32.totalorder %s23, 0
    %p92 = por %p90, %p91
    %s94 = sadd.s32 %s93, 1
    %p97 = scmp.eq.s32.totalorder %s17, 1
    %p98 = scmp.ne.s32.totalorder %s93, %s95
    %p99 = scmp.eq.s32.totalorder %s17, 0
    %p100 = por %p98, %p99
    %p101 = scmp.ne.s32.totalorder %s93, %s95
    %p102 = scmp.eq.s32.totalorder %s22, 1
    %p103 = por %p101, %p102
    %p104 = scmp.ne.s32.totalorder %s95, %s96
    %p105 = scmp.eq.s32.totalorder %s22, 0
    %p106 = por %p104, %p105
    %p107 = scmp.ne.s32.totalorder %s95, %s96
    %p108 = scmp.eq.s32.totalorder %s23, 1
    %p109 = por %p107, %p108
    %p111 = scmp.ne.s32.totalorder %s96, %s110
    %p112 = scmp.eq.s32.totalorder %s23, 0
    %p113 = por %p111, %p112
    %s115 = sadd.s32 %s114, 1
    %p118 = scmp.eq.s32.totalorder %s17, 1
    %p119 = scmp.ne.s32.totalorder %s114, %s116
    %p120 = scmp.eq.s32.totalorder %s17, 0
    %p121 = por %p119, %p120
    %p122 = scmp.ne.s32.totalorder %s114, %s116
    %p123 = scmp.eq.s32.totalorder %s22, 1
    %p124 = por %p122, %p123
    %p125 = scmp.ne.s32.totalorder %s116, %s117
    %p126 = scmp.eq.s32.totalorder %s22, 0
    %p127 = por %p125, %p126
    %p128 = scmp.ne.s32.totalorder %s116, %s117
    %p129 = scmp.eq.s32.totalorder %s23, 1
    %p130 = por %p128, %p129
    %p132 = scmp.ne.s32.totalorder %s117, %s131
    %p133 = scmp.eq.s32.totalorder %s23, 0
    %p134 = por %p132, %p133
    %s136 = sadd.s32 %s135, 1
    %p139 = scmp.eq.s32.totalorder %s17, 1
    %p140 = scmp.ne.s32.totalorder %s135, %s137
    %p141 = scmp.eq.s32.totalorder %s17, 0
    %p142 = por %p140, %p141
    %p143 = scmp.ne.s32.totalorder %s135, %s137
    %p144 = scmp.eq.s32.totalorder %s22, 1
    %p145 = por %p143, %p144
    %p146 = scmp.ne.s32.totalorder %s137, %s138
    %p147 = scmp.eq.s32.totalorder %s22, 0
    %p148 = por %p146, %p147
    %p149 = scmp.ne.s32.totalorder %s137, %s138
    %p150 = scmp.eq.s32.totalorder %s23, 1
    %p151 = por %p149, %p150
    %p153 = scmp.ne.s32.totalorder %s138, %s152
    %p154 = scmp.eq.s32.totalorder %s23, 0
    %p155 = por %p153, %p154
    %s157 = sadd.s32 %s156, 1
    %p160 = scmp.eq.s32.totalorder %s17, 1
    %p161 = scmp.ne.s32.totalorder %s156, %s158
    %p162 = scmp.eq.s32.totalorder %s17, 0
    %p163 = por %p161, %p162
    %p164 = scmp.ne.s32.totalorder %s156, %s158
    %p165 = scmp.eq.s32.totalorder %s22, 1
    %p166 = por %p164, %p165
    %p167 = scmp.ne.s32.totalorder %s158, %s159
    %p168 = scmp.eq.s32.totalorder %s22, 0
    %p169 = por %p167, %p168
    %p170 = scmp.ne.s32.totalorder %s158, %s159
    %p171 = scmp.eq.s32.totalorder %s23, 1
    %p172 = por %p170, %p171
    %p174 = scmp.ne.s32.totalorder %s159, %s173
    %p175 = scmp.eq.s32.totalorder %s23, 0
    %p176 = por %p174, %p175
    %s178 = sadd.s32 %s177, 1
    %p181 = scmp.eq.s32.totalorder %s17, 1
    %p182 = scmp.ne.s32.totalorder %s177, %s179
    %p183 = scmp.eq.s32.totalorder %s17, 0
    %p184 = por %p182, %p183
    %p185 = scmp.ne.s32.totalorder %s177, %s179
    %p186 = scmp.eq.s32.totalorder %s22, 1
    %p187 = por %p185, %p186
    %p188 = scmp.ne.s32.totalorder %s179, %s180
    %p189 = scmp.eq.s32.totalorder %s22, 0
    %p190 = por %p188, %p189
    %p191 = scmp.ne.s32.totalorder %s179, %s180
    %p192 = scmp.eq.s32.totalorder %s23, 1
    %p193 = por %p191, %p192
    %p195 = scmp.ne.s32.totalorder %s180, %s194
    %p196 = scmp.eq.s32.totalorder %s23, 0
    %p197 = por %p195, %p196
    %s199 = sadd.s32 %s198, 1
    %p202 = scmp.eq.s32.totalorder %s17, 1
    %p203 = scmp.ne.s32.totalorder %s198, %s200
    %p204 = scmp.eq.s32.totalorder %s17, 0
    %p205 = por %p203, %p204
    %p206 = scmp.ne.s32.totalorder %s198, %s200
    %p207 = scmp.eq.s32.totalorder %s22, 1
    %p208 = por %p206, %p207
    %p209 = scmp.ne.s32.totalorder %s200, %s201
    %p210 = scmp.eq.s32.totalorder %s22, 0
    %p211 = por %p209, %p210
    %p212 = scmp.ne.s32.totalorder %s200, %s201
    %p213 = scmp.eq.s32.totalorder %s23, 1
    %p214 = por %p212, %p213
    %p216 = scmp.ne.s32.totalorder %s201, %s215
    %p217 = scmp.eq.s32.totalorder %s23, 0
    %p218 = por %p216, %p217
    %s219 = ssub.s32 %s17, %s24
    %p220 = scmp.eq.s32.totalorder %s219, 0
    %s222 = sadd.s32 %s221, 1
    %s223 = scalar_select %p220, %s221, %s222
    %p226 = pneg %p220
    %p227 = scmp.eq.s32.totalorder %s17, 1
    %p228 = por %p226, %p227
    %p229 = scmp.ne.s32.totalorder %s221, %s224
    %p230 = scmp.eq.s32.totalorder %s17, 0
    %p231 = por %p229, %p230
    %p232 = scmp.ne.s32.totalorder %s221, %s224
    %p233 = scmp.eq.s32.totalorder %s22, 1
    %p234 = por %p232, %p233
    %p235 = scmp.ne.s32.totalorder %s224, %s225
    %p236 = scmp.eq.s32.totalorder %s22, 0
    %p237 = por %p235, %p236
    %p238 = scmp.ne.s32.totalorder %s224, %s225
    %p239 = scmp.eq.s32.totalorder %s23, 1
    %p240 = por %p238, %p239
    %p242 = scmp.ne.s32.totalorder %s225, %s241
    %p243 = scmp.eq.s32.totalorder %s23, 0
    %p244 = por %p242, %p243
    %p245 = scmp.le.s32.totalorder 1, %s17
    %p246 = scmp.lt.s32.totalorder %s17, 3
    %p247 = pnand %p245, %p246
    %p248 = pneg %p247
    // Predicated region
    $region9: #{mini_unet_forward.1} parent=5 // pred_check
      _
    $region10: #{mini_unet_forward.1} parent=5 // pred_check_branch
      %250 = sbr.rel (%p247) target = $region12
    $region11: #{mini_unet_forward.1} parent=5 // pred_region
      %s251 = ssub.s32 %s17, 1
      // Predicated region
      $region13: #{mini_unet_forward.1} parent=11 // pred_check
        %p252 = pneg %p64
      $region14: #{mini_unet_forward.1} parent=11 // pred_check_branch
        %254 = sbr.rel (%p252) target = $region16
      $region15: #{mini_unet_forward.1} parent=11 // pred_region
        _
      $region16: #{mini_unet_forward.1} parent=11 // pred_fallthru
        _
      // Predicated region
      $region17: #{mini_unet_forward.1} parent=11 // pred_check
        %p255 = pneg %p85
      $region18: #{mini_unet_forward.1} parent=11 // pred_check_branch
        %257 = sbr.rel (%p255) target = $region20
      $region19: #{mini_unet_forward.1} parent=11 // pred_region
        _
      $region20: #{mini_unet_forward.1} parent=11 // pred_fallthru
        _
      // Predicated region
      $region21: #{mini_unet_forward.1} parent=11 // pred_check
        %p258 = pneg %p106
      $region22: #{mini_unet_forward.1} parent=11 // pred_check_branch
        %260 = sbr.rel (%p258) target = $region24
      $region23: #{mini_unet_forward.1} parent=11 // pred_region
        _
      $region24: #{mini_unet_forward.1} parent=11 // pred_fallthru
        _
      // Predicated region
      $region25: #{mini_unet_forward.1} parent=11 // pred_check
        %p261 = pneg %p127
      $region26: #{mini_unet_forward.1} parent=11 // pred_check_branch
        %263 = sbr.rel (%p261) target = $region28
      $region27: #{mini_unet_forward.1} parent=11 // pred_region
        _
      $region28: #{mini_unet_forward.1} parent=11 // pred_fallthru
        _
      // Predicated region
      $region29: #{mini_unet_forward.1} parent=11 // pred_check
        %p264 = pneg %p148
      $region30: #{mini_unet_forward.1} parent=11 // pred_check_branch
        %266 = sbr.rel (%p264) target = $region32
      $region31: #{mini_unet_forward.1} parent=11 // pred_region
        _
      $region32: #{mini_unet_forward.1} parent=11 // pred_fallthru
        _
      // Predicated region
      $region33: #{mini_unet_forward.1} parent=11 // pred_check
        %p267 = pneg %p169
      $region34: #{mini_unet_forward.1} parent=11 // pred_check_branch
        %269 = sbr.rel (%p267) target = $region36
      $region35: #{mini_unet_forward.1} parent=11 // pred_region
        _
      $region36: #{mini_unet_forward.1} parent=11 // pred_fallthru
        _
      // Predicated region
      $region37: #{mini_unet_forward.1} parent=11 // pred_check
        %p270 = pneg %p190
      $region38: #{mini_unet_forward.1} parent=11 // pred_check_branch
        %272 = sbr.rel (%p270) target = $region40
      $region39: #{mini_unet_forward.1} parent=11 // pred_region
        _
      $region40: #{mini_unet_forward.1} parent=11 // pred_fallthru
        _
      // Predicated region
      $region41: #{mini_unet_forward.1} parent=11 // pred_check
        %p273 = pneg %p211
      $region42: #{mini_unet_forward.1} parent=11 // pred_check_branch
        %275 = sbr.rel (%p273) target = $region44
      $region43: #{mini_unet_forward.1} parent=11 // pred_region
        _
      $region44: #{mini_unet_forward.1} parent=11 // pred_fallthru
        _
    $region12: #{mini_unet_forward.1} parent=5 // pred_fallthru
      _
    %p276 = scmp.lt.s32.totalorder %s17, 2
    // Predicated region
    $region45: #{mini_unet_forward.1} parent=5 // pred_check
      %p277 = pneg %p276
    $region46: #{mini_unet_forward.1} parent=5 // pred_check_branch
      %279 = sbr.rel (%p277) target = $region48
    $region47: #{mini_unet_forward.1} parent=5 // pred_region
      // Predicated region
      $region49: #{mini_unet_forward.1} parent=47 // pred_check
        %p280 = pneg %p37
      $region50: #{mini_unet_forward.1} parent=47 // pred_check_branch
        %282 = sbr.rel (%p280) target = $region52
      $region51: #{mini_unet_forward.1} parent=47 // pred_region
        %p283 = scmp.lt.s32.totalorder %s17, 1
        %s284 = scalar_select %p283, %s17, 1
        %s285 = smul.addr %s284, 54
        %s286 = smul.addr %s285, 8
        %s287 = scalar_lea.vmem %s0, %s286
      $region52: #{mini_unet_forward.1} parent=47 // pred_fallthru
        _
    $region48: #{mini_unet_forward.1} parent=5 // pred_fallthru
      _
    %p288 = scmp.le.s32.totalorder 1, %s17
    %p289 = scmp.lt.s32.totalorder %s17, 3
    %p290 = pnand %p288, %p289
    %p291 = pneg %p290
    // Predicated region
    $region53: #{mini_unet_forward.1} parent=5 // pred_check
      _
    $region54: #{mini_unet_forward.1} parent=5 // pred_check_branch
      %293 = sbr.rel (%p290) target = $region56
    $region55: #{mini_unet_forward.1} parent=5 // pred_region
      %s294 = ssub.s32 %s17, 1
      %p295 = scmp.lt.s32.totalorder %s22, 1
      %s296 = scalar_select %p295, %s22, 1
      %s297 = smul.addr %s296, 54
      %s298 = smul.addr %s297, 8
      %s299 = scalar_lea.vmem %s0, %s298
      %p300 = pneg %p43
      %p301 = pneg %p40
      %p302 = pneg %p64
      %p303 = pneg %p61
      %p304 = pneg %p85
      %p305 = pneg %p82
      %p306 = pneg %p106
      %p307 = pneg %p103
      %p308 = pneg %p127
      %p309 = pneg %p124
      %p310 = pneg %p148
      %p311 = pneg %p145
      %p312 = pneg %p169
      %p313 = pneg %p166
      %p314 = pneg %p190
      %p315 = pneg %p187
      %p316 = pneg %p211
      %p317 = pneg %p208
      %p318 = pneg %p237
      %p319 = pneg %p234
      %p320 = scmp.lt.s32.totalorder %s22, 1
      %s321 = scalar_select %p320, %s22, 1
      %s322 = smul.addr %s321, 2
      %s323 = scalar_lea.vmem %s9, %s322
      %p324 = scmp.lt.s32.totalorder %s22, 1
      %s325 = scalar_select %p324, %s22, 1
      %s326 = smul.addr %s325, 54
      %s327 = smul.addr %s326, 8
      %s328 = scalar_lea.vmem %s0, %s327
      %p329 = scmp.lt.s32.totalorder %s22, 1
      %s330 = scalar_select %p329, %s22, 1
      %s331 = smul.addr %s330, 2
      %s332 = scalar_lea.vmem %s9, %s331
      %vm334 = vcmask 261120
      %335 = vst.msk [vmem:[#allocation2] sm:$0xff] %vm334, 0.0
      %336 = vst.msk [vmem:[#allocation2 + $0x8] sm:$0xff] %vm334, 0.0
      %vm337 = vcmask 254976
      %338 = vst.msk [vmem:[#allocation2 + $0x10] sm:$0x3] %vm337, 0.0
      %339 = vst.msk [vmem:[#allocation2 + $0x18] sm:$0xff] %vm334, 0.0
      %340 = vst.msk [vmem:[#allocation2 + $0x20] sm:$0xff] %vm334, 0.0
      %341 = vst.msk [vmem:[#allocation2 + $0x28] sm:$0x3] %vm337, 0.0
      %342 = vst.msk [vmem:[#allocation2 + $0x30] sm:$0xff] %vm334, 0.0
      %343 = vst.msk [vmem:[#allocation2 + $0x38] sm:$0xff] %vm334, 0.0
      %344 = vst.msk [vmem:[#allocation2 + $0x40] sm:$0x3] %vm337, 0.0
      %345 = vst.msk [vmem:[#allocation2 + $0x48] sm:$0xff] %vm334, 0.0
      %346 = vst.msk [vmem:[#allocation2 + $0x50] sm:$0xff] %vm334, 0.0
      %347 = vst.msk [vmem:[#allocation2 + $0x58] sm:$0x3] %vm337, 0.0
      %348 = vst.msk [vmem:[#allocation2 + $0x60] sm:$0xff] %vm334, 0.0
      %349 = vst.msk [vmem:[#allocation2 + $0x68] sm:$0xff] %vm334, 0.0
      %350 = vst.msk [vmem:[#allocation2 + $0x70] sm:$0x3] %vm337, 0.0
      %351 = vst.msk [vmem:[#allocation2 + $0x78] sm:$0xff] %vm334, 0.0
      %352 = vst.msk [vmem:[#allocation2 + $0x80] sm:$0xff] %vm334, 0.0
      %353 = vst.msk [vmem:[#allocation2 + $0x88] sm:$0x3] %vm337, 0.0
      %354 = vst.msk [vmem:[#allocation2 + $0x90] sm:$0xff] %vm334, 0.0
      %355 = vst.msk [vmem:[#allocation2 + $0x98] sm:$0xff] %vm334, 0.0
      %356 = vst.msk [vmem:[#allocation2 + $0xa0] sm:$0x3] %vm337, 0.0
      %357 = vst.msk [vmem:[#allocation2 + $0xa8] sm:$0xff] %vm334, 0.0
      %358 = vst.msk [vmem:[#allocation2 + $0xb0] sm:$0xff] %vm334, 0.0
      %359 = vst.msk [vmem:[#allocation2 + $0xb8] sm:$0x3] %vm337, 0.0
      %360 = vst.msk [vmem:[#allocation2 + $0xc0] sm:$0xff] %vm334, 0.0
      %361 = vst.msk [vmem:[#allocation2 + $0xc8] sm:$0xff] %vm334, 0.0
      %362 = vst.msk [vmem:[#allocation2 + $0xd0] sm:$0x3] %vm337, 0.0
      %363 = vst.msk [vmem:[#allocation2 + $0xd8] sm:$0xff] %vm334, 0.0
      %364 = vst.msk [vmem:[#allocation2 + $0xe0] sm:$0xff] %vm334, 0.0
      %365 = vst.msk [vmem:[#allocation2 + $0xe8] sm:$0x3] %vm337, 0.0
      %366 = vst.msk [vmem:[#allocation2 + $0xf0] sm:$0xff] %vm334, 0.0
      %367 = vst.msk [vmem:[#allocation2 + $0xf8] sm:$0xff] %vm334, 0.0
      %368 = vst.msk [vmem:[#allocation2 + $0x100] sm:$0x3] %vm337, 0.0
      %369 = vst.msk [vmem:[#allocation2 + $0x108] sm:$0xff] %vm334, 0.0
      %370 = vst.msk [vmem:[#allocation2 + $0x110] sm:$0xff] %vm334, 0.0
      %371 = vst.msk [vmem:[#allocation2 + $0x118] sm:$0x3] %vm337, 0.0
      %372 = vst.msk [vmem:[#allocation2 + $0x120] sm:$0xff] %vm334, 0.0
      %373 = vst.msk [vmem:[#allocation2 + $0x128] sm:$0xff] %vm334, 0.0
      %374 = vst.msk [vmem:[#allocation2 + $0x130] sm:$0x3] %vm337, 0.0
      %375 = vst.msk [vmem:[#allocation2 + $0x138] sm:$0xff] %vm334, 0.0
      %376 = vst.msk [vmem:[#allocation2 + $0x140] sm:$0xff] %vm334, 0.0
      %377 = vst.msk [vmem:[#allocation2 + $0x148] sm:$0x3] %vm337, 0.0
      %378 = vst.msk [vmem:[#allocation2 + $0x150] sm:$0xff] %vm334, 0.0
      %379 = vst.msk [vmem:[#allocation2 + $0x158] sm:$0xff] %vm334, 0.0
      %380 = vst.msk [vmem:[#allocation2 + $0x160] sm:$0x3] %vm337, 0.0
      %381 = vst.msk [vmem:[#allocation2 + $0x168] sm:$0xff] %vm334, 0.0
      %382 = vst.msk [vmem:[#allocation2 + $0x170] sm:$0xff] %vm334, 0.0
      %383 = vst.msk [vmem:[#allocation2 + $0x178] sm:$0x3] %vm337, 0.0
      %384 = vst.msk [vmem:[#allocation2 + $0x180] sm:$0xff] %vm334, 0.0
      %385 = vst.msk [vmem:[#allocation2 + $0x188] sm:$0xff] %vm334, 0.0
      %386 = vst.msk [vmem:[#allocation2 + $0x190] sm:$0x3] %vm337, 0.0
      %387 = vst.msk [vmem:[#allocation2 + $0x198] sm:$0xff] %vm334, 0.0
      %388 = vst.msk [vmem:[#allocation2 + $0x1a0] sm:$0xff] %vm334, 0.0
      %389 = vst.msk [vmem:[#allocation2 + $0x1a8] sm:$0x3] %vm337, 0.0
      %vm390 = vcmask 523264
      %391 = vst.msk [vmem:[#allocation3] sm:$0xff] %vm390, 0.0
      %392 = vst.msk [vmem:[#allocation3 + $0x8] sm:$0xff] %vm390, 0.0
      %vm393 = vcmask 517120
      %394 = vst.msk [vmem:[#allocation3 + $0x10] sm:$0x3] %vm393, 0.0
      %395 = vst.msk [vmem:[#allocation3 + $0x18] sm:$0xff] %vm390, 0.0
      %396 = vst.msk [vmem:[#allocation3 + $0x20] sm:$0xff] %vm390, 0.0
      %397 = vst.msk [vmem:[#allocation3 + $0x28] sm:$0x3] %vm393, 0.0
      %398 = vst.msk [vmem:[#allocation3 + $0x30] sm:$0xff] %vm390, 0.0
      %399 = vst.msk [vmem:[#allocation3 + $0x38] sm:$0xff] %vm390, 0.0
      %400 = vst.msk [vmem:[#allocation3 + $0x40] sm:$0x3] %vm393, 0.0
      %401 = vst.msk [vmem:[#allocation3 + $0x48] sm:$0xff] %vm390, 0.0
      %402 = vst.msk [vmem:[#allocation3 + $0x50] sm:$0xff] %vm390, 0.0
      %403 = vst.msk [vmem:[#allocation3 + $0x58] sm:$0x3] %vm393, 0.0
      %404 = vst.msk [vmem:[#allocation3 + $0x60] sm:$0xff] %vm390, 0.0
      %405 = vst.msk [vmem:[#allocation3 + $0x68] sm:$0xff] %vm390, 0.0
      %406 = vst.msk [vmem:[#allocation3 + $0x70] sm:$0x3] %vm393, 0.0
      %407 = vst.msk [vmem:[#allocation3 + $0x78] sm:$0xff] %vm390, 0.0
      %408 = vst.msk [vmem:[#allocation3 + $0x80] sm:$0xff] %vm390, 0.0
      %409 = vst.msk [vmem:[#allocation3 + $0x88] sm:$0x3] %vm393, 0.0
      %410 = vst.msk [vmem:[#allocation3 + $0x90] sm:$0xff] %vm390, 0.0
      %411 = vst.msk [vmem:[#allocation3 + $0x98] sm:$0xff] %vm390, 0.0
      %412 = vst.msk [vmem:[#allocation3 + $0xa0] sm:$0x3] %vm393, 0.0
      %413 = vst.msk [vmem:[#allocation3 + $0xa8] sm:$0xff] %vm390, 0.0
      %414 = vst.msk [vmem:[#allocation3 + $0xb0] sm:$0xff] %vm390, 0.0
      %415 = vst.msk [vmem:[#allocation3 + $0xb8] sm:$0x3] %vm393, 0.0
      %416 = vst.msk [vmem:[#allocation3 + $0xc0] sm:$0xff] %vm390, 0.0
      %417 = vst.msk [vmem:[#allocation3 + $0xc8] sm:$0xff] %vm390, 0.0
      %418 = vst.msk [vmem:[#allocation3 + $0xd0] sm:$0x3] %vm393, 0.0
      %419 = vst.msk [vmem:[#allocation3 + $0xd8] sm:$0xff] %vm390, 0.0
      %420 = vst.msk [vmem:[#allocation3 + $0xe0] sm:$0xff] %vm390, 0.0
      %421 = vst.msk [vmem:[#allocation3 + $0xe8] sm:$0x3] %vm393, 0.0
      %422 = vst.msk [vmem:[#allocation3 + $0xf0] sm:$0xff] %vm390, 0.0
      %423 = vst.msk [vmem:[#allocation3 + $0xf8] sm:$0xff] %vm390, 0.0
      %424 = vst.msk [vmem:[#allocation3 + $0x100] sm:$0x3] %vm393, 0.0
      %425 = vst.msk [vmem:[#allocation3 + $0x108] sm:$0xff] %vm390, 0.0
      %426 = vst.msk [vmem:[#allocation3 + $0x110] sm:$0xff] %vm390, 0.0
      %427 = vst.msk [vmem:[#allocation3 + $0x118] sm:$0x3] %vm393, 0.0
      %428 = vst.msk [vmem:[#allocation3 + $0x120] sm:$0xff] %vm390, 0.0
      %429 = vst.msk [vmem:[#allocation3 + $0x128] sm:$0xff] %vm390, 0.0
      %430 = vst.msk [vmem:[#allocation3 + $0x130] sm:$0x3] %vm393, 0.0
      %431 = vst.msk [vmem:[#allocation3 + $0x138] sm:$0xff] %vm390, 0.0
      %432 = vst.msk [vmem:[#allocation3 + $0x140] sm:$0xff] %vm390, 0.0
      %433 = vst.msk [vmem:[#allocation3 + $0x148] sm:$0x3] %vm393, 0.0
      %434 = vst.msk [vmem:[#allocation3 + $0x150] sm:$0xff] %vm390, 0.0
      %435 = vst.msk [vmem:[#allocation3 + $0x158] sm:$0xff] %vm390, 0.0
      %436 = vst.msk [vmem:[#allocation3 + $0x160] sm:$0x3] %vm393, 0.0
      %437 = vst.msk [vmem:[#allocation3 + $0x168] sm:$0xff] %vm390, 0.0
      %438 = vst.msk [vmem:[#allocation3 + $0x170] sm:$0xff] %vm390, 0.0
      %439 = vst.msk [vmem:[#allocation3 + $0x178] sm:$0x3] %vm393, 0.0
      %440 = vst.msk [vmem:[#allocation3 + $0x180] sm:$0xff] %vm390, 0.0
      %441 = vst.msk [vmem:[#allocation3 + $0x188] sm:$0xff] %vm390, 0.0
      %442 = vst.msk [vmem:[#allocation3 + $0x190] sm:$0x3] %vm393, 0.0
      %443 = vst.msk [vmem:[#allocation3 + $0x198] sm:$0xff] %vm390, 0.0
      %444 = vst.msk [vmem:[#allocation3 + $0x1a0] sm:$0xff] %vm390, 0.0
      %445 = vst.msk [vmem:[#allocation3 + $0x1a8] sm:$0x3] %vm393, 0.0
      %v446 = vld [vmem:[%s328] sm:$0xff]
      %v447 = vld [vmem:[%s328 + $0x8] sm:$0xff]
      %v448 = vld [vmem:[%s328 + $0x18] sm:$0xff]
      %v449 = vld [vmem:[%s328 + $0x20] sm:$0xff]
      %v450 = vld [vmem:[%s328 + $0x30] sm:$0xff]
      %v451 = vld [vmem:[%s328 + $0x38] sm:$0xff]
      %v452 = vld [vmem:[%s328 + $0x48] sm:$0xff]
      %v453 = vld [vmem:[%s328 + $0x50] sm:$0xff]
      %v454 = vld [vmem:[%s328 + $0x60] sm:$0xff]
      %v455 = vld [vmem:[%s328 + $0x68] sm:$0xff]
      %v456 = vld [vmem:[%s328 + $0x78] sm:$0xff]
      %v457 = vld [vmem:[%s328 + $0x80] sm:$0xff]
      %v458 = vld [vmem:[%s328 + $0x90] sm:$0xff]
      %v459 = vld [vmem:[%s328 + $0x98] sm:$0xff]
      %v460 = vld [vmem:[%s328 + $0xa8] sm:$0xff]
      %v461 = vld [vmem:[%s328 + $0xb0] sm:$0xff]
      %v462 = vld [vmem:[%s328 + $0xc0] sm:$0xff]
      %v463 = vld [vmem:[%s328 + $0xc8] sm:$0xff]
      %v464 = vld [vmem:[%s328 + $0xd8] sm:$0xff]
      %v465 = vld [vmem:[%s328 + $0xe0] sm:$0xff]
      %v466 = vld [vmem:[%s328 + $0xf0] sm:$0xff]
      %v467 = vld [vmem:[%s328 + $0xf8] sm:$0xff]
      %v468 = vld [vmem:[%s328 + $0x108] sm:$0xff]
      %v469 = vld [vmem:[%s328 + $0x110] sm:$0xff]
      %v470 = vld [vmem:[%s328 + $0x120] sm:$0xff]
      %v471 = vld [vmem:[%s328 + $0x128] sm:$0xff]
      %v472 = vld [vmem:[%s328 + $0x138] sm:$0xff]
      %v473 = vld [vmem:[%s328 + $0x140] sm:$0xff]
      %v474 = vld [vmem:[%s328 + $0x150] sm:$0xff]
      %v475 = vld [vmem:[%s328 + $0x158] sm:$0xff]
      %v476 = vld [vmem:[%s328 + $0x168] sm:$0xff]
      %v477 = vld [vmem:[%s328 + $0x170] sm:$0xff]
      %v478 = vld [vmem:[%s328 + $0x1] sm:$0xff]
      %v479 = vld [vmem:[%s328 + $0x9] sm:$0xff]
      %v480 = vld [vmem:[%s328 + $0x19] sm:$0xff]
      %v481 = vld [vmem:[%s328 + $0x21] sm:$0xff]
      %v482 = vld [vmem:[%s328 + $0x31] sm:$0xff]
      %v483 = vld [vmem:[%s328 + $0x39] sm:$0xff]
      %v484 = vld [vmem:[%s328 + $0x49] sm:$0xff]
      %v485 = vld [vmem:[%s328 + $0x51] sm:$0xff]
      %v486 = vld [vmem:[%s328 + $0x61] sm:$0xff]
      %v487 = vld [vmem:[%s328 + $0x69] sm:$0xff]
      %v488 = vld [vmem:[%s328 + $0x79] sm:$0xff]
      %v489 = vld [vmem:[%s328 + $0x81] sm:$0xff]
      %v490 = vld [vmem:[%s328 + $0x91] sm:$0xff]
      %v491 = vld [vmem:[%s328 + $0x99] sm:$0xff]
      %v492 = vld [vmem:[%s328 + $0xa9] sm:$0xff]
      %v493 = vld [vmem:[%s328 + $0xb1] sm:$0xff]
      %v494 = vld [vmem:[%s328 + $0xc1] sm:$0xff]
      %v495 = vld [vmem:[%s328 + $0xc9] sm:$0xff]
      %v496 = vld [vmem:[%s328 + $0xd9] sm:$0xff]
      %v497 = vld [vmem:[%s328 + $0xe1] sm:$0xff]
      %v498 = vld [vmem:[%s328 + $0xf1] sm:$0xff]
      %v499 = vld [vmem:[%s328 + $0xf9] sm:$0xff]
      %v500 = vld [vmem:[%s328 + $0x109] sm:$0xff]
      %v501 = vld [vmem:[%s328 + $0x111] sm:$0xff]
      %v502 = vld [vmem:[%s328 + $0x121] sm:$0xff]
      %v503 = vld [vmem:[%s328 + $0x129] sm:$0xff]
      %v504 = vld [vmem:[%s328 + $0x139] sm:$0xff]
      %v505 = vld [vmem:[%s328 + $0x141] sm:$0xff]
      %v506 = vld [vmem:[%s328 + $0x151] sm:$0xff]
      %v507 = vld [vmem:[%s328 + $0x159] sm:$0xff]
      %v508 = vld [vmem:[%s328 + $0x169] sm:$0xff]
      %v509 = vld [vmem:[%s328 + $0x171] sm:$0xff]
      %v510 = vld [vmem:[%s328 + $0x2] sm:$0xff]
      %v511 = vld [vmem:[%s328 + $0xa] sm:$0xff]
      %v512 = vld [vmem:[%s328 + $0x1a] sm:$0xff]
      %v513 = vld [vmem:[%s328 + $0x22] sm:$0xff]
      %v514 = vld [vmem:[%s328 + $0x32] sm:$0xff]
      %v515 = vld [vmem:[%s328 + $0x3a] sm:$0xff]
      %v516 = vld [vmem:[%s328 + $0x4a] sm:$0xff]
      %v517 = vld [vmem:[%s328 + $0x52] sm:$0xff]
      %v518 = vld [vmem:[%s328 + $0x62] sm:$0xff]
      %v519 = vld [vmem:[%s328 + $0x6a] sm:$0xff]
      %v520 = vld [vmem:[%s328 + $0x7a] sm:$0xff]
      %v521 = vld [vmem:[%s328 + $0x82] sm:$0xff]
      %v522 = vld [vmem:[%s328 + $0x92] sm:$0xff]
      %v523 = vld [vmem:[%s328 + $0x9a] sm:$0xff]
      %v524 = vld [vmem:[%s328 + $0xaa] sm:$0xff]
      %v525 = vld [vmem:[%s328 + $0xb2] sm:$0xff]
      %v526 = vld [vmem:[%s328 + $0xc2] sm:$0xff]
      %v527 = vld [vmem:[%s328 + $0xca] sm:$0xff]
      %v528 = vld [vmem:[%s328 + $0xda] sm:$0xff]
      %v529 = vld [vmem:[%s328 + $0xe2] sm:$0xff]
      %v530 = vld [vmem:[%s328 + $0xf2] sm:$0xff]
      %v531 = vld [vmem:[%s328 + $0xfa] sm:$0xff]
      %v532 = vld [vmem:[%s328 + $0x10a] sm:$0xff]
      %v533 = vld [vmem:[%s328 + $0x112] sm:$0xff]
      %v534 = vld [vmem:[%s328 + $0x122] sm:$0xff]
      %v535 = vld [vmem:[%s328 + $0x12a] sm:$0xff]
      %v536 = vld [vmem:[%s328 + $0x13a] sm:$0xff]
      %v537 = vld [vmem:[%s328 + $0x142] sm:$0xff]
      %v538 = vld [vmem:[%s328 + $0x152] sm:$0xff]
      %v539 = vld [vmem:[%s328 + $0x15a] sm:$0xff]
      %v540 = vld [vmem:[%s328 + $0x16a] sm:$0xff]
      %v541 = vld [vmem:[%s328 + $0x172] sm:$0xff]
      %s542 = scalar_lea.vmem %s328, 24
      %v543 = vld [vmem:[%s542] sm:$0xff]
      %v544 = vld [vmem:[%s542 + $0x8] sm:$0xff]
      %v545 = vld [vmem:[%s542 + $0x18] sm:$0xff]
      %v546 = vld [vmem:[%s542 + $0x20] sm:$0xff]
      %v547 = vld [vmem:[%s542 + $0x30] sm:$0xff]
      %v548 = vld [vmem:[%s542 + $0x38] sm:$0xff]
      %v549 = vld [vmem:[%s542 + $0x48] sm:$0xff]
      %v550 = vld [vmem:[%s542 + $0x50] sm:$0xff]
      %v551 = vld [vmem:[%s542 + $0x60] sm:$0xff]
      %v552 = vld [vmem:[%s542 + $0x68] sm:$0xff]
      %v553 = vld [vmem:[%s542 + $0x78] sm:$0xff]
      %v554 = vld [vmem:[%s542 + $0x80] sm:$0xff]
      %v555 = vld [vmem:[%s542 + $0x90] sm:$0xff]
      %v556 = vld [vmem:[%s542 + $0x98] sm:$0xff]
      %v557 = vld [vmem:[%s542 + $0xa8] sm:$0xff]
      %v558 = vld [vmem:[%s542 + $0xb0] sm:$0xff]
      %v559 = vld [vmem:[%s542 + $0xc0] sm:$0xff]
      %v560 = vld [vmem:[%s542 + $0xc8] sm:$0xff]
      %v561 = vld [vmem:[%s542 + $0xd8] sm:$0xff]
      %v562 = vld [vmem:[%s542 + $0xe0] sm:$0xff]
      %v563 = vld [vmem:[%s542 + $0xf0] sm:$0xff]
      %v564 = vld [vmem:[%s542 + $0xf8] sm:$0xff]
      %v565 = vld [vmem:[%s542 + $0x108] sm:$0xff]
      %v566 = vld [vmem:[%s542 + $0x110] sm:$0xff]
      %v567 = vld [vmem:[%s542 + $0x120] sm:$0xff]
      %v568 = vld [vmem:[%s542 + $0x128] sm:$0xff]
      %v569 = vld [vmem:[%s542 + $0x138] sm:$0xff]
      %v570 = vld [vmem:[%s542 + $0x140] sm:$0xff]
      %v571 = vld [vmem:[%s542 + $0x150] sm:$0xff]
      %v572 = vld [vmem:[%s542 + $0x158] sm:$0xff]
      %v573 = vld [vmem:[%s542 + $0x168] sm:$0xff]
      %v574 = vld [vmem:[%s542 + $0x170] sm:$0xff]
      %v575 = vld [vmem:[%s542 + $0x1] sm:$0xff]
      %v576 = vld [vmem:[%s542 + $0x9] sm:$0xff]
      %v577 = vld [vmem:[%s542 + $0x19] sm:$0xff]
      %v578 = vld [vmem:[%s542 + $0x21] sm:$0xff]
      %v579 = vld [vmem:[%s542 + $0x31] sm:$0xff]
      %v580 = vld [vmem:[%s542 + $0x39] sm:$0xff]
      %v581 = vld [vmem:[%s542 + $0x49] sm:$0xff]
      %v582 = vld [vmem:[%s542 + $0x51] sm:$0xff]
      %v583 = vld [vmem:[%s542 + $0x61] sm:$0xff]
      %v584 = vld [vmem:[%s542 + $0x69] sm:$0xff]
      %v585 = vld [vmem:[%s542 + $0x79] sm:$0xff]
      %v586 = vld [vmem:[%s542 + $0x81] sm:$0xff]
      %v587 = vld [vmem:[%s542 + $0x91] sm:$0xff]
      %v588 = vld [vmem:[%s542 + $0x99] sm:$0xff]
      %v589 = vld [vmem:[%s542 + $0xa9] sm:$0xff]
      %v590 = vld [vmem:[%s542 + $0xb1] sm:$0xff]
      %v591 = vld [vmem:[%s542 + $0xc1] sm:$0xff]
      %v592 = vld [vmem:[%s542 + $0xc9] sm:$0xff]
      %v593 = vld [vmem:[%s542 + $0xd9] sm:$0xff]
      %v594 = vld [vmem:[%s542 + $0xe1] sm:$0xff]
      %v595 = vld [vmem:[%s542 + $0xf1] sm:$0xff]
      %v596 = vld [vmem:[%s542 + $0xf9] sm:$0xff]
      %v597 = vld [vmem:[%s542 + $0x109] sm:$0xff]
      %v598 = vld [vmem:[%s542 + $0x111] sm:$0xff]
      %v599 = vld [vmem:[%s542 + $0x121] sm:$0xff]
      %v600 = vld [vmem:[%s542 + $0x129] sm:$0xff]
      %v601 = vld [vmem:[%s542 + $0x139] sm:$0xff]
      %v602 = vld [vmem:[%s542 + $0x141] sm:$0xff]
      %v603 = vld [vmem:[%s542 + $0x151] sm:$0xff]
      %v604 = vld [vmem:[%s542 + $0x159] sm:$0xff]
      %v605 = vld [vmem:[%s542 + $0x169] sm:$0xff]
      %v606 = vld [vmem:[%s542 + $0x171] sm:$0xff]
      %v607 = vld [vmem:[%s542 + $0x2] sm:$0xff]
      %v608 = vld [vmem:[%s542 + $0xa] sm:$0xff]
      %v609 = vld [vmem:[%s542 + $0x1a] sm:$0xff]
      %v610 = vld [vmem:[%s542 + $0x22] sm:$0xff]
      %v611 = vld [vmem:[%s542 + $0x32] sm:$0xff]
      %v612 = vld [vmem:[%s542 + $0x3a] sm:$0xff]
      %v613 = vld [vmem:[%s542 + $0x4a] sm:$0xff]
      %v614 = vld [vmem:[%s542 + $0x52] sm:$0xff]
      %v615 = vld [vmem:[%s542 + $0x62] sm:$0xff]
      %v616 = vld [vmem:[%s542 + $0x6a] sm:$0xff]
      %v617 = vld [vmem:[%s542 + $0x7a] sm:$0xff]
      %v618 = vld [vmem:[%s542 + $0x82] sm:$0xff]
      %v619 = vld [vmem:[%s542 + $0x92] sm:$0xff]
      %v620 = vld [vmem:[%s542 + $0x9a] sm:$0xff]
      %v621 = vld [vmem:[%s542 + $0xaa] sm:$0xff]
      %v622 = vld [vmem:[%s542 + $0xb2] sm:$0xff]
      %v623 = vld [vmem:[%s542 + $0xc2] sm:$0xff]
      %v624 = vld [vmem:[%s542 + $0xca] sm:$0xff]
      %v625 = vld [vmem:[%s542 + $0xda] sm:$0xff]
      %v626 = vld [vmem:[%s542 + $0xe2] sm:$0xff]
      %v627 = vld [vmem:[%s542 + $0xf2] sm:$0xff]
      %v628 = vld [vmem:[%s542 + $0xfa] sm:$0xff]
      %v629 = vld [vmem:[%s542 + $0x10a] sm:$0xff]
      %v630 = vld [vmem:[%s542 + $0x112] sm:$0xff]
      %v631 = vld [vmem:[%s542 + $0x122] sm:$0xff]
      %v632 = vld [vmem:[%s542 + $0x12a] sm:$0xff]
      %v633 = vld [vmem:[%s542 + $0x13a] sm:$0xff]
      %v634 = vld [vmem:[%s542 + $0x142] sm:$0xff]
      %v635 = vld [vmem:[%s542 + $0x152] sm:$0xff]
      %v636 = vld [vmem:[%s542 + $0x15a] sm:$0xff]
      %v637 = vld [vmem:[%s542 + $0x16a] sm:$0xff]
      %v638 = vld [vmem:[%s542 + $0x172] sm:$0xff]
      %s639 = scalar_lea.vmem %s328, 48
      %v640 = vld [vmem:[%s639] sm:$0xff]
      %v641 = vld [vmem:[%s639 + $0x8] sm:$0xff]
      %v642 = vld [vmem:[%s639 + $0x18] sm:$0xff]
      %v643 = vld [vmem:[%s639 + $0x20] sm:$0xff]
      %v644 = vld [vmem:[%s639 + $0x30] sm:$0xff]
      %v645 = vld [vmem:[%s639 + $0x38] sm:$0xff]
      %v646 = vld [vmem:[%s639 + $0x48] sm:$0xff]
      %v647 = vld [vmem:[%s639 + $0x50] sm:$0xff]
      %v648 = vld [vmem:[%s639 + $0x60] sm:$0xff]
      %v649 = vld [vmem:[%s639 + $0x68] sm:$0xff]
      %v650 = vld [vmem:[%s639 + $0x78] sm:$0xff]
      %v651 = vld [vmem:[%s639 + $0x80] sm:$0xff]
      %v652 = vld [vmem:[%s639 + $0x90] sm:$0xff]
      %v653 = vld [vmem:[%s639 + $0x98] sm:$0xff]
      %v654 = vld [vmem:[%s639 + $0xa8] sm:$0xff]
      %v655 = vld [vmem:[%s639 + $0xb0] sm:$0xff]
      %v656 = vld [vmem:[%s639 + $0xc0] sm:$0xff]
      %v657 = vld [vmem:[%s639 + $0xc8] sm:$0xff]
      %v658 = vld [vmem:[%s639 + $0xd8] sm:$0xff]
      %v659 = vld [vmem:[%s639 + $0xe0] sm:$0xff]
      %v660 = vld [vmem:[%s639 + $0xf0] sm:$0xff]
      %v661 = vld [vmem:[%s639 + $0xf8] sm:$0xff]
      %v662 = vld [vmem:[%s639 + $0x108] sm:$0xff]
      %v663 = vld [vmem:[%s639 + $0x110] sm:$0xff]
      %v664 = vld [vmem:[%s639 + $0x120] sm:$0xff]
      %v665 = vld [vmem:[%s639 + $0x128] sm:$0xff]
      %v666 = vld [vmem:[%s639 + $0x138] sm:$0xff]
      %v667 = vld [vmem:[%s639 + $0x140] sm:$0xff]
      %v668 = vld [vmem:[%s639 + $0x150] sm:$0xff]
      %v669 = vld [vmem:[%s639 + $0x158] sm:$0xff]
      %v670 = vld [vmem:[%s639 + $0x168] sm:$0xff]
      %v671 = vld [vmem:[%s639 + $0x170] sm:$0xff]
      %v672 = vld [vmem:[%s639 + $0x1] sm:$0xff]
      %v673 = vld [vmem:[%s639 + $0x9] sm:$0xff]
      %v674 = vld [vmem:[%s639 + $0x19] sm:$0xff]
      %v675 = vld [vmem:[%s639 + $0x21] sm:$0xff]
      %v676 = vld [vmem:[%s639 + $0x31] sm:$0xff]
      %v677 = vld [vmem:[%s639 + $0x39] sm:$0xff]
      %v678 = vld [vmem:[%s639 + $0x49] sm:$0xff]
      %v679 = vld [vmem:[%s639 + $0x51] sm:$0xff]
      %v680 = vld [vmem:[%s639 + $0x61] sm:$0xff]
      %v681 = vld [vmem:[%s639 + $0x69] sm:$0xff]
      %v682 = vld [vmem:[%s639 + $0x79] sm:$0xff]
      %v683 = vld [vmem:[%s639 + $0x81] sm:$0xff]
      %v684 = vld [vmem:[%s639 + $0x91] sm:$0xff]
      %v685 = vld [vmem:[%s639 + $0x99] sm:$0xff]
      %v686 = vld [vmem:[%s639 + $0xa9] sm:$0xff]
      %v687 = vld [vmem:[%s639 + $0xb1] sm:$0xff]
      %v688 = vld [vmem:[%s639 + $0xc1] sm:$0xff]
      %v689 = vld [vmem:[%s639 + $0xc9] sm:$0xff]
      %v690 = vld [vmem:[%s639 + $0xd9] sm:$0xff]
      %v691 = vld [vmem:[%s639 + $0xe1] sm:$0xff]
      %v692 = vld [vmem:[%s639 + $0xf1] sm:$0xff]
      %v693 = vld [vmem:[%s639 + $0xf9] sm:$0xff]
      %v694 = vld [vmem:[%s639 + $0x109] sm:$0xff]
      %v695 = vld [vmem:[%s639 + $0x111] sm:$0xff]
      %v696 = vld [vmem:[%s639 + $0x121] sm:$0xff]
      %v697 = vld [vmem:[%s639 + $0x129] sm:$0xff]
      %v698 = vld [vmem:[%s639 + $0x139] sm:$0xff]
      %v699 = vld [vmem:[%s639 + $0x141] sm:$0xff]
      %v700 = vld [vmem:[%s639 + $0x151] sm:$0xff]
      %v701 = vld [vmem:[%s639 + $0x159] sm:$0xff]
      %v702 = vld [vmem:[%s639 + $0x169] sm:$0xff]
      %v703 = vld [vmem:[%s639 + $0x171] sm:$0xff]
      %v704 = vld [vmem:[%s639 + $0x2] sm:$0xff]
      %v705 = vld [vmem:[%s639 + $0xa] sm:$0xff]
      %v706 = vld [vmem:[%s639 + $0x1a] sm:$0xff]
      %v707 = vld [vmem:[%s639 + $0x22] sm:$0xff]
      %v708 = vld [vmem:[%s639 + $0x32] sm:$0xff]
      %v709 = vld [vmem:[%s639 + $0x3a] sm:$0xff]
      %v710 = vld [vmem:[%s639 + $0x4a] sm:$0xff]
      %v711 = vld [vmem:[%s639 + $0x52] sm:$0xff]
      %v712 = vld [vmem:[%s639 + $0x62] sm:$0xff]
      %v713 = vld [vmem:[%s639 + $0x6a] sm:$0xff]
      %v714 = vld [vmem:[%s639 + $0x7a] sm:$0xff]
      %v715 = vld [vmem:[%s639 + $0x82] sm:$0xff]
      %v716 = vld [vmem:[%s639 + $0x92] sm:$0xff]
      %v717 = vld [vmem:[%s639 + $0x9a] sm:$0xff]
      %v718 = vld [vmem:[%s639 + $0xaa] sm:$0xff]
      %v719 = vld [vmem:[%s639 + $0xb2] sm:$0xff]
      %v720 = vld [vmem:[%s639 + $0xc2] sm:$0xff]
      %v721 = vld [vmem:[%s639 + $0xca] sm:$0xff]
      %v722 = vld [vmem:[%s639 + $0xda] sm:$0xff]
      %v723 = vld [vmem:[%s639 + $0xe2] sm:$0xff]
      %v724 = vld [vmem:[%s639 + $0xf2] sm:$0xff]
      %v725 = vld [vmem:[%s639 + $0xfa] sm:$0xff]
      %v726 = vld [vmem:[%s639 + $0x10a] sm:$0xff]
      %v727 = vld [vmem:[%s639 + $0x112] sm:$0xff]
      %v728 = vld [vmem:[%s639 + $0x122] sm:$0xff]
      %v729 = vld [vmem:[%s639 + $0x12a] sm:$0xff]
      %v730 = vld [vmem:[%s639 + $0x13a] sm:$0xff]
      %v731 = vld [vmem:[%s639 + $0x142] sm:$0xff]
      %v732 = vld [vmem:[%s639 + $0x152] sm:$0xff]
      %v733 = vld [vmem:[%s639 + $0x15a] sm:$0xff]
      %v734 = vld [vmem:[%s639 + $0x16a] sm:$0xff]
      %v735 = vld [vmem:[%s639 + $0x172] sm:$0xff]
      %768 = vrot.lane.b32.xlu0 %v478, 3
      %v769 = vpop.permute.xlu0 %768
      %770 = vrot.lane.b32.xlu0 %v479, 3
      %v771 = vpop.permute.xlu0 %770
      %772 = vrot.lane.b32.xlu0 %v480, 3
      %v773 = vpop.permute.xlu0 %772
      %774 = vrot.lane.b32.xlu0 %v481, 3
      %v775 = vpop.permute.xlu0 %774
      %776 = vrot.lane.b32.xlu0 %v482, 3
      %v777 = vpop.permute.xlu0 %776
      %778 = vrot.lane.b32.xlu0 %v483, 3
      %v779 = vpop.permute.xlu0 %778
      %780 = vrot.lane.b32.xlu0 %v484, 3
      %v781 = vpop.permute.xlu0 %780
      %782 = vrot.lane.b32.xlu0 %v485, 3
      %v783 = vpop.permute.xlu0 %782
      %784 = vrot.lane.b32.xlu0 %v486, 3
      %v785 = vpop.permute.xlu0 %784
      %786 = vrot.lane.b32.xlu0 %v487, 3
      %v787 = vpop.permute.xlu0 %786
      %788 = vrot.lane.b32.xlu0 %v488, 3
      %v789 = vpop.permute.xlu0 %788
      %790 = vrot.lane.b32.xlu0 %v489, 3
      %v791 = vpop.permute.xlu0 %790
      %792 = vrot.lane.b32.xlu0 %v490, 3
      %v793 = vpop.permute.xlu0 %792
      %794 = vrot.lane.b32.xlu0 %v491, 3
      %v795 = vpop.permute.xlu0 %794
      %796 = vrot.lane.b32.xlu0 %v492, 3
      %v797 = vpop.permute.xlu0 %796
      %798 = vrot.lane.b32.xlu0 %v493, 3
      %v799 = vpop.permute.xlu0 %798
      %800 = vrot.lane.b32.xlu0 %v494, 3
      %v801 = vpop.permute.xlu0 %800
      %802 = vrot.lane.b32.xlu0 %v495, 3
      %v803 = vpop.permute.xlu0 %802
      %804 = vrot.lane.b32.xlu0 %v496, 3
      %v805 = vpop.permute.xlu0 %804
      %806 = vrot.lane.b32.xlu0 %v497, 3
      %v807 = vpop.permute.xlu0 %806
      %808 = vrot.lane.b32.xlu0 %v498, 3
      %v809 = vpop.permute.xlu0 %808
      %810 = vrot.lane.b32.xlu0 %v499, 3
      %v811 = vpop.permute.xlu0 %810
      %812 = vrot.lane.b32.xlu0 %v500, 3
      %v813 = vpop.permute.xlu0 %812
      %814 = vrot.lane.b32.xlu0 %v501, 3
      %v815 = vpop.permute.xlu0 %814
      %816 = vrot.lane.b32.xlu0 %v502, 3
      %v817 = vpop.permute.xlu0 %816
      %818 = vrot.lane.b32.xlu0 %v503, 3
      %v819 = vpop.permute.xlu0 %818
      %820 = vrot.lane.b32.xlu0 %v504, 3
      %v821 = vpop.permute.xlu0 %820
      %822 = vrot.lane.b32.xlu0 %v505, 3
      %v823 = vpop.permute.xlu0 %822
      %824 = vrot.lane.b32.xlu0 %v506, 3
      %v825 = vpop.permute.xlu0 %824
      %826 = vrot.lane.b32.xlu0 %v507, 3
      %v827 = vpop.permute.xlu0 %826
      %828 = vrot.lane.b32.xlu0 %v508, 3
      %v829 = vpop.permute.xlu0 %828
      %830 = vrot.lane.b32.xlu0 %v509, 3
      %v831 = vpop.permute.xlu0 %830
      %896 = vrot.lane.b32.xlu0 %v510, 6
      %v897 = vpop.permute.xlu0 %896
      %898 = vrot.lane.b32.xlu0 %v511, 6
      %v899 = vpop.permute.xlu0 %898
      %900 = vrot.lane.b32.xlu0 %v512, 6
      %v901 = vpop.permute.xlu0 %900
      %902 = vrot.lane.b32.xlu0 %v513, 6
      %v903 = vpop.permute.xlu0 %902
      %904 = vrot.lane.b32.xlu0 %v514, 6
      %v905 = vpop.permute.xlu0 %904
      %906 = vrot.lane.b32.xlu0 %v515, 6
      %v907 = vpop.permute.xlu0 %906
      %908 = vrot.lane.b32.xlu0 %v516, 6
      %v909 = vpop.permute.xlu0 %908
      %910 = vrot.lane.b32.xlu0 %v517, 6
      %v911 = vpop.permute.xlu0 %910
      %912 = vrot.lane.b32.xlu0 %v518, 6
      %v913 = vpop.permute.xlu0 %912
      %914 = vrot.lane.b32.xlu0 %v519, 6
      %v915 = vpop.permute.xlu0 %914
      %916 = vrot.lane.b32.xlu0 %v520, 6
      %v917 = vpop.permute.xlu0 %916
      %918 = vrot.lane.b32.xlu0 %v521, 6
      %v919 = vpop.permute.xlu0 %918
      %920 = vrot.lane.b32.xlu0 %v522, 6
      %v921 = vpop.permute.xlu0 %920
      %922 = vrot.lane.b32.xlu0 %v523, 6
      %v923 = vpop.permute.xlu0 %922
      %924 = vrot.lane.b32.xlu0 %v524, 6
      %v925 = vpop.permute.xlu0 %924
      %926 = vrot.lane.b32.xlu0 %v525, 6
      %v927 = vpop.permute.xlu0 %926
      %928 = vrot.lane.b32.xlu0 %v526, 6
      %v929 = vpop.permute.xlu0 %928
      %930 = vrot.lane.b32.xlu0 %v527, 6
      %v931 = vpop.permute.xlu0 %930
      %932 = vrot.lane.b32.xlu0 %v528, 6
      %v933 = vpop.permute.xlu0 %932
      %934 = vrot.lane.b32.xlu0 %v529, 6
      %v935 = vpop.permute.xlu0 %934
      %936 = vrot.lane.b32.xlu0 %v530, 6
      %v937 = vpop.permute.xlu0 %936
      %938 = vrot.lane.b32.xlu0 %v531, 6
      %v939 = vpop.permute.xlu0 %938
      %940 = vrot.lane.b32.xlu0 %v532, 6
      %v941 = vpop.permute.xlu0 %940
      %942 = vrot.lane.b32.xlu0 %v533, 6
      %v943 = vpop.permute.xlu0 %942
      %944 = vrot.lane.b32.xlu0 %v534, 6
      %v945 = vpop.permute.xlu0 %944
      %946 = vrot.lane.b32.xlu0 %v535, 6
      %v947 = vpop.permute.xlu0 %946
      %948 = vrot.lane.b32.xlu0 %v536, 6
      %v949 = vpop.permute.xlu0 %948
      %950 = vrot.lane.b32.xlu0 %v537, 6
      %v951 = vpop.permute.xlu0 %950
      %952 = vrot.lane.b32.xlu0 %v538, 6
      %v953 = vpop.permute.xlu0 %952
      %954 = vrot.lane.b32.xlu0 %v539, 6
      %v955 = vpop.permute.xlu0 %954
      %956 = vrot.lane.b32.xlu0 %v540, 6
      %v957 = vpop.permute.xlu0 %956
      %958 = vrot.lane.b32.xlu0 %v541, 6
      %v959 = vpop.permute.xlu0 %958
      %1024 = vrot.lane.b32.xlu0 %v543, 9
      %v1025 = vpop.permute.xlu0 %1024
      %1026 = vrot.lane.b32.xlu0 %v544, 9
      %v1027 = vpop.permute.xlu0 %1026
      %1028 = vrot.lane.b32.xlu0 %v545, 9
      %v1029 = vpop.permute.xlu0 %1028
      %1030 = vrot.lane.b32.xlu0 %v546, 9
      %v1031 = vpop.permute.xlu0 %1030
      %1032 = vrot.lane.b32.xlu0 %v547, 9
      %v1033 = vpop.permute.xlu0 %1032
      %1034 = vrot.lane.b32.xlu0 %v548, 9
      %v1035 = vpop.permute.xlu0 %1034
      %1036 = vrot.lane.b32.xlu0 %v549, 9
      %v1037 = vpop.permute.xlu0 %1036
      %1038 = vrot.lane.b32.xlu0 %v550, 9
      %v1039 = vpop.permute.xlu0 %1038
      %1040 = vrot.lane.b32.xlu0 %v551, 9
      %v1041 = vpop.permute.xlu0 %1040
      %1042 = vrot.lane.b32.xlu0 %v552, 9
      %v1043 = vpop.permute.xlu0 %1042
      %1044 = vrot.lane.b32.xlu0 %v553, 9
      %v1045 = vpop.permute.xlu0 %1044
      %1046 = vrot.lane.b32.xlu0 %v554, 9
      %v1047 = vpop.permute.xlu0 %1046
      %1048 = vrot.lane.b32.xlu0 %v555, 9
      %v1049 = vpop.permute.xlu0 %1048
      %1050 = vrot.lane.b32.xlu0 %v556, 9
      %v1051 = vpop.permute.xlu0 %1050
      %1052 = vrot.lane.b32.xlu0 %v557, 9
      %v1053 = vpop.permute.xlu0 %1052
      %1054 = vrot.lane.b32.xlu0 %v558, 9
      %v1055 = vpop.permute.xlu0 %1054
      %1056 = vrot.lane.b32.xlu0 %v559, 9
      %v1057 = vpop.permute.xlu0 %1056
      %1058 = vrot.lane.b32.xlu0 %v560, 9
      %v1059 = vpop.permute.xlu0 %1058
      %1060 = vrot.lane.b32.xlu0 %v561, 9
      %v1061 = vpop.permute.xlu0 %1060
      %1062 = vrot.lane.b32.xlu0 %v562, 9
      %v1063 = vpop.permute.xlu0 %1062
      %1064 = vrot.lane.b32.xlu0 %v563, 9
      %v1065 = vpop.permute.xlu0 %1064
      %1066 = vrot.lane.b32.xlu0 %v564, 9
      %v1067 = vpop.permute.xlu0 %1066
      %1068 = vrot.lane.b32.xlu0 %v565, 9
      %v1069 = vpop.permute.xlu0 %1068
      %1070 = vrot.lane.b32.xlu0 %v566, 9
      %v1071 = vpop.permute.xlu0 %1070
      %1072 = vrot.lane.b32.xlu0 %v567, 9
      %v1073 = vpop.permute.xlu0 %1072
      %1074 = vrot.lane.b32.xlu0 %v568, 9
      %v1075 = vpop.permute.xlu0 %1074
      %1076 = vrot.lane.b32.xlu0 %v569, 9
      %v1077 = vpop.permute.xlu0 %1076
      %1078 = vrot.lane.b32.xlu0 %v570, 9
      %v1079 = vpop.permute.xlu0 %1078
      %1080 = vrot.lane.b32.xlu0 %v571, 9
      %v1081 = vpop.permute.xlu0 %1080
      %1082 = vrot.lane.b32.xlu0 %v572, 9
      %v1083 = vpop.permute.xlu0 %1082
      %1084 = vrot.lane.b32.xlu0 %v573, 9
      %v1085 = vpop.permute.xlu0 %1084
      %1086 = vrot.lane.b32.xlu0 %v574, 9
      %v1087 = vpop.permute.xlu0 %1086
      %1152 = vrot.lane.b32.xlu0 %v575, 12
      %v1153 = vpop.permute.xlu0 %1152
      %1154 = vrot.lane.b32.xlu0 %v576, 12
      %v1155 = vpop.permute.xlu0 %1154
      %1156 = vrot.lane.b32.xlu0 %v577, 12
      %v1157 = vpop.permute.xlu0 %1156
      %1158 = vrot.lane.b32.xlu0 %v578, 12
      %v1159 = vpop.permute.xlu0 %1158
      %1160 = vrot.lane.b32.xlu0 %v579, 12
      %v1161 = vpop.permute.xlu0 %1160
      %1162 = vrot.lane.b32.xlu0 %v580, 12
      %v1163 = vpop.permute.xlu0 %1162
      %1164 = vrot.lane.b32.xlu0 %v581, 12
      %v1165 = vpop.permute.xlu0 %1164
      %1166 = vrot.lane.b32.xlu0 %v582, 12
      %v1167 = vpop.permute.xlu0 %1166
      %1168 = vrot.lane.b32.xlu0 %v583, 12
      %v1169 = vpop.permute.xlu0 %1168
      %1170 = vrot.lane.b32.xlu0 %v584, 12
      %v1171 = vpop.permute.xlu0 %1170
      %1172 = vrot.lane.b32.xlu0 %v585, 12
      %v1173 = vpop.permute.xlu0 %1172
      %1174 = vrot.lane.b32.xlu0 %v586, 12
      %v1175 = vpop.permute.xlu0 %1174
      %1176 = vrot.lane.b32.xlu0 %v587, 12
      %v1177 = vpop.permute.xlu0 %1176
      %1178 = vrot.lane.b32.xlu0 %v588, 12
      %v1179 = vpop.permute.xlu0 %1178
      %1180 = vrot.lane.b32.xlu0 %v589, 12
      %v1181 = vpop.permute.xlu0 %1180
      %1182 = vrot.lane.b32.xlu0 %v590, 12
      %v1183 = vpop.permute.xlu0 %1182
      %1184 = vrot.lane.b32.xlu0 %v591, 12
      %v1185 = vpop.permute.xlu0 %1184
      %1186 = vrot.lane.b32.xlu0 %v592, 12
      %v1187 = vpop.permute.xlu0 %1186
      %1188 = vrot.lane.b32.xlu0 %v593, 12
      %v1189 = vpop.permute.xlu0 %1188
      %1190 = vrot.lane.b32.xlu0 %v594, 12
      %v1191 = vpop.permute.xlu0 %1190
      %1192 = vrot.lane.b32.xlu0 %v595, 12
      %v1193 = vpop.permute.xlu0 %1192
      %1194 = vrot.lane.b32.xlu0 %v596, 12
      %v1195 = vpop.permute.xlu0 %1194
      %1196 = vrot.lane.b32.xlu0 %v597, 12
      %v1197 = vpop.permute.xlu0 %1196
      %1198 = vrot.lane.b32.xlu0 %v598, 12
      %v1199 = vpop.permute.xlu0 %1198
      %1200 = vrot.lane.b32.xlu0 %v599, 12
      %v1201 = vpop.permute.xlu0 %1200
      %1202 = vrot.lane.b32.xlu0 %v600, 12
      %v1203 = vpop.permute.xlu0 %1202
      %1204 = vrot.lane.b32.xlu0 %v601, 12
      %v1205 = vpop.permute.xlu0 %1204
      %1206 = vrot.lane.b32.xlu0 %v602, 12
      %v1207 = vpop.permute.xlu0 %1206
      %1208 = vrot.lane.b32.xlu0 %v603, 12
      %v1209 = vpop.permute.xlu0 %1208
      %1210 = vrot.lane.b32.xlu0 %v604, 12
      %v1211 = vpop.permute.xlu0 %1210
      %1212 = vrot.lane.b32.xlu0 %v605, 12
      %v1213 = vpop.permute.xlu0 %1212
      %1214 = vrot.lane.b32.xlu0 %v606, 12
      %v1215 = vpop.permute.xlu0 %1214
      %1280 = vrot.lane.b32.xlu0 %v607, 15
      %v1281 = vpop.permute.xlu0 %1280
      %1282 = vrot.lane.b32.xlu0 %v608, 15
      %v1283 = vpop.permute.xlu0 %1282
      %1284 = vrot.lane.b32.xlu0 %v609, 15
      %v1285 = vpop.permute.xlu0 %1284
      %1286 = vrot.lane.b32.xlu0 %v610, 15
      %v1287 = vpop.permute.xlu0 %1286
      %1288 = vrot.lane.b32.xlu0 %v611, 15
      %v1289 = vpop.permute.xlu0 %1288
      %1290 = vrot.lane.b32.xlu0 %v612, 15
      %v1291 = vpop.permute.xlu0 %1290
      %1292 = vrot.lane.b32.xlu0 %v613, 15
      %v1293 = vpop.permute.xlu0 %1292
      %1294 = vrot.lane.b32.xlu0 %v614, 15
      %v1295 = vpop.permute.xlu0 %1294
      %1296 = vrot.lane.b32.xlu0 %v615, 15
      %v1297 = vpop.permute.xlu0 %1296
      %1298 = vrot.lane.b32.xlu0 %v616, 15
      %v1299 = vpop.permute.xlu0 %1298
      %1300 = vrot.lane.b32.xlu0 %v617, 15
      %v1301 = vpop.permute.xlu0 %1300
      %1302 = vrot.lane.b32.xlu0 %v618, 15
      %v1303 = vpop.permute.xlu0 %1302
      %1304 = vrot.lane.b32.xlu0 %v619, 15
      %v1305 = vpop.permute.xlu0 %1304
      %1306 = vrot.lane.b32.xlu0 %v620, 15
      %v1307 = vpop.permute.xlu0 %1306
      %1308 = vrot.lane.b32.xlu0 %v621, 15
      %v1309 = vpop.permute.xlu0 %1308
      %1310 = vrot.lane.b32.xlu0 %v622, 15
      %v1311 = vpop.permute.xlu0 %1310
      %1312 = vrot.lane.b32.xlu0 %v623, 15
      %v1313 = vpop.permute.xlu0 %1312
      %1314 = vrot.lane.b32.xlu0 %v624, 15
      %v1315 = vpop.permute.xlu0 %1314
      %1316 = vrot.lane.b32.xlu0 %v625, 15
      %v1317 = vpop.permute.xlu0 %1316
      %1318 = vrot.lane.b32.xlu0 %v626, 15
      %v1319 = vpop.permute.xlu0 %1318
      %1320 = vrot.lane.b32.xlu0 %v627, 15
      %v1321 = vpop.permute.xlu0 %1320
      %1322 = vrot.lane.b32.xlu0 %v628, 15
      %v1323 = vpop.permute.xlu0 %1322
      %1324 = vrot.lane.b32.xlu0 %v629, 15
      %v1325 = vpop.permute.xlu0 %1324
      %1326 = vrot.lane.b32.xlu0 %v630, 15
      %v1327 = vpop.permute.xlu0 %1326
      %1328 = vrot.lane.b32.xlu0 %v631, 15
      %v1329 = vpop.permute.xlu0 %1328
      %1330 = vrot.lane.b32.xlu0 %v632, 15
      %v1331 = vpop.permute.xlu0 %1330
      %1332 = vrot.lane.b32.xlu0 %v633, 15
      %v1333 = vpop.permute.xlu0 %1332
      %1334 = vrot.lane.b32.xlu0 %v634, 15
      %v1335 = vpop.permute.xlu0 %1334
      %1336 = vrot.lane.b32.xlu0 %v635, 15
      %v1337 = vpop.permute.xlu0 %1336
      %1338 = vrot.lane.b32.xlu0 %v636, 15
      %v1339 = vpop.permute.xlu0 %1338
      %1340 = vrot.lane.b32.xlu0 %v637, 15
      %v1341 = vpop.permute.xlu0 %1340
      %1342 = vrot.lane.b32.xlu0 %v638, 15
      %v1343 = vpop.permute.xlu0 %1342
      %1408 = vrot.lane.b32.xlu0 %v640, 18
      %v1409 = vpop.permute.xlu0 %1408
      %1410 = vrot.lane.b32.xlu0 %v641, 18
      %v1411 = vpop.permute.xlu0 %1410
      %1412 = vrot.lane.b32.xlu0 %v642, 18
      %v1413 = vpop.permute.xlu0 %1412
      %1414 = vrot.lane.b32.xlu0 %v643, 18
      %v1415 = vpop.permute.xlu0 %1414
      %1416 = vrot.lane.b32.xlu0 %v644, 18
      %v1417 = vpop.permute.xlu0 %1416
      %1418 = vrot.lane.b32.xlu0 %v645, 18
      %v1419 = vpop.permute.xlu0 %1418
      %1420 = vrot.lane.b32.xlu0 %v646, 18
      %v1421 = vpop.permute.xlu0 %1420
      %1422 = vrot.lane.b32.xlu0 %v647, 18
      %v1423 = vpop.permute.xlu0 %1422
      %1424 = vrot.lane.b32.xlu0 %v648, 18
      %v1425 = vpop.permute.xlu0 %1424
      %1426 = vrot.lane.b32.xlu0 %v649, 18
      %v1427 = vpop.permute.xlu0 %1426
      %1428 = vrot.lane.b32.xlu0 %v650, 18
      %v1429 = vpop.permute.xlu0 %1428
      %1430 = vrot.lane.b32.xlu0 %v651, 18
      %v1431 = vpop.permute.xlu0 %1430
      %1432 = vrot.lane.b32.xlu0 %v652, 18
      %v1433 = vpop.permute.xlu0 %1432
      %1434 = vrot.lane.b32.xlu0 %v653, 18
      %v1435 = vpop.permute.xlu0 %1434
      %1436 = vrot.lane.b32.xlu0 %v654, 18
      %v1437 = vpop.permute.xlu0 %1436
      %1438 = vrot.lane.b32.xlu0 %v655, 18
      %v1439 = vpop.permute.xlu0 %1438
      %1440 = vrot.lane.b32.xlu0 %v656, 18
      %v1441 = vpop.permute.xlu0 %1440
      %1442 = vrot.lane.b32.xlu0 %v657, 18
      %v1443 = vpop.permute.xlu0 %1442
      %1444 = vrot.lane.b32.xlu0 %v658, 18
      %v1445 = vpop.permute.xlu0 %1444
      %1446 = vrot.lane.b32.xlu0 %v659, 18
      %v1447 = vpop.permute.xlu0 %1446
      %1448 = vrot.lane.b32.xlu0 %v660, 18
      %v1449 = vpop.permute.xlu0 %1448
      %1450 = vrot.lane.b32.xlu0 %v661, 18
      %v1451 = vpop.permute.xlu0 %1450
      %1452 = vrot.lane.b32.xlu0 %v662, 18
      %v1453 = vpop.permute.xlu0 %1452
      %1454 = vrot.lane.b32.xlu0 %v663, 18
      %v1455 = vpop.permute.xlu0 %1454
      %1456 = vrot.lane.b32.xlu0 %v664, 18
      %v1457 = vpop.permute.xlu0 %1456
      %1458 = vrot.lane.b32.xlu0 %v665, 18
      %v1459 = vpop.permute.xlu0 %1458
      %1460 = vrot.lane.b32.xlu0 %v666, 18
      %v1461 = vpop.permute.xlu0 %1460
      %1462 = vrot.lane.b32.xlu0 %v667, 18
      %v1463 = vpop.permute.xlu0 %1462
      %1464 = vrot.lane.b32.xlu0 %v668, 18
      %v1465 = vpop.permute.xlu0 %1464
      %1466 = vrot.lane.b32.xlu0 %v669, 18
      %v1467 = vpop.permute.xlu0 %1466
      %1468 = vrot.lane.b32.xlu0 %v670, 18
      %v1469 = vpop.permute.xlu0 %1468
      %1470 = vrot.lane.b32.xlu0 %v671, 18
      %v1471 = vpop.permute.xlu0 %1470
      %1536 = vrot.lane.b32.xlu0 %v672, 21
      %v1537 = vpop.permute.xlu0 %1536
      %1538 = vrot.lane.b32.xlu0 %v673, 21
      %v1539 = vpop.permute.xlu0 %1538
      %1540 = vrot.lane.b32.xlu0 %v674, 21
      %v1541 = vpop.permute.xlu0 %1540
      %1542 = vrot.lane.b32.xlu0 %v675, 21
      %v1543 = vpop.permute.xlu0 %1542
      %1544 = vrot.lane.b32.xlu0 %v676, 21
      %v1545 = vpop.permute.xlu0 %1544
      %1546 = vrot.lane.b32.xlu0 %v677, 21
      %v1547 = vpop.permute.xlu0 %1546
      %1548 = vrot.lane.b32.xlu0 %v678, 21
      %v1549 = vpop.permute.xlu0 %1548
      %1550 = vrot.lane.b32.xlu0 %v679, 21
      %v1551 = vpop.permute.xlu0 %1550
      %1552 = vrot.lane.b32.xlu0 %v680, 21
      %v1553 = vpop.permute.xlu0 %1552
      %1554 = vrot.lane.b32.xlu0 %v681, 21
      %v1555 = vpop.permute.xlu0 %1554
      %1556 = vrot.lane.b32.xlu0 %v682, 21
      %v1557 = vpop.permute.xlu0 %1556
      %1558 = vrot.lane.b32.xlu0 %v683, 21
      %v1559 = vpop.permute.xlu0 %1558
      %1560 = vrot.lane.b32.xlu0 %v684, 21
      %v1561 = vpop.permute.xlu0 %1560
      %1562 = vrot.lane.b32.xlu0 %v685, 21
      %v1563 = vpop.permute.xlu0 %1562
      %1564 = vrot.lane.b32.xlu0 %v686, 21
      %v1565 = vpop.permute.xlu0 %1564
      %1566 = vrot.lane.b32.xlu0 %v687, 21
      %v1567 = vpop.permute.xlu0 %1566
      %1568 = vrot.lane.b32.xlu0 %v688, 21
      %v1569 = vpop.permute.xlu0 %1568
      %1570 = vrot.lane.b32.xlu0 %v689, 21
      %v1571 = vpop.permute.xlu0 %1570
      %1572 = vrot.lane.b32.xlu0 %v690, 21
      %v1573 = vpop.permute.xlu0 %1572
      %1574 = vrot.lane.b32.xlu0 %v691, 21
      %v1575 = vpop.permute.xlu0 %1574
      %1576 = vrot.lane.b32.xlu0 %v692, 21
      %v1577 = vpop.permute.xlu0 %1576
      %1578 = vrot.lane.b32.xlu0 %v693, 21
      %v1579 = vpop.permute.xlu0 %1578
      %1580 = vrot.lane.b32.xlu0 %v694, 21
      %v1581 = vpop.permute.xlu0 %1580
      %1582 = vrot.lane.b32.xlu0 %v695, 21
      %v1583 = vpop.permute.xlu0 %1582
      %1584 = vrot.lane.b32.xlu0 %v696, 21
      %v1585 = vpop.permute.xlu0 %1584
      %1586 = vrot.lane.b32.xlu0 %v697, 21
      %v1587 = vpop.permute.xlu0 %1586
      %1588 = vrot.lane.b32.xlu0 %v698, 21
      %v1589 = vpop.permute.xlu0 %1588
      %1590 = vrot.lane.b32.xlu0 %v699, 21
      %v1591 = vpop.permute.xlu0 %1590
      %1592 = vrot.lane.b32.xlu0 %v700, 21
      %v1593 = vpop.permute.xlu0 %1592
      %1594 = vrot.lane.b32.xlu0 %v701, 21
      %v1595 = vpop.permute.xlu0 %1594
      %1596 = vrot.lane.b32.xlu0 %v702, 21
      %v1597 = vpop.permute.xlu0 %1596
      %1598 = vrot.lane.b32.xlu0 %v703, 21
      %v1599 = vpop.permute.xlu0 %1598
      %1664 = vrot.lane.b32.xlu0 %v704, 24
      %v1665 = vpop.permute.xlu0 %1664
      %1666 = vrot.lane.b32.xlu0 %v705, 24
      %v1667 = vpop.permute.xlu0 %1666
      %1668 = vrot.lane.b32.xlu0 %v706, 24
      %v1669 = vpop.permute.xlu0 %1668
      %1670 = vrot.lane.b32.xlu0 %v707, 24
      %v1671 = vpop.permute.xlu0 %1670
      %1672 = vrot.lane.b32.xlu0 %v708, 24
      %v1673 = vpop.permute.xlu0 %1672
      %1674 = vrot.lane.b32.xlu0 %v709, 24
      %v1675 = vpop.permute.xlu0 %1674
      %1676 = vrot.lane.b32.xlu0 %v710, 24
      %v1677 = vpop.permute.xlu0 %1676
      %1678 = vrot.lane.b32.xlu0 %v711, 24
      %v1679 = vpop.permute.xlu0 %1678
      %1680 = vrot.lane.b32.xlu0 %v712, 24
      %v1681 = vpop.permute.xlu0 %1680
      %1682 = vrot.lane.b32.xlu0 %v713, 24
      %v1683 = vpop.permute.xlu0 %1682
      %1684 = vrot.lane.b32.xlu0 %v714, 24
      %v1685 = vpop.permute.xlu0 %1684
      %1686 = vrot.lane.b32.xlu0 %v715, 24
      %v1687 = vpop.permute.xlu0 %1686
      %1688 = vrot.lane.b32.xlu0 %v716, 24
      %v1689 = vpop.permute.xlu0 %1688
      %1690 = vrot.lane.b32.xlu0 %v717, 24
      %v1691 = vpop.permute.xlu0 %1690
      %1692 = vrot.lane.b32.xlu0 %v718, 24
      %v1693 = vpop.permute.xlu0 %1692
      %1694 = vrot.lane.b32.xlu0 %v719, 24
      %v1695 = vpop.permute.xlu0 %1694
      %1696 = vrot.lane.b32.xlu0 %v720, 24
      %v1697 = vpop.permute.xlu0 %1696
      %1698 = vrot.lane.b32.xlu0 %v721, 24
      %v1699 = vpop.permute.xlu0 %1698
      %1700 = vrot.lane.b32.xlu0 %v722, 24
      %v1701 = vpop.permute.xlu0 %1700
      %1702 = vrot.lane.b32.xlu0 %v723, 24
      %v1703 = vpop.permute.xlu0 %1702
      %1704 = vrot.lane.b32.xlu0 %v724, 24
      %v1705 = vpop.permute.xlu0 %1704
      %1706 = vrot.lane.b32.xlu0 %v725, 24
      %v1707 = vpop.permute.xlu0 %1706
      %1708 = vrot.lane.b32.xlu0 %v726, 24
      %v1709 = vpop.permute.xlu0 %1708
      %1710 = vrot.lane.b32.xlu0 %v727, 24
      %v1711 = vpop.permute.xlu0 %1710
      %1712 = vrot.lane.b32.xlu0 %v728, 24
      %v1713 = vpop.permute.xlu0 %1712
      %1714 = vrot.lane.b32.xlu0 %v729, 24
      %v1715 = vpop.permute.xlu0 %1714
      %1716 = vrot.lane.b32.xlu0 %v730, 24
      %v1717 = vpop.permute.xlu0 %1716
      %1718 = vrot.lane.b32.xlu0 %v731, 24
      %v1719 = vpop.permute.xlu0 %1718
      %1720 = vrot.lane.b32.xlu0 %v732, 24
      %v1721 = vpop.permute.xlu0 %1720
      %1722 = vrot.lane.b32.xlu0 %v733, 24
      %v1723 = vpop.permute.xlu0 %1722
      %1724 = vrot.lane.b32.xlu0 %v734, 24
      %v1725 = vpop.permute.xlu0 %1724
      %1726 = vrot.lane.b32.xlu0 %v735, 24
      %v1727 = vpop.permute.xlu0 %1726
      %vm1760 = vcmask 23552
      %v1761 = vsel %vm1760, %v446, %v769
      %v1762 = vsel %vm1760, %v447, %v771
      %v1763 = vsel %vm1760, %v448, %v773
      %v1764 = vsel %vm1760, %v449, %v775
      %v1765 = vsel %vm1760, %v450, %v777
      %v1766 = vsel %vm1760, %v451, %v779
      %v1767 = vsel %vm1760, %v452, %v781
      %v1768 = vsel %vm1760, %v453, %v783
      %v1769 = vsel %vm1760, %v454, %v785
      %v1770 = vsel %vm1760, %v455, %v787
      %v1771 = vsel %vm1760, %v456, %v789
      %v1772 = vsel %vm1760, %v457, %v791
      %v1773 = vsel %vm1760, %v458, %v793
      %v1774 = vsel %vm1760, %v459, %v795
      %v1775 = vsel %vm1760, %v460, %v797
      %v1776 = vsel %vm1760, %v461, %v799
      %v1777 = vsel %vm1760, %v462, %v801
      %v1778 = vsel %vm1760, %v463, %v803
      %v1779 = vsel %vm1760, %v464, %v805
      %v1780 = vsel %vm1760, %v465, %v807
      %v1781 = vsel %vm1760, %v466, %v809
      %v1782 = vsel %vm1760, %v467, %v811
      %v1783 = vsel %vm1760, %v468, %v813
      %v1784 = vsel %vm1760, %v469, %v815
      %v1785 = vsel %vm1760, %v470, %v817
      %v1786 = vsel %vm1760, %v471, %v819
      %v1787 = vsel %vm1760, %v472, %v821
      %v1788 = vsel %vm1760, %v473, %v823
      %v1789 = vsel %vm1760, %v474, %v825
      %v1790 = vsel %vm1760, %v475, %v827
      %v1791 = vsel %vm1760, %v476, %v829
      %v1792 = vsel %vm1760, %v477, %v831
      %vm1793 = vcmask 48128
      %v1794 = vsel %vm1793, %v1761, %v897
      %v1795 = vsel %vm1793, %v1762, %v899
      %v1796 = vsel %vm1793, %v1763, %v901
      %v1797 = vsel %vm1793, %v1764, %v903
      %v1798 = vsel %vm1793, %v1765, %v905
      %v1799 = vsel %vm1793, %v1766, %v907
      %v1800 = vsel %vm1793, %v1767, %v909
      %v1801 = vsel %vm1793, %v1768, %v911
      %v1802 = vsel %vm1793, %v1769, %v913
      %v1803 = vsel %vm1793, %v1770, %v915
      %v1804 = vsel %vm1793, %v1771, %v917
      %v1805 = vsel %vm1793, %v1772, %v919
      %v1806 = vsel %vm1793, %v1773, %v921
      %v1807 = vsel %vm1793, %v1774, %v923
      %v1808 = vsel %vm1793, %v1775, %v925
      %v1809 = vsel %vm1793, %v1776, %v927
      %v1810 = vsel %vm1793, %v1777, %v929
      %v1811 = vsel %vm1793, %v1778, %v931
      %v1812 = vsel %vm1793, %v1779, %v933
      %v1813 = vsel %vm1793, %v1780, %v935
      %v1814 = vsel %vm1793, %v1781, %v937
      %v1815 = vsel %vm1793, %v1782, %v939
      %v1816 = vsel %vm1793, %v1783, %v941
      %v1817 = vsel %vm1793, %v1784, %v943
      %v1818 = vsel %vm1793, %v1785, %v945
      %v1819 = vsel %vm1793, %v1786, %v947
      %v1820 = vsel %vm1793, %v1787, %v949
      %v1821 = vsel %vm1793, %v1788, %v951
      %v1822 = vsel %vm1793, %v1789, %v953
      %v1823 = vsel %vm1793, %v1790, %v955
      %v1824 = vsel %vm1793, %v1791, %v957
      %v1825 = vsel %vm1793, %v1792, %v959
      %vm1826 = vcmask 72704
      %v1827 = vsel %vm1826, %v1794, %v1025
      %v1828 = vsel %vm1826, %v1795, %v1027
      %v1829 = vsel %vm1826, %v1796, %v1029
      %v1830 = vsel %vm1826, %v1797, %v1031
      %v1831 = vsel %vm1826, %v1798, %v1033
      %v1832 = vsel %vm1826, %v1799, %v1035
      %v1833 = vsel %vm1826, %v1800, %v1037
      %v1834 = vsel %vm1826, %v1801, %v1039
      %v1835 = vsel %vm1826, %v1802, %v1041
      %v1836 = vsel %vm1826, %v1803, %v1043
      %v1837 = vsel %vm1826, %v1804, %v1045
      %v1838 = vsel %vm1826, %v1805, %v1047
      %v1839 = vsel %vm1826, %v1806, %v1049
      %v1840 = vsel %vm1826, %v1807, %v1051
      %v1841 = vsel %vm1826, %v1808, %v1053
      %v1842 = vsel %vm1826, %v1809, %v1055
      %v1843 = vsel %vm1826, %v1810, %v1057
      %v1844 = vsel %vm1826, %v1811, %v1059
      %v1845 = vsel %vm1826, %v1812, %v1061
      %v1846 = vsel %vm1826, %v1813, %v1063
      %v1847 = vsel %vm1826, %v1814, %v1065
      %v1848 = vsel %vm1826, %v1815, %v1067
      %v1849 = vsel %vm1826, %v1816, %v1069
      %v1850 = vsel %vm1826, %v1817, %v1071
      %v1851 = vsel %vm1826, %v1818, %v1073
      %v1852 = vsel %vm1826, %v1819, %v1075
      %v1853 = vsel %vm1826, %v1820, %v1077
      %v1854 = vsel %vm1826, %v1821, %v1079
      %v1855 = vsel %vm1826, %v1822, %v1081
      %v1856 = vsel %vm1826, %v1823, %v1083
      %v1857 = vsel %vm1826, %v1824, %v1085
      %v1858 = vsel %vm1826, %v1825, %v1087
      %vm1859 = vcmask 97280
      %v1860 = vsel %vm1859, %v1827, %v1153
      %v1861 = vsel %vm1859, %v1828, %v1155
      %v1862 = vsel %vm1859, %v1829, %v1157
      %v1863 = vsel %vm1859, %v1830, %v1159
      %v1864 = vsel %vm1859, %v1831, %v1161
      %v1865 = vsel %vm1859, %v1832, %v1163
      %v1866 = vsel %vm1859, %v1833, %v1165
      %v1867 = vsel %vm1859, %v1834, %v1167
      %v1868 = vsel %vm1859, %v1835, %v1169
      %v1869 = vsel %vm1859, %v1836, %v1171
      %v1870 = vsel %vm1859, %v1837, %v1173
      %v1871 = vsel %vm1859, %v1838, %v1175
      %v1872 = vsel %vm1859, %v1839, %v1177
      %v1873 = vsel %vm1859, %v1840, %v1179
      %v1874 = vsel %vm1859, %v1841, %v1181
      %v1875 = vsel %vm1859, %v1842, %v1183
      %v1876 = vsel %vm1859, %v1843, %v1185
      %v1877 = vsel %vm1859, %v1844, %v1187
      %v1878 = vsel %vm1859, %v1845, %v1189
      %v1879 = vsel %vm1859, %v1846, %v1191
      %v1880 = vsel %vm1859, %v1847, %v1193
      %v1881 = vsel %vm1859, %v1848, %v1195
      %v1882 = vsel %vm1859, %v1849, %v1197
      %v1883 = vsel %vm1859, %v1850, %v1199
      %v1884 = vsel %vm1859, %v1851, %v1201
      %v1885 = vsel %vm1859, %v1852, %v1203
      %v1886 = vsel %vm1859, %v1853, %v1205
      %v1887 = vsel %vm1859, %v1854, %v1207
      %v1888 = vsel %vm1859, %v1855, %v1209
      %v1889 = vsel %vm1859, %v1856, %v1211
      %v1890 = vsel %vm1859, %v1857, %v1213
      %v1891 = vsel %vm1859, %v1858, %v1215
      %vm1892 = vcmask 121856
      %v1893 = vsel %vm1892, %v1860, %v1281
      %v1894 = vsel %vm1892, %v1861, %v1283
      %v1895 = vsel %vm1892, %v1862, %v1285
      %v1896 = vsel %vm1892, %v1863, %v1287
      %v1897 = vsel %vm1892, %v1864, %v1289
      %v1898 = vsel %vm1892, %v1865, %v1291
      %v1899 = vsel %vm1892, %v1866, %v1293
      %v1900 = vsel %vm1892, %v1867, %v1295
      %v1901 = vsel %vm1892, %v1868, %v1297
      %v1902 = vsel %vm1892, %v1869, %v1299
      %v1903 = vsel %vm1892, %v1870, %v1301
      %v1904 = vsel %vm1892, %v1871, %v1303
      %v1905 = vsel %vm1892, %v1872, %v1305
      %v1906 = vsel %vm1892, %v1873, %v1307
      %v1907 = vsel %vm1892, %v1874, %v1309
      %v1908 = vsel %vm1892, %v1875, %v1311
      %v1909 = vsel %vm1892, %v1876, %v1313
      %v1910 = vsel %vm1892, %v1877, %v1315
      %v1911 = vsel %vm1892, %v1878, %v1317
      %v1912 = vsel %vm1892, %v1879, %v1319
      %v1913 = vsel %vm1892, %v1880, %v1321
      %v1914 = vsel %vm1892, %v1881, %v1323
      %v1915 = vsel %vm1892, %v1882, %v1325
      %v1916 = vsel %vm1892, %v1883, %v1327
      %v1917 = vsel %vm1892, %v1884, %v1329
      %v1918 = vsel %vm1892, %v1885, %v1331
      %v1919 = vsel %vm1892, %v1886, %v1333
      %v1920 = vsel %vm1892, %v1887, %v1335
      %v1921 = vsel %vm1892, %v1888, %v1337
      %v1922 = vsel %vm1892, %v1889, %v1339
      %v1923 = vsel %vm1892, %v1890, %v1341
      %v1924 = vsel %vm1892, %v1891, %v1343
      %vm1925 = vcmask 146432
      %v1926 = vsel %vm1925, %v1893, %v1409
      %v1927 = vsel %vm1925, %v1894, %v1411
      %v1928 = vsel %vm1925, %v1895, %v1413
      %v1929 = vsel %vm1925, %v1896, %v1415
      %v1930 = vsel %vm1925, %v1897, %v1417
      %v1931 = vsel %vm1925, %v1898, %v1419
      %v1932 = vsel %vm1925, %v1899, %v1421
      %v1933 = vsel %vm1925, %v1900, %v1423
      %v1934 = vsel %vm1925, %v1901, %v1425
      %v1935 = vsel %vm1925, %v1902, %v1427
      %v1936 = vsel %vm1925, %v1903, %v1429
      %v1937 = vsel %vm1925, %v1904, %v1431
      %v1938 = vsel %vm1925, %v1905, %v1433
      %v1939 = vsel %vm1925, %v1906, %v1435
      %v1940 = vsel %vm1925, %v1907, %v1437
      %v1941 = vsel %vm1925, %v1908, %v1439
      %v1942 = vsel %vm1925, %v1909, %v1441
      %v1943 = vsel %vm1925, %v1910, %v1443
      %v1944 = vsel %vm1925, %v1911, %v1445
      %v1945 = vsel %vm1925, %v1912, %v1447
      %v1946 = vsel %vm1925, %v1913, %v1449
      %v1947 = vsel %vm1925, %v1914, %v1451
      %v1948 = vsel %vm1925, %v1915, %v1453
      %v1949 = vsel %vm1925, %v1916, %v1455
      %v1950 = vsel %vm1925, %v1917, %v1457
      %v1951 = vsel %vm1925, %v1918, %v1459
      %v1952 = vsel %vm1925, %v1919, %v1461
      %v1953 = vsel %vm1925, %v1920, %v1463
      %v1954 = vsel %vm1925, %v1921, %v1465
      %v1955 = vsel %vm1925, %v1922, %v1467
      %v1956 = vsel %vm1925, %v1923, %v1469
      %v1957 = vsel %vm1925, %v1924, %v1471
      %vm1958 = vcmask 171008
      %v1959 = vsel %vm1958, %v1926, %v1537
      %v1960 = vsel %vm1958, %v1927, %v1539
      %v1961 = vsel %vm1958, %v1928, %v1541
      %v1962 = vsel %vm1958, %v1929, %v1543
      %v1963 = vsel %vm1958, %v1930, %v1545
      %v1964 = vsel %vm1958, %v1931, %v1547
      %v1965 = vsel %vm1958, %v1932, %v1549
      %v1966 = vsel %vm1958, %v1933, %v1551
      %v1967 = vsel %vm1958, %v1934, %v1553
      %v1968 = vsel %vm1958, %v1935, %v1555
      %v1969 = vsel %vm1958, %v1936, %v1557
      %v1970 = vsel %vm1958, %v1937, %v1559
      %v1971 = vsel %vm1958, %v1938, %v1561
      %v1972 = vsel %vm1958, %v1939, %v1563
      %v1973 = vsel %vm1958, %v1940, %v1565
      %v1974 = vsel %vm1958, %v1941, %v1567
      %v1975 = vsel %vm1958, %v1942, %v1569
      %v1976 = vsel %vm1958, %v1943, %v1571
      %v1977 = vsel %vm1958, %v1944, %v1573
      %v1978 = vsel %vm1958, %v1945, %v1575
      %v1979 = vsel %vm1958, %v1946, %v1577
      %v1980 = vsel %vm1958, %v1947, %v1579
      %v1981 = vsel %vm1958, %v1948, %v1581
      %v1982 = vsel %vm1958, %v1949, %v1583
      %v1983 = vsel %vm1958, %v1950, %v1585
      %v1984 = vsel %vm1958, %v1951, %v1587
      %v1985 = vsel %vm1958, %v1952, %v1589
      %v1986 = vsel %vm1958, %v1953, %v1591
      %v1987 = vsel %vm1958, %v1954, %v1593
      %v1988 = vsel %vm1958, %v1955, %v1595
      %v1989 = vsel %vm1958, %v1956, %v1597
      %v1990 = vsel %vm1958, %v1957, %v1599
      %vm1991 = vcmask 195584
      %v1992 = vsel %vm1991, %v1959, %v1665
      %v1993 = vsel %vm1991, %v1960, %v1667
      %v1994 = vsel %vm1991, %v1961, %v1669
      %v1995 = vsel %vm1991, %v1962, %v1671
      %v1996 = vsel %vm1991, %v1963, %v1673
      %v1997 = vsel %vm1991, %v1964, %v1675
      %v1998 = vsel %vm1991, %v1965, %v1677
      %v1999 = vsel %vm1991, %v1966, %v1679
      %v2000 = vsel %vm1991, %v1967, %v1681
      %v2001 = vsel %vm1991, %v1968, %v1683
      %v2002 = vsel %vm1991, %v1969, %v1685
      %v2003 = vsel %vm1991, %v1970, %v1687
      %v2004 = vsel %vm1991, %v1971, %v1689
      %v2005 = vsel %vm1991, %v1972, %v1691
      %v2006 = vsel %vm1991, %v1973, %v1693
      %v2007 = vsel %vm1991, %v1974, %v1695
      %v2008 = vsel %vm1991, %v1975, %v1697
      %v2009 = vsel %vm1991, %v1976, %v1699
      %v2010 = vsel %vm1991, %v1977, %v1701
      %v2011 = vsel %vm1991, %v1978, %v1703
      %v2012 = vsel %vm1991, %v1979, %v1705
      %v2013 = vsel %vm1991, %v1980, %v1707
      %v2014 = vsel %vm1991, %v1981, %v1709
      %v2015 = vsel %vm1991, %v1982, %v1711
      %v2016 = vsel %vm1991, %v1983, %v1713
      %v2017 = vsel %vm1991, %v1984, %v1715
      %v2018 = vsel %vm1991, %v1985, %v1717
      %v2019 = vsel %vm1991, %v1986, %v1719
      %v2020 = vsel %vm1991, %v1987, %v1721
      %v2021 = vsel %vm1991, %v1988, %v1723
      %v2022 = vsel %vm1991, %v1989, %v1725
      %v2023 = vsel %vm1991, %v1990, %v1727
      %v2024 = vpack.c.bf16 %v1993, %v1992
      %v2025 = vpack.c.bf16 %v1995, %v1994
      %v2026 = vpack.c.bf16 %v1997, %v1996
      %v2027 = vpack.c.bf16 %v1999, %v1998
      %v2028 = vpack.c.bf16 %v2001, %v2000
      %v2029 = vpack.c.bf16 %v2003, %v2002
      %v2030 = vpack.c.bf16 %v2005, %v2004
      %v2031 = vpack.c.bf16 %v2007, %v2006
      %v2032 = vpack.c.bf16 %v2009, %v2008
      %v2033 = vpack.c.bf16 %v2011, %v2010
      %v2034 = vpack.c.bf16 %v2013, %v2012
      %v2035 = vpack.c.bf16 %v2015, %v2014
      %v2036 = vpack.c.bf16 %v2017, %v2016
      %v2037 = vpack.c.bf16 %v2019, %v2018
      %v2038 = vpack.c.bf16 %v2021, %v2020
      %v2039 = vpack.c.bf16 %v2023, %v2022
      %v2040 = vld [vmem:[%s1] sm:$0xf]
      %v2041 = vld [vmem:[%s1 + $0x4] sm:$0xf]
      %v2042 = vld [vmem:[%s1 + $0x8] sm:$0xf]
      %v2043 = vld [vmem:[%s1 + $0xc] sm:$0x3]
      %v2044 = vld [vmem:[%s2] sm:$0x1]
      %v2046 = vperm.slane %v2044, 0
      %v2052 = vunpack.c.l.b16 %v2040
      %v2053 = vunpack.c.l.b16 %v2041
      %v2054 = vunpack.c.l.b16 %v2042
      %v2055 = vunpack.c.l.b16 %v2043
      %v2056 = vpack.c.b16 %v2053, %v2052
      %v2057 = vpack.c.b16 %v2055, %v2054
      %vm2059 = vcmask 220160
      %v2061 = vsel %vm2059, %v2024, 0
      %v2064 = vsel %vm2059, %v2025, 0
      %v2067 = vsel %vm2059, %v2026, 0
      %v2070 = vsel %vm2059, %v2027, 0
      %v2073 = vsel %vm2059, %v2028, 0
      %v2076 = vsel %vm2059, %v2029, 0
      %v2079 = vsel %vm2059, %v2030, 0
      %v2082 = vsel %vm2059, %v2031, 0
      %v2085 = vsel %vm2059, %v2032, 0
      %v2088 = vsel %vm2059, %v2033, 0
      %v2091 = vsel %vm2059, %v2034, 0
      %v2094 = vsel %vm2059, %v2035, 0
      %v2097 = vsel %vm2059, %v2036, 0
      %v2100 = vsel %vm2059, %v2037, 0
      %v2103 = vsel %vm2059, %v2038, 0
      %v2106 = vsel %vm2059, %v2039, 0
      %vm2108 = vcmask 1044480
      %vm2109 = vcmask 1045504
      %v2110 = vsel %vm2108, 4294967295, 65535
      %v2111 = vsel %vm2109, %v2110, 0
      %v2113 = vand.u32 %v2057, %v2111
      %2115 = vmatpush.bf16.msra.mxu0 0
      %2116 = vmatpush.bf16.msra.mxu0 0
      %2117 = vmatpush.bf16.msra.mxu0 0
      %2118 = vmatpush.bf16.msra.mxu0 0
      %2119 = vmatpush.bf16.msra.mxu0 0
      %2120 = vmatpush.bf16.msra.mxu0 0
      %2121 = vmatpush.bf16.msra.mxu0 %v2113
      %2122 = vmatpush.bf16.msra.mxu0 %v2056
      %2123 = vmatmul.bf16.gmra.mxu0 %v2061
      %v2124 = vpop.f32.mrf.mxu0
      %v2125 = vadd.f32 %v2046, %v2124
      %v2126 = vpop.f32.mrf.mxu0
      %v2127 = vadd.f32 %v2046, %v2126
      %2128 = vmatmul.bf16.gmra.mxu0 %v2064
      %v2129 = vpop.f32.mrf.mxu0
      %v2130 = vadd.f32 %v2046, %v2129
      %v2131 = vpop.f32.mrf.mxu0
      %v2132 = vadd.f32 %v2046, %v2131
      %2133 = vmatmul.bf16.gmra.mxu0 %v2067
      %v2134 = vpop.f32.mrf.mxu0
      %v2135 = vadd.f32 %v2046, %v2134
      %v2136 = vpop.f32.mrf.mxu0
      %v2137 = vadd.f32 %v2046, %v2136
      %2138 = vmatmul.bf16.gmra.mxu0 %v2070
      %v2139 = vpop.f32.mrf.mxu0
      %v2140 = vadd.f32 %v2046, %v2139
      %v2141 = vpop.f32.mrf.mxu0
      %v2142 = vadd.f32 %v2046, %v2141
      %2143 = vmatmul.bf16.gmra.mxu0 %v2073
      %v2144 = vpop.f32.mrf.mxu0
      %v2145 = vadd.f32 %v2046, %v2144
      %v2146 = vpop.f32.mrf.mxu0
      %v2147 = vadd.f32 %v2046, %v2146
      %2148 = vmatmul.bf16.gmra.mxu0 %v2076
      %v2149 = vpop.f32.mrf.mxu0
      %v2150 = vadd.f32 %v2046, %v2149
      %v2151 = vpop.f32.mrf.mxu0
      %v2152 = vadd.f32 %v2046, %v2151
      %2153 = vmatmul.bf16.gmra.mxu0 %v2079
      %v2154 = vpop.f32.mrf.mxu0
      %v2155 = vadd.f32 %v2046, %v2154
      %v2156 = vpop.f32.mrf.mxu0
      %v2157 = vadd.f32 %v2046, %v2156
      %2158 = vmatmul.bf16.gmra.mxu0 %v2082
      %v2159 = vpop.f32.mrf.mxu0
      %v2160 = vadd.f32 %v2046, %v2159
      %v2161 = vpop.f32.mrf.mxu0
      %v2162 = vadd.f32 %v2046, %v2161
      %2163 = vmatmul.bf16.gmra.mxu0 %v2085
      %v2164 = vpop.f32.mrf.mxu0
      %v2165 = vadd.f32 %v2046, %v2164
      %v2166 = vpop.f32.mrf.mxu0
      %v2167 = vadd.f32 %v2046, %v2166
      %2168 = vmatmul.bf16.gmra.mxu0 %v2088
      %v2169 = vpop.f32.mrf.mxu0
      %v2170 = vadd.f32 %v2046, %v2169
      %v2171 = vpop.f32.mrf.mxu0
      %v2172 = vadd.f32 %v2046, %v2171
      %2173 = vmatmul.bf16.gmra.mxu0 %v2091
      %v2174 = vpop.f32.mrf.mxu0
      %v2175 = vadd.f32 %v2046, %v2174
      %v2176 = vpop.f32.mrf.mxu0
      %v2177 = vadd.f32 %v2046, %v2176
      %2178 = vmatmul.bf16.gmra.mxu0 %v2094
      %v2179 = vpop.f32.mrf.mxu0
      %v2180 = vadd.f32 %v2046, %v2179
      %v2181 = vpop.f32.mrf.mxu0
      %v2182 = vadd.f32 %v2046, %v2181
      %2183 = vmatmul.bf16.gmra.mxu0 %v2097
      %v2184 = vpop.f32.mrf.mxu0
      %v2185 = vadd.f32 %v2046, %v2184
      %v2186 = vpop.f32.mrf.mxu0
      %v2187 = vadd.f32 %v2046, %v2186
      %2188 = vmatmul.bf16.gmra.mxu0 %v2100
      %v2189 = vpop.f32.mrf.mxu0
      %v2190 = vadd.f32 %v2046, %v2189
      %v2191 = vpop.f32.mrf.mxu0
      %v2192 = vadd.f32 %v2046, %v2191
      %2193 = vmatmul.bf16.gmra.mxu0 %v2103
      %v2194 = vpop.f32.mrf.mxu0
      %v2195 = vadd.f32 %v2046, %v2194
      %v2196 = vpop.f32.mrf.mxu0
      %v2197 = vadd.f32 %v2046, %v2196
      %2198 = vmatmul.bf16.gmra.mxu0 %v2106
      %v2199 = vpop.f32.mrf.mxu0
      %v2200 = vadd.f32 %v2046, %v2199
      %v2201 = vpop.f32.mrf.mxu0
      %v2202 = vadd.f32 %v2046, %v2201
      %2203 = vdwg.mxu0
      %v2204 = vmax.f32 %v2125, 0.0
      %v2205 = vmax.f32 %v2127, 0.0
      %v2206 = vmax.f32 %v2130, 0.0
      %v2207 = vmax.f32 %v2132, 0.0
      %v2208 = vmax.f32 %v2135, 0.0
      %v2209 = vmax.f32 %v2137, 0.0
      %v2210 = vmax.f32 %v2140, 0.0
      %v2211 = vmax.f32 %v2142, 0.0
      %v2212 = vmax.f32 %v2145, 0.0
      %v2213 = vmax.f32 %v2147, 0.0
      %v2214 = vmax.f32 %v2150, 0.0
      %v2215 = vmax.f32 %v2152, 0.0
      %v2216 = vmax.f32 %v2155, 0.0
      %v2217 = vmax.f32 %v2157, 0.0
      %v2218 = vmax.f32 %v2160, 0.0
      %v2219 = vmax.f32 %v2162, 0.0
      %v2220 = vmax.f32 %v2165, 0.0
      %v2221 = vmax.f32 %v2167, 0.0
      %v2222 = vmax.f32 %v2170, 0.0
      %v2223 = vmax.f32 %v2172, 0.0
      %v2224 = vmax.f32 %v2175, 0.0
      %v2225 = vmax.f32 %v2177, 0.0
      %v2226 = vmax.f32 %v2180, 0.0
      %v2227 = vmax.f32 %v2182, 0.0
      %v2228 = vmax.f32 %v2185, 0.0
      %v2229 = vmax.f32 %v2187, 0.0
      %v2230 = vmax.f32 %v2190, 0.0
      %v2231 = vmax.f32 %v2192, 0.0
      %v2232 = vmax.f32 %v2195, 0.0
      %v2233 = vmax.f32 %v2197, 0.0
      %v2234 = vmax.f32 %v2200, 0.0
      %v2235 = vmax.f32 %v2202, 0.0
      %s2236 = scalar_lea.vmem [#allocation2], 24
      %2237 = vst.msk [vmem:[%s2236 + $0x1] sm:$0xff] %vm334, %v2204
      %2238 = vst.msk [vmem:[%s2236 + $0x9] sm:$0xff] %vm334, %v2205
      %2239 = vst.msk [vmem:[%s2236 + $0x19] sm:$0xff] %vm334, %v2206
      %2240 = vst.msk [vmem:[%s2236 + $0x21] sm:$0xff] %vm334, %v2207
      %2241 = vst.msk [vmem:[%s2236 + $0x31] sm:$0xff] %vm334, %v2208
      %2242 = vst.msk [vmem:[%s2236 + $0x39] sm:$0xff] %vm334, %v2209
      %2243 = vst.msk [vmem:[%s2236 + $0x49] sm:$0xff] %vm334, %v2210
      %2244 = vst.msk [vmem:[%s2236 + $0x51] sm:$0xff] %vm334, %v2211
      %2245 = vst.msk [vmem:[%s2236 + $0x61] sm:$0xff] %vm334, %v2212
      %2246 = vst.msk [vmem:[%s2236 + $0x69] sm:$0xff] %vm334, %v2213
      %2247 = vst.msk [vmem:[%s2236 + $0x79] sm:$0xff] %vm334, %v2214
      %2248 = vst.msk [vmem:[%s2236 + $0x81] sm:$0xff] %vm334, %v2215
      %2249 = vst.msk [vmem:[%s2236 + $0x91] sm:$0xff] %vm334, %v2216
      %2250 = vst.msk [vmem:[%s2236 + $0x99] sm:$0xff] %vm334, %v2217
      %2251 = vst.msk [vmem:[%s2236 + $0xa9] sm:$0xff] %vm334, %v2218
      %2252 = vst.msk [vmem:[%s2236 + $0xb1] sm:$0xff] %vm334, %v2219
      %2253 = vst.msk [vmem:[%s2236 + $0xc1] sm:$0xff] %vm334, %v2220
      %2254 = vst.msk [vmem:[%s2236 + $0xc9] sm:$0xff] %vm334, %v2221
      %2255 = vst.msk [vmem:[%s2236 + $0xd9] sm:$0xff] %vm334, %v2222
      %2256 = vst.msk [vmem:[%s2236 + $0xe1] sm:$0xff] %vm334, %v2223
      %2257 = vst.msk [vmem:[%s2236 + $0xf1] sm:$0xff] %vm334, %v2224
      %2258 = vst.msk [vmem:[%s2236 + $0xf9] sm:$0xff] %vm334, %v2225
      %2259 = vst.msk [vmem:[%s2236 + $0x109] sm:$0xff] %vm334, %v2226
      %2260 = vst.msk [vmem:[%s2236 + $0x111] sm:$0xff] %vm334, %v2227
      %2261 = vst.msk [vmem:[%s2236 + $0x121] sm:$0xff] %vm334, %v2228
      %2262 = vst.msk [vmem:[%s2236 + $0x129] sm:$0xff] %vm334, %v2229
      %2263 = vst.msk [vmem:[%s2236 + $0x139] sm:$0xff] %vm334, %v2230
      %2264 = vst.msk [vmem:[%s2236 + $0x141] sm:$0xff] %vm334, %v2231
      %2265 = vst.msk [vmem:[%s2236 + $0x151] sm:$0xff] %vm334, %v2232
      %2266 = vst.msk [vmem:[%s2236 + $0x159] sm:$0xff] %vm334, %v2233
      %2267 = vst.msk [vmem:[%s2236 + $0x169] sm:$0xff] %vm334, %v2234
      %2268 = vst.msk [vmem:[%s2236 + $0x171] sm:$0xff] %vm334, %v2235
      %v2269 = vld [vmem:[#allocation2] sm:$0xff]
      %v2270 = vld [vmem:[#allocation2 + $0x8] sm:$0xff]
      %v2271 = vld [vmem:[#allocation2 + $0x18] sm:$0xff]
      %v2272 = vld [vmem:[#allocation2 + $0x20] sm:$0xff]
      %v2273 = vld [vmem:[#allocation2 + $0x30] sm:$0xff]
      %v2274 = vld [vmem:[#allocation2 + $0x38] sm:$0xff]
      %v2275 = vld [vmem:[#allocation2 + $0x48] sm:$0xff]
      %v2276 = vld [vmem:[#allocation2 + $0x50] sm:$0xff]
      %v2277 = vld [vmem:[#allocation2 + $0x60] sm:$0xff]
      %v2278 = vld [vmem:[#allocation2 + $0x68] sm:$0xff]
      %v2279 = vld [vmem:[#allocation2 + $0x78] sm:$0xff]
      %v2280 = vld [vmem:[#allocation2 + $0x80] sm:$0xff]
      %v2281 = vld [vmem:[#allocation2 + $0x90] sm:$0xff]
      %v2282 = vld [vmem:[#allocation2 + $0x98] sm:$0xff]
      %v2283 = vld [vmem:[#allocation2 + $0xa8] sm:$0xff]
      %v2284 = vld [vmem:[#allocation2 + $0xb0] sm:$0xff]
      %v2285 = vld [vmem:[#allocation2 + $0xc0] sm:$0xff]
      %v2286 = vld [vmem:[#allocation2 + $0xc8] sm:$0xff]
      %v2287 = vld [vmem:[#allocation2 + $0xd8] sm:$0xff]
      %v2288 = vld [vmem:[#allocation2 + $0xe0] sm:$0xff]
      %v2289 = vld [vmem:[#allocation2 + $0xf0] sm:$0xff]
      %v2290 = vld [vmem:[#allocation2 + $0xf8] sm:$0xff]
      %v2291 = vld [vmem:[#allocation2 + $0x108] sm:$0xff]
      %v2292 = vld [vmem:[#allocation2 + $0x110] sm:$0xff]
      %v2293 = vld [vmem:[#allocation2 + $0x120] sm:$0xff]
      %v2294 = vld [vmem:[#allocation2 + $0x128] sm:$0xff]
      %v2295 = vld [vmem:[#allocation2 + $0x138] sm:$0xff]
      %v2296 = vld [vmem:[#allocation2 + $0x140] sm:$0xff]
      %v2297 = vld [vmem:[#allocation2 + $0x150] sm:$0xff]
      %v2298 = vld [vmem:[#allocation2 + $0x158] sm:$0xff]
      %v2299 = vld [vmem:[#allocation2 + $0x168] sm:$0xff]
      %v2300 = vld [vmem:[#allocation2 + $0x170] sm:$0xff]
      %v2301 = vld [vmem:[#allocation2 + $0x1] sm:$0xff]
      %v2302 = vld [vmem:[#allocation2 + $0x9] sm:$0xff]
      %v2303 = vld [vmem:[#allocation2 + $0x19] sm:$0xff]
      %v2304 = vld [vmem:[#allocation2 + $0x21] sm:$0xff]
      %v2305 = vld [vmem:[#allocation2 + $0x31] sm:$0xff]
      %v2306 = vld [vmem:[#allocation2 + $0x39] sm:$0xff]
      %v2307 = vld [vmem:[#allocation2 + $0x49] sm:$0xff]
      %v2308 = vld [vmem:[#allocation2 + $0x51] sm:$0xff]
      %v2309 = vld [vmem:[#allocation2 + $0x61] sm:$0xff]
      %v2310 = vld [vmem:[#allocation2 + $0x69] sm:$0xff]
      %v2311 = vld [vmem:[#allocation2 + $0x79] sm:$0xff]
      %v2312 = vld [vmem:[#allocation2 + $0x81] sm:$0xff]
      %v2313 = vld [vmem:[#allocation2 + $0x91] sm:$0xff]
      %v2314 = vld [vmem:[#allocation2 + $0x99] sm:$0xff]
      %v2315 = vld [vmem:[#allocation2 + $0xa9] sm:$0xff]
      %v2316 = vld [vmem:[#allocation2 + $0xb1] sm:$0xff]
      %v2317 = vld [vmem:[#allocation2 + $0xc1] sm:$0xff]
      %v2318 = vld [vmem:[#allocation2 + $0xc9] sm:$0xff]
      %v2319 = vld [vmem:[#allocation2 + $0xd9] sm:$0xff]
      %v2320 = vld [vmem:[#allocation2 + $0xe1] sm:$0xff]
      %v2321 = vld [vmem:[#allocation2 + $0xf1] sm:$0xff]
      %v2322 = vld [vmem:[#allocation2 + $0xf9] sm:$0xff]
      %v2323 = vld [vmem:[#allocation2 + $0x109] sm:$0xff]
      %v2324 = vld [vmem:[#allocation2 + $0x111] sm:$0xff]
      %v2325 = vld [vmem:[#allocation2 + $0x121] sm:$0xff]
      %v2326 = vld [vmem:[#allocation2 + $0x129] sm:$0xff]
      %v2327 = vld [vmem:[#allocation2 + $0x139] sm:$0xff]
      %v2328 = vld [vmem:[#allocation2 + $0x141] sm:$0xff]
      %v2329 = vld [vmem:[#allocation2 + $0x151] sm:$0xff]
      %v2330 = vld [vmem:[#allocation2 + $0x159] sm:$0xff]
      %v2331 = vld [vmem:[#allocation2 + $0x169] sm:$0xff]
      %v2332 = vld [vmem:[#allocation2 + $0x171] sm:$0xff]
      %v2333 = vld [vmem:[#allocation2 + $0x2] sm:$0xff]
      %v2334 = vld [vmem:[#allocation2 + $0xa] sm:$0xff]
      %v2335 = vld [vmem:[#allocation2 + $0x1a] sm:$0xff]
      %v2336 = vld [vmem:[#allocation2 + $0x22] sm:$0xff]
      %v2337 = vld [vmem:[#allocation2 + $0x32] sm:$0xff]
      %v2338 = vld [vmem:[#allocation2 + $0x3a] sm:$0xff]
      %v2339 = vld [vmem:[#allocation2 + $0x4a] sm:$0xff]
      %v2340 = vld [vmem:[#allocation2 + $0x52] sm:$0xff]
      %v2341 = vld [vmem:[#allocation2 + $0x62] sm:$0xff]
      %v2342 = vld [vmem:[#allocation2 + $0x6a] sm:$0xff]
      %v2343 = vld [vmem:[#allocation2 + $0x7a] sm:$0xff]
      %v2344 = vld [vmem:[#allocation2 + $0x82] sm:$0xff]
      %v2345 = vld [vmem:[#allocation2 + $0x92] sm:$0xff]
      %v2346 = vld [vmem:[#allocation2 + $0x9a] sm:$0xff]
      %v2347 = vld [vmem:[#allocation2 + $0xaa] sm:$0xff]
      %v2348 = vld [vmem:[#allocation2 + $0xb2] sm:$0xff]
      %v2349 = vld [vmem:[#allocation2 + $0xc2] sm:$0xff]
      %v2350 = vld [vmem:[#allocation2 + $0xca] sm:$0xff]
      %v2351 = vld [vmem:[#allocation2 + $0xda] sm:$0xff]
      %v2352 = vld [vmem:[#allocation2 + $0xe2] sm:$0xff]
      %v2353 = vld [vmem:[#allocation2 + $0xf2] sm:$0xff]
      %v2354 = vld [vmem:[#allocation2 + $0xfa] sm:$0xff]
      %v2355 = vld [vmem:[#allocation2 + $0x10a] sm:$0xff]
      %v2356 = vld [vmem:[#allocation2 + $0x112] sm:$0xff]
      %v2357 = vld [vmem:[#allocation2 + $0x122] sm:$0xff]
      %v2358 = vld [vmem:[#allocation2 + $0x12a] sm:$0xff]
      %v2359 = vld [vmem:[#allocation2 + $0x13a] sm:$0xff]
      %v2360 = vld [vmem:[#allocation2 + $0x142] sm:$0xff]
      %v2361 = vld [vmem:[#allocation2 + $0x152] sm:$0xff]
      %v2362 = vld [vmem:[#allocation2 + $0x15a] sm:$0xff]
      %v2363 = vld [vmem:[#allocation2 + $0x16a] sm:$0xff]
      %v2364 = vld [vmem:[#allocation2 + $0x172] sm:$0xff]
      %v2365 = vld [vmem:[%s2236] sm:$0xff]
      %v2366 = vld [vmem:[%s2236 + $0x8] sm:$0xff]
      %v2367 = vld [vmem:[%s2236 + $0x18] sm:$0xff]
      %v2368 = vld [vmem:[%s2236 + $0x20] sm:$0xff]
      %v2369 = vld [vmem:[%s2236 + $0x30] sm:$0xff]
      %v2370 = vld [vmem:[%s2236 + $0x38] sm:$0xff]
      %v2371 = vld [vmem:[%s2236 + $0x48] sm:$0xff]
      %v2372 = vld [vmem:[%s2236 + $0x50] sm:$0xff]
      %v2373 = vld [vmem:[%s2236 + $0x60] sm:$0xff]
      %v2374 = vld [vmem:[%s2236 + $0x68] sm:$0xff]
      %v2375 = vld [vmem:[%s2236 + $0x78] sm:$0xff]
      %v2376 = vld [vmem:[%s2236 + $0x80] sm:$0xff]
      %v2377 = vld [vmem:[%s2236 + $0x90] sm:$0xff]
      %v2378 = vld [vmem:[%s2236 + $0x98] sm:$0xff]
      %v2379 = vld [vmem:[%s2236 + $0xa8] sm:$0xff]
      %v2380 = vld [vmem:[%s2236 + $0xb0] sm:$0xff]
      %v2381 = vld [vmem:[%s2236 + $0xc0] sm:$0xff]
      %v2382 = vld [vmem:[%s2236 + $0xc8] sm:$0xff]
      %v2383 = vld [vmem:[%s2236 + $0xd8] sm:$0xff]
      %v2384 = vld [vmem:[%s2236 + $0xe0] sm:$0xff]
      %v2385 = vld [vmem:[%s2236 + $0xf0] sm:$0xff]
      %v2386 = vld [vmem:[%s2236 + $0xf8] sm:$0xff]
      %v2387 = vld [vmem:[%s2236 + $0x108] sm:$0xff]
      %v2388 = vld [vmem:[%s2236 + $0x110] sm:$0xff]
      %v2389 = vld [vmem:[%s2236 + $0x120] sm:$0xff]
      %v2390 = vld [vmem:[%s2236 + $0x128] sm:$0xff]
      %v2391 = vld [vmem:[%s2236 + $0x138] sm:$0xff]
      %v2392 = vld [vmem:[%s2236 + $0x140] sm:$0xff]
      %v2393 = vld [vmem:[%s2236 + $0x150] sm:$0xff]
      %v2394 = vld [vmem:[%s2236 + $0x158] sm:$0xff]
      %v2395 = vld [vmem:[%s2236 + $0x168] sm:$0xff]
      %v2396 = vld [vmem:[%s2236 + $0x170] sm:$0xff]
      %v2397 = vld [vmem:[%s2236 + $0x1] sm:$0xff]
      %v2398 = vld [vmem:[%s2236 + $0x9] sm:$0xff]
      %v2399 = vld [vmem:[%s2236 + $0x19] sm:$0xff]
      %v2400 = vld [vmem:[%s2236 + $0x21] sm:$0xff]
      %v2401 = vld [vmem:[%s2236 + $0x31] sm:$0xff]
      %v2402 = vld [vmem:[%s2236 + $0x39] sm:$0xff]
      %v2403 = vld [vmem:[%s2236 + $0x49] sm:$0xff]
      %v2404 = vld [vmem:[%s2236 + $0x51] sm:$0xff]
      %v2405 = vld [vmem:[%s2236 + $0x61] sm:$0xff]
      %v2406 = vld [vmem:[%s2236 + $0x69] sm:$0xff]
      %v2407 = vld [vmem:[%s2236 + $0x79] sm:$0xff]
      %v2408 = vld [vmem:[%s2236 + $0x81] sm:$0xff]
      %v2409 = vld [vmem:[%s2236 + $0x91] sm:$0xff]
      %v2410 = vld [vmem:[%s2236 + $0x99] sm:$0xff]
      %v2411 = vld [vmem:[%s2236 + $0xa9] sm:$0xff]
      %v2412 = vld [vmem:[%s2236 + $0xb1] sm:$0xff]
      %v2413 = vld [vmem:[%s2236 + $0xc1] sm:$0xff]
      %v2414 = vld [vmem:[%s2236 + $0xc9] sm:$0xff]
      %v2415 = vld [vmem:[%s2236 + $0xd9] sm:$0xff]
      %v2416 = vld [vmem:[%s2236 + $0xe1] sm:$0xff]
      %v2417 = vld [vmem:[%s2236 + $0xf1] sm:$0xff]
      %v2418 = vld [vmem:[%s2236 + $0xf9] sm:$0xff]
      %v2419 = vld [vmem:[%s2236 + $0x109] sm:$0xff]
      %v2420 = vld [vmem:[%s2236 + $0x111] sm:$0xff]
      %v2421 = vld [vmem:[%s2236 + $0x121] sm:$0xff]
      %v2422 = vld [vmem:[%s2236 + $0x129] sm:$0xff]
      %v2423 = vld [vmem:[%s2236 + $0x139] sm:$0xff]
      %v2424 = vld [vmem:[%s2236 + $0x141] sm:$0xff]
      %v2425 = vld [vmem:[%s2236 + $0x151] sm:$0xff]
      %v2426 = vld [vmem:[%s2236 + $0x159] sm:$0xff]
      %v2427 = vld [vmem:[%s2236 + $0x169] sm:$0xff]
      %v2428 = vld [vmem:[%s2236 + $0x171] sm:$0xff]
      %v2429 = vld [vmem:[%s2236 + $0x2] sm:$0xff]
      %v2430 = vld [vmem:[%s2236 + $0xa] sm:$0xff]
      %v2431 = vld [vmem:[%s2236 + $0x1a] sm:$0xff]
      %v2432 = vld [vmem:[%s2236 + $0x22] sm:$0xff]
      %v2433 = vld [vmem:[%s2236 + $0x32] sm:$0xff]
      %v2434 = vld [vmem:[%s2236 + $0x3a] sm:$0xff]
      %v2435 = vld [vmem:[%s2236 + $0x4a] sm:$0xff]
      %v2436 = vld [vmem:[%s2236 + $0x52] sm:$0xff]
      %v2437 = vld [vmem:[%s2236 + $0x62] sm:$0xff]
      %v2438 = vld [vmem:[%s2236 + $0x6a] sm:$0xff]
      %v2439 = vld [vmem:[%s2236 + $0x7a] sm:$0xff]
      %v2440 = vld [vmem:[%s2236 + $0x82] sm:$0xff]
      %v2441 = vld [vmem:[%s2236 + $0x92] sm:$0xff]
      %v2442 = vld [vmem:[%s2236 + $0x9a] sm:$0xff]
      %v2443 = vld [vmem:[%s2236 + $0xaa] sm:$0xff]
      %v2444 = vld [vmem:[%s2236 + $0xb2] sm:$0xff]
      %v2445 = vld [vmem:[%s2236 + $0xc2] sm:$0xff]
      %v2446 = vld [vmem:[%s2236 + $0xca] sm:$0xff]
      %v2447 = vld [vmem:[%s2236 + $0xda] sm:$0xff]
      %v2448 = vld [vmem:[%s2236 + $0xe2] sm:$0xff]
      %v2449 = vld [vmem:[%s2236 + $0xf2] sm:$0xff]
      %v2450 = vld [vmem:[%s2236 + $0xfa] sm:$0xff]
      %v2451 = vld [vmem:[%s2236 + $0x10a] sm:$0xff]
      %v2452 = vld [vmem:[%s2236 + $0x112] sm:$0xff]
      %v2453 = vld [vmem:[%s2236 + $0x122] sm:$0xff]
      %v2454 = vld [vmem:[%s2236 + $0x12a] sm:$0xff]
      %v2455 = vld [vmem:[%s2236 + $0x13a] sm:$0xff]
      %v2456 = vld [vmem:[%s2236 + $0x142] sm:$0xff]
      %v2457 = vld [vmem:[%s2236 + $0x152] sm:$0xff]
      %v2458 = vld [vmem:[%s2236 + $0x15a] sm:$0xff]
      %v2459 = vld [vmem:[%s2236 + $0x16a] sm:$0xff]
      %v2460 = vld [vmem:[%s2236 + $0x172] sm:$0xff]
      %s2461 = scalar_lea.vmem [#allocation2], 48
      %v2462 = vld [vmem:[%s2461] sm:$0xff]
      %v2463 = vld [vmem:[%s2461 + $0x8] sm:$0xff]
      %v2464 = vld [vmem:[%s2461 + $0x18] sm:$0xff]
      %v2465 = vld [vmem:[%s2461 + $0x20] sm:$0xff]
      %v2466 = vld [vmem:[%s2461 + $0x30] sm:$0xff]
      %v2467 = vld [vmem:[%s2461 + $0x38] sm:$0xff]
      %v2468 = vld [vmem:[%s2461 + $0x48] sm:$0xff]
      %v2469 = vld [vmem:[%s2461 + $0x50] sm:$0xff]
      %v2470 = vld [vmem:[%s2461 + $0x60] sm:$0xff]
      %v2471 = vld [vmem:[%s2461 + $0x68] sm:$0xff]
      %v2472 = vld [vmem:[%s2461 + $0x78] sm:$0xff]
      %v2473 = vld [vmem:[%s2461 + $0x80] sm:$0xff]
      %v2474 = vld [vmem:[%s2461 + $0x90] sm:$0xff]
      %v2475 = vld [vmem:[%s2461 + $0x98] sm:$0xff]
      %v2476 = vld [vmem:[%s2461 + $0xa8] sm:$0xff]
      %v2477 = vld [vmem:[%s2461 + $0xb0] sm:$0xff]
      %v2478 = vld [vmem:[%s2461 + $0xc0] sm:$0xff]
      %v2479 = vld [vmem:[%s2461 + $0xc8] sm:$0xff]
      %v2480 = vld [vmem:[%s2461 + $0xd8] sm:$0xff]
      %v2481 = vld [vmem:[%s2461 + $0xe0] sm:$0xff]
      %v2482 = vld [vmem:[%s2461 + $0xf0] sm:$0xff]
      %v2483 = vld [vmem:[%s2461 + $0xf8] sm:$0xff]
      %v2484 = vld [vmem:[%s2461 + $0x108] sm:$0xff]
      %v2485 = vld [vmem:[%s2461 + $0x110] sm:$0xff]
      %v2486 = vld [vmem:[%s2461 + $0x120] sm:$0xff]
      %v2487 = vld [vmem:[%s2461 + $0x128] sm:$0xff]
      %v2488 = vld [vmem:[%s2461 + $0x138] sm:$0xff]
      %v2489 = vld [vmem:[%s2461 + $0x140] sm:$0xff]
      %v2490 = vld [vmem:[%s2461 + $0x150] sm:$0xff]
      %v2491 = vld [vmem:[%s2461 + $0x158] sm:$0xff]
      %v2492 = vld [vmem:[%s2461 + $0x168] sm:$0xff]
      %v2493 = vld [vmem:[%s2461 + $0x170] sm:$0xff]
      %v2494 = vld [vmem:[%s2461 + $0x1] sm:$0xff]
      %v2495 = vld [vmem:[%s2461 + $0x9] sm:$0xff]
      %v2496 = vld [vmem:[%s2461 + $0x19] sm:$0xff]
      %v2497 = vld [vmem:[%s2461 + $0x21] sm:$0xff]
      %v2498 = vld [vmem:[%s2461 + $0x31] sm:$0xff]
      %v2499 = vld [vmem:[%s2461 + $0x39] sm:$0xff]
      %v2500 = vld [vmem:[%s2461 + $0x49] sm:$0xff]
      %v2501 = vld [vmem:[%s2461 + $0x51] sm:$0xff]
      %v2502 = vld [vmem:[%s2461 + $0x61] sm:$0xff]
      %v2503 = vld [vmem:[%s2461 + $0x69] sm:$0xff]
      %v2504 = vld [vmem:[%s2461 + $0x79] sm:$0xff]
      %v2505 = vld [vmem:[%s2461 + $0x81] sm:$0xff]
      %v2506 = vld [vmem:[%s2461 + $0x91] sm:$0xff]
      %v2507 = vld [vmem:[%s2461 + $0x99] sm:$0xff]
      %v2508 = vld [vmem:[%s2461 + $0xa9] sm:$0xff]
      %v2509 = vld [vmem:[%s2461 + $0xb1] sm:$0xff]
      %v2510 = vld [vmem:[%s2461 + $0xc1] sm:$0xff]
      %v2511 = vld [vmem:[%s2461 + $0xc9] sm:$0xff]
      %v2512 = vld [vmem:[%s2461 + $0xd9] sm:$0xff]
      %v2513 = vld [vmem:[%s2461 + $0xe1] sm:$0xff]
      %v2514 = vld [vmem:[%s2461 + $0xf1] sm:$0xff]
      %v2515 = vld [vmem:[%s2461 + $0xf9] sm:$0xff]
      %v2516 = vld [vmem:[%s2461 + $0x109] sm:$0xff]
      %v2517 = vld [vmem:[%s2461 + $0x111] sm:$0xff]
      %v2518 = vld [vmem:[%s2461 + $0x121] sm:$0xff]
      %v2519 = vld [vmem:[%s2461 + $0x129] sm:$0xff]
      %v2520 = vld [vmem:[%s2461 + $0x139] sm:$0xff]
      %v2521 = vld [vmem:[%s2461 + $0x141] sm:$0xff]
      %v2522 = vld [vmem:[%s2461 + $0x151] sm:$0xff]
      %v2523 = vld [vmem:[%s2461 + $0x159] sm:$0xff]
      %v2524 = vld [vmem:[%s2461 + $0x169] sm:$0xff]
      %v2525 = vld [vmem:[%s2461 + $0x171] sm:$0xff]
      %v2526 = vld [vmem:[%s2461 + $0x2] sm:$0xff]
      %v2527 = vld [vmem:[%s2461 + $0xa] sm:$0xff]
      %v2528 = vld [vmem:[%s2461 + $0x1a] sm:$0xff]
      %v2529 = vld [vmem:[%s2461 + $0x22] sm:$0xff]
      %v2530 = vld [vmem:[%s2461 + $0x32] sm:$0xff]
      %v2531 = vld [vmem:[%s2461 + $0x3a] sm:$0xff]
      %v2532 = vld [vmem:[%s2461 + $0x4a] sm:$0xff]
      %v2533 = vld [vmem:[%s2461 + $0x52] sm:$0xff]
      %v2534 = vld [vmem:[%s2461 + $0x62] sm:$0xff]
      %v2535 = vld [vmem:[%s2461 + $0x6a] sm:$0xff]
      %v2536 = vld [vmem:[%s2461 + $0x7a] sm:$0xff]
      %v2537 = vld [vmem:[%s2461 + $0x82] sm:$0xff]
      %v2538 = vld [vmem:[%s2461 + $0x92] sm:$0xff]
      %v2539 = vld [vmem:[%s2461 + $0x9a] sm:$0xff]
      %v2540 = vld [vmem:[%s2461 + $0xaa] sm:$0xff]
      %v2541 = vld [vmem:[%s2461 + $0xb2] sm:$0xff]
      %v2542 = vld [vmem:[%s2461 + $0xc2] sm:$0xff]
      %v2543 = vld [vmem:[%s2461 + $0xca] sm:$0xff]
      %v2544 = vld [vmem:[%s2461 + $0xda] sm:$0xff]
      %v2545 = vld [vmem:[%s2461 + $0xe2] sm:$0xff]
      %v2546 = vld [vmem:[%s2461 + $0xf2] sm:$0xff]
      %v2547 = vld [vmem:[%s2461 + $0xfa] sm:$0xff]
      %v2548 = vld [vmem:[%s2461 + $0x10a] sm:$0xff]
      %v2549 = vld [vmem:[%s2461 + $0x112] sm:$0xff]
      %v2550 = vld [vmem:[%s2461 + $0x122] sm:$0xff]
      %v2551 = vld [vmem:[%s2461 + $0x12a] sm:$0xff]
      %v2552 = vld [vmem:[%s2461 + $0x13a] sm:$0xff]
      %v2553 = vld [vmem:[%s2461 + $0x142] sm:$0xff]
      %v2554 = vld [vmem:[%s2461 + $0x152] sm:$0xff]
      %v2555 = vld [vmem:[%s2461 + $0x15a] sm:$0xff]
      %v2556 = vld [vmem:[%s2461 + $0x16a] sm:$0xff]
      %v2557 = vld [vmem:[%s2461 + $0x172] sm:$0xff]
      %2590 = vrot.lane.b32.xlu0 %v2301, 32
      %v2591 = vpop.permute.xlu0 %2590
      %2592 = vrot.lane.b32.xlu0 %v2302, 32
      %v2593 = vpop.permute.xlu0 %2592
      %2594 = vrot.lane.b32.xlu0 %v2303, 32
      %v2595 = vpop.permute.xlu0 %2594
      %2596 = vrot.lane.b32.xlu0 %v2304, 32
      %v2597 = vpop.permute.xlu0 %2596
      %2598 = vrot.lane.b32.xlu0 %v2305, 32
      %v2599 = vpop.permute.xlu0 %2598
      %2600 = vrot.lane.b32.xlu0 %v2306, 32
      %v2601 = vpop.permute.xlu0 %2600
      %2602 = vrot.lane.b32.xlu0 %v2307, 32
      %v2603 = vpop.permute.xlu0 %2602
      %2604 = vrot.lane.b32.xlu0 %v2308, 32
      %v2605 = vpop.permute.xlu0 %2604
      %2606 = vrot.lane.b32.xlu0 %v2309, 32
      %v2607 = vpop.permute.xlu0 %2606
      %2608 = vrot.lane.b32.xlu0 %v2310, 32
      %v2609 = vpop.permute.xlu0 %2608
      %2610 = vrot.lane.b32.xlu0 %v2311, 32
      %v2611 = vpop.permute.xlu0 %2610
      %2612 = vrot.lane.b32.xlu0 %v2312, 32
      %v2613 = vpop.permute.xlu0 %2612
      %2614 = vrot.lane.b32.xlu0 %v2313, 32
      %v2615 = vpop.permute.xlu0 %2614
      %2616 = vrot.lane.b32.xlu0 %v2314, 32
      %v2617 = vpop.permute.xlu0 %2616
      %2618 = vrot.lane.b32.xlu0 %v2315, 32
      %v2619 = vpop.permute.xlu0 %2618
      %2620 = vrot.lane.b32.xlu0 %v2316, 32
      %v2621 = vpop.permute.xlu0 %2620
      %2622 = vrot.lane.b32.xlu0 %v2317, 32
      %v2623 = vpop.permute.xlu0 %2622
      %2624 = vrot.lane.b32.xlu0 %v2318, 32
      %v2625 = vpop.permute.xlu0 %2624
      %2626 = vrot.lane.b32.xlu0 %v2319, 32
      %v2627 = vpop.permute.xlu0 %2626
      %2628 = vrot.lane.b32.xlu0 %v2320, 32
      %v2629 = vpop.permute.xlu0 %2628
      %2630 = vrot.lane.b32.xlu0 %v2321, 32
      %v2631 = vpop.permute.xlu0 %2630
      %2632 = vrot.lane.b32.xlu0 %v2322, 32
      %v2633 = vpop.permute.xlu0 %2632
      %2634 = vrot.lane.b32.xlu0 %v2323, 32
      %v2635 = vpop.permute.xlu0 %2634
      %2636 = vrot.lane.b32.xlu0 %v2324, 32
      %v2637 = vpop.permute.xlu0 %2636
      %2638 = vrot.lane.b32.xlu0 %v2325, 32
      %v2639 = vpop.permute.xlu0 %2638
      %2640 = vrot.lane.b32.xlu0 %v2326, 32
      %v2641 = vpop.permute.xlu0 %2640
      %2642 = vrot.lane.b32.xlu0 %v2327, 32
      %v2643 = vpop.permute.xlu0 %2642
      %2644 = vrot.lane.b32.xlu0 %v2328, 32
      %v2645 = vpop.permute.xlu0 %2644
      %2646 = vrot.lane.b32.xlu0 %v2329, 32
      %v2647 = vpop.permute.xlu0 %2646
      %2648 = vrot.lane.b32.xlu0 %v2330, 32
      %v2649 = vpop.permute.xlu0 %2648
      %2650 = vrot.lane.b32.xlu0 %v2331, 32
      %v2651 = vpop.permute.xlu0 %2650
      %2652 = vrot.lane.b32.xlu0 %v2332, 32
      %v2653 = vpop.permute.xlu0 %2652
      %2718 = vrot.lane.b32.xlu0 %v2333, 64
      %v2719 = vpop.permute.xlu0 %2718
      %2720 = vrot.lane.b32.xlu0 %v2334, 64
      %v2721 = vpop.permute.xlu0 %2720
      %2722 = vrot.lane.b32.xlu0 %v2335, 64
      %v2723 = vpop.permute.xlu0 %2722
      %2724 = vrot.lane.b32.xlu0 %v2336, 64
      %v2725 = vpop.permute.xlu0 %2724
      %2726 = vrot.lane.b32.xlu0 %v2337, 64
      %v2727 = vpop.permute.xlu0 %2726
      %2728 = vrot.lane.b32.xlu0 %v2338, 64
      %v2729 = vpop.permute.xlu0 %2728
      %2730 = vrot.lane.b32.xlu0 %v2339, 64
      %v2731 = vpop.permute.xlu0 %2730
      %2732 = vrot.lane.b32.xlu0 %v2340, 64
      %v2733 = vpop.permute.xlu0 %2732
      %2734 = vrot.lane.b32.xlu0 %v2341, 64
      %v2735 = vpop.permute.xlu0 %2734
      %2736 = vrot.lane.b32.xlu0 %v2342, 64
      %v2737 = vpop.permute.xlu0 %2736
      %2738 = vrot.lane.b32.xlu0 %v2343, 64
      %v2739 = vpop.permute.xlu0 %2738
      %2740 = vrot.lane.b32.xlu0 %v2344, 64
      %v2741 = vpop.permute.xlu0 %2740
      %2742 = vrot.lane.b32.xlu0 %v2345, 64
      %v2743 = vpop.permute.xlu0 %2742
      %2744 = vrot.lane.b32.xlu0 %v2346, 64
      %v2745 = vpop.permute.xlu0 %2744
      %2746 = vrot.lane.b32.xlu0 %v2347, 64
      %v2747 = vpop.permute.xlu0 %2746
      %2748 = vrot.lane.b32.xlu0 %v2348, 64
      %v2749 = vpop.permute.xlu0 %2748
      %2750 = vrot.lane.b32.xlu0 %v2349, 64
      %v2751 = vpop.permute.xlu0 %2750
      %2752 = vrot.lane.b32.xlu0 %v2350, 64
      %v2753 = vpop.permute.xlu0 %2752
      %2754 = vrot.lane.b32.xlu0 %v2351, 64
      %v2755 = vpop.permute.xlu0 %2754
      %2756 = vrot.lane.b32.xlu0 %v2352, 64
      %v2757 = vpop.permute.xlu0 %2756
      %2758 = vrot.lane.b32.xlu0 %v2353, 64
      %v2759 = vpop.permute.xlu0 %2758
      %2760 = vrot.lane.b32.xlu0 %v2354, 64
      %v2761 = vpop.permute.xlu0 %2760
      %2762 = vrot.lane.b32.xlu0 %v2355, 64
      %v2763 = vpop.permute.xlu0 %2762
      %2764 = vrot.lane.b32.xlu0 %v2356, 64
      %v2765 = vpop.permute.xlu0 %2764
      %2766 = vrot.lane.b32.xlu0 %v2357, 64
      %v2767 = vpop.permute.xlu0 %2766
      %2768 = vrot.lane.b32.xlu0 %v2358, 64
      %v2769 = vpop.permute.xlu0 %2768
      %2770 = vrot.lane.b32.xlu0 %v2359, 64
      %v2771 = vpop.permute.xlu0 %2770
      %2772 = vrot.lane.b32.xlu0 %v2360, 64
      %v2773 = vpop.permute.xlu0 %2772
      %2774 = vrot.lane.b32.xlu0 %v2361, 64
      %v2775 = vpop.permute.xlu0 %2774
      %2776 = vrot.lane.b32.xlu0 %v2362, 64
      %v2777 = vpop.permute.xlu0 %2776
      %2778 = vrot.lane.b32.xlu0 %v2363, 64
      %v2779 = vpop.permute.xlu0 %2778
      %2780 = vrot.lane.b32.xlu0 %v2364, 64
      %v2781 = vpop.permute.xlu0 %2780
      %2846 = vrot.lane.b32.xlu0 %v2365, 96
      %v2847 = vpop.permute.xlu0 %2846
      %2848 = vrot.lane.b32.xlu0 %v2366, 96
      %v2849 = vpop.permute.xlu0 %2848
      %2850 = vrot.lane.b32.xlu0 %v2367, 96
      %v2851 = vpop.permute.xlu0 %2850
      %2852 = vrot.lane.b32.xlu0 %v2368, 96
      %v2853 = vpop.permute.xlu0 %2852
      %2854 = vrot.lane.b32.xlu0 %v2369, 96
      %v2855 = vpop.permute.xlu0 %2854
      %2856 = vrot.lane.b32.xlu0 %v2370, 96
      %v2857 = vpop.permute.xlu0 %2856
      %2858 = vrot.lane.b32.xlu0 %v2371, 96
      %v2859 = vpop.permute.xlu0 %2858
      %2860 = vrot.lane.b32.xlu0 %v2372, 96
      %v2861 = vpop.permute.xlu0 %2860
      %2862 = vrot.lane.b32.xlu0 %v2373, 96
      %v2863 = vpop.permute.xlu0 %2862
      %2864 = vrot.lane.b32.xlu0 %v2374, 96
      %v2865 = vpop.permute.xlu0 %2864
      %2866 = vrot.lane.b32.xlu0 %v2375, 96
      %v2867 = vpop.permute.xlu0 %2866
      %2868 = vrot.lane.b32.xlu0 %v2376, 96
      %v2869 = vpop.permute.xlu0 %2868
      %2870 = vrot.lane.b32.xlu0 %v2377, 96
      %v2871 = vpop.permute.xlu0 %2870
      %2872 = vrot.lane.b32.xlu0 %v2378, 96
      %v2873 = vpop.permute.xlu0 %2872
      %2874 = vrot.lane.b32.xlu0 %v2379, 96
      %v2875 = vpop.permute.xlu0 %2874
      %2876 = vrot.lane.b32.xlu0 %v2380, 96
      %v2877 = vpop.permute.xlu0 %2876
      %2878 = vrot.lane.b32.xlu0 %v2381, 96
      %v2879 = vpop.permute.xlu0 %2878
      %2880 = vrot.lane.b32.xlu0 %v2382, 96
      %v2881 = vpop.permute.xlu0 %2880
      %2882 = vrot.lane.b32.xlu0 %v2383, 96
      %v2883 = vpop.permute.xlu0 %2882
      %2884 = vrot.lane.b32.xlu0 %v2384, 96
      %v2885 = vpop.permute.xlu0 %2884
      %2886 = vrot.lane.b32.xlu0 %v2385, 96
      %v2887 = vpop.permute.xlu0 %2886
      %2888 = vrot.lane.b32.xlu0 %v2386, 96
      %v2889 = vpop.permute.xlu0 %2888
      %2890 = vrot.lane.b32.xlu0 %v2387, 96
      %v2891 = vpop.permute.xlu0 %2890
      %2892 = vrot.lane.b32.xlu0 %v2388, 96
      %v2893 = vpop.permute.xlu0 %2892
      %2894 = vrot.lane.b32.xlu0 %v2389, 96
      %v2895 = vpop.permute.xlu0 %2894
      %2896 = vrot.lane.b32.xlu0 %v2390, 96
      %v2897 = vpop.permute.xlu0 %2896
      %2898 = vrot.lane.b32.xlu0 %v2391, 96
      %v2899 = vpop.permute.xlu0 %2898
      %2900 = vrot.lane.b32.xlu0 %v2392, 96
      %v2901 = vpop.permute.xlu0 %2900
      %2902 = vrot.lane.b32.xlu0 %v2393, 96
      %v2903 = vpop.permute.xlu0 %2902
      %2904 = vrot.lane.b32.xlu0 %v2394, 96
      %v2905 = vpop.permute.xlu0 %2904
      %2906 = vrot.lane.b32.xlu0 %v2395, 96
      %v2907 = vpop.permute.xlu0 %2906
      %2908 = vrot.lane.b32.xlu0 %v2396, 96
      %v2909 = vpop.permute.xlu0 %2908
      %2974 = vrot.lane.b32.xlu0 %v2429, 32
      %v2975 = vpop.permute.xlu0 %2974
      %2976 = vrot.lane.b32.xlu0 %v2430, 32
      %v2977 = vpop.permute.xlu0 %2976
      %2978 = vrot.lane.b32.xlu0 %v2431, 32
      %v2979 = vpop.permute.xlu0 %2978
      %2980 = vrot.lane.b32.xlu0 %v2432, 32
      %v2981 = vpop.permute.xlu0 %2980
      %2982 = vrot.lane.b32.xlu0 %v2433, 32
      %v2983 = vpop.permute.xlu0 %2982
      %2984 = vrot.lane.b32.xlu0 %v2434, 32
      %v2985 = vpop.permute.xlu0 %2984
      %2986 = vrot.lane.b32.xlu0 %v2435, 32
      %v2987 = vpop.permute.xlu0 %2986
      %2988 = vrot.lane.b32.xlu0 %v2436, 32
      %v2989 = vpop.permute.xlu0 %2988
      %2990 = vrot.lane.b32.xlu0 %v2437, 32
      %v2991 = vpop.permute.xlu0 %2990
      %2992 = vrot.lane.b32.xlu0 %v2438, 32
      %v2993 = vpop.permute.xlu0 %2992
      %2994 = vrot.lane.b32.xlu0 %v2439, 32
      %v2995 = vpop.permute.xlu0 %2994
      %2996 = vrot.lane.b32.xlu0 %v2440, 32
      %v2997 = vpop.permute.xlu0 %2996
      %2998 = vrot.lane.b32.xlu0 %v2441, 32
      %v2999 = vpop.permute.xlu0 %2998
      %3000 = vrot.lane.b32.xlu0 %v2442, 32
      %v3001 = vpop.permute.xlu0 %3000
      %3002 = vrot.lane.b32.xlu0 %v2443, 32
      %v3003 = vpop.permute.xlu0 %3002
      %3004 = vrot.lane.b32.xlu0 %v2444, 32
      %v3005 = vpop.permute.xlu0 %3004
      %3006 = vrot.lane.b32.xlu0 %v2445, 32
      %v3007 = vpop.permute.xlu0 %3006
      %3008 = vrot.lane.b32.xlu0 %v2446, 32
      %v3009 = vpop.permute.xlu0 %3008
      %3010 = vrot.lane.b32.xlu0 %v2447, 32
      %v3011 = vpop.permute.xlu0 %3010
      %3012 = vrot.lane.b32.xlu0 %v2448, 32
      %v3013 = vpop.permute.xlu0 %3012
      %3014 = vrot.lane.b32.xlu0 %v2449, 32
      %v3015 = vpop.permute.xlu0 %3014
      %3016 = vrot.lane.b32.xlu0 %v2450, 32
      %v3017 = vpop.permute.xlu0 %3016
      %3018 = vrot.lane.b32.xlu0 %v2451, 32
      %v3019 = vpop.permute.xlu0 %3018
      %3020 = vrot.lane.b32.xlu0 %v2452, 32
      %v3021 = vpop.permute.xlu0 %3020
      %3022 = vrot.lane.b32.xlu0 %v2453, 32
      %v3023 = vpop.permute.xlu0 %3022
      %3024 = vrot.lane.b32.xlu0 %v2454, 32
      %v3025 = vpop.permute.xlu0 %3024
      %3026 = vrot.lane.b32.xlu0 %v2455, 32
      %v3027 = vpop.permute.xlu0 %3026
      %3028 = vrot.lane.b32.xlu0 %v2456, 32
      %v3029 = vpop.permute.xlu0 %3028
      %3030 = vrot.lane.b32.xlu0 %v2457, 32
      %v3031 = vpop.permute.xlu0 %3030
      %3032 = vrot.lane.b32.xlu0 %v2458, 32
      %v3033 = vpop.permute.xlu0 %3032
      %3034 = vrot.lane.b32.xlu0 %v2459, 32
      %v3035 = vpop.permute.xlu0 %3034
      %3036 = vrot.lane.b32.xlu0 %v2460, 32
      %v3037 = vpop.permute.xlu0 %3036
      %3102 = vrot.lane.b32.xlu0 %v2462, 64
      %v3103 = vpop.permute.xlu0 %3102
      %3104 = vrot.lane.b32.xlu0 %v2463, 64
      %v3105 = vpop.permute.xlu0 %3104
      %3106 = vrot.lane.b32.xlu0 %v2464, 64
      %v3107 = vpop.permute.xlu0 %3106
      %3108 = vrot.lane.b32.xlu0 %v2465, 64
      %v3109 = vpop.permute.xlu0 %3108
      %3110 = vrot.lane.b32.xlu0 %v2466, 64
      %v3111 = vpop.permute.xlu0 %3110
      %3112 = vrot.lane.b32.xlu0 %v2467, 64
      %v3113 = vpop.permute.xlu0 %3112
      %3114 = vrot.lane.b32.xlu0 %v2468, 64
      %v3115 = vpop.permute.xlu0 %3114
      %3116 = vrot.lane.b32.xlu0 %v2469, 64
      %v3117 = vpop.permute.xlu0 %3116
      %3118 = vrot.lane.b32.xlu0 %v2470, 64
      %v3119 = vpop.permute.xlu0 %3118
      %3120 = vrot.lane.b32.xlu0 %v2471, 64
      %v3121 = vpop.permute.xlu0 %3120
      %3122 = vrot.lane.b32.xlu0 %v2472, 64
      %v3123 = vpop.permute.xlu0 %3122
      %3124 = vrot.lane.b32.xlu0 %v2473, 64
      %v3125 = vpop.permute.xlu0 %3124
      %3126 = vrot.lane.b32.xlu0 %v2474, 64
      %v3127 = vpop.permute.xlu0 %3126
      %3128 = vrot.lane.b32.xlu0 %v2475, 64
      %v3129 = vpop.permute.xlu0 %3128
      %3130 = vrot.lane.b32.xlu0 %v2476, 64
      %v3131 = vpop.permute.xlu0 %3130
      %3132 = vrot.lane.b32.xlu0 %v2477, 64
      %v3133 = vpop.permute.xlu0 %3132
      %3134 = vrot.lane.b32.xlu0 %v2478, 64
      %v3135 = vpop.permute.xlu0 %3134
      %3136 = vrot.lane.b32.xlu0 %v2479, 64
      %v3137 = vpop.permute.xlu0 %3136
      %3138 = vrot.lane.b32.xlu0 %v2480, 64
      %v3139 = vpop.permute.xlu0 %3138
      %3140 = vrot.lane.b32.xlu0 %v2481, 64
      %v3141 = vpop.permute.xlu0 %3140
      %3142 = vrot.lane.b32.xlu0 %v2482, 64
      %v3143 = vpop.permute.xlu0 %3142
      %3144 = vrot.lane.b32.xlu0 %v2483, 64
      %v3145 = vpop.permute.xlu0 %3144
      %3146 = vrot.lane.b32.xlu0 %v2484, 64
      %v3147 = vpop.permute.xlu0 %3146
      %3148 = vrot.lane.b32.xlu0 %v2485, 64
      %v3149 = vpop.permute.xlu0 %3148
      %3150 = vrot.lane.b32.xlu0 %v2486, 64
      %v3151 = vpop.permute.xlu0 %3150
      %3152 = vrot.lane.b32.xlu0 %v2487, 64
      %v3153 = vpop.permute.xlu0 %3152
      %3154 = vrot.lane.b32.xlu0 %v2488, 64
      %v3155 = vpop.permute.xlu0 %3154
      %3156 = vrot.lane.b32.xlu0 %v2489, 64
      %v3157 = vpop.permute.xlu0 %3156
      %3158 = vrot.lane.b32.xlu0 %v2490, 64
      %v3159 = vpop.permute.xlu0 %3158
      %3160 = vrot.lane.b32.xlu0 %v2491, 64
      %v3161 = vpop.permute.xlu0 %3160
      %3162 = vrot.lane.b32.xlu0 %v2492, 64
      %v3163 = vpop.permute.xlu0 %3162
      %3164 = vrot.lane.b32.xlu0 %v2493, 64
      %v3165 = vpop.permute.xlu0 %3164
      %3230 = vrot.lane.b32.xlu0 %v2494, 96
      %v3231 = vpop.permute.xlu0 %3230
      %3232 = vrot.lane.b32.xlu0 %v2495, 96
      %v3233 = vpop.permute.xlu0 %3232
      %3234 = vrot.lane.b32.xlu0 %v2496, 96
      %v3235 = vpop.permute.xlu0 %3234
      %3236 = vrot.lane.b32.xlu0 %v2497, 96
      %v3237 = vpop.permute.xlu0 %3236
      %3238 = vrot.lane.b32.xlu0 %v2498, 96
      %v3239 = vpop.permute.xlu0 %3238
      %3240 = vrot.lane.b32.xlu0 %v2499, 96
      %v3241 = vpop.permute.xlu0 %3240
      %3242 = vrot.lane.b32.xlu0 %v2500, 96
      %v3243 = vpop.permute.xlu0 %3242
      %3244 = vrot.lane.b32.xlu0 %v2501, 96
      %v3245 = vpop.permute.xlu0 %3244
      %3246 = vrot.lane.b32.xlu0 %v2502, 96
      %v3247 = vpop.permute.xlu0 %3246
      %3248 = vrot.lane.b32.xlu0 %v2503, 96
      %v3249 = vpop.permute.xlu0 %3248
      %3250 = vrot.lane.b32.xlu0 %v2504, 96
      %v3251 = vpop.permute.xlu0 %3250
      %3252 = vrot.lane.b32.xlu0 %v2505, 96
      %v3253 = vpop.permute.xlu0 %3252
      %3254 = vrot.lane.b32.xlu0 %v2506, 96
      %v3255 = vpop.permute.xlu0 %3254
      %3256 = vrot.lane.b32.xlu0 %v2507, 96
      %v3257 = vpop.permute.xlu0 %3256
      %3258 = vrot.lane.b32.xlu0 %v2508, 96
      %v3259 = vpop.permute.xlu0 %3258
      %3260 = vrot.lane.b32.xlu0 %v2509, 96
      %v3261 = vpop.permute.xlu0 %3260
      %3262 = vrot.lane.b32.xlu0 %v2510, 96
      %v3263 = vpop.permute.xlu0 %3262
      %3264 = vrot.lane.b32.xlu0 %v2511, 96
      %v3265 = vpop.permute.xlu0 %3264
      %3266 = vrot.lane.b32.xlu0 %v2512, 96
      %v3267 = vpop.permute.xlu0 %3266
      %3268 = vrot.lane.b32.xlu0 %v2513, 96
      %v3269 = vpop.permute.xlu0 %3268
      %3270 = vrot.lane.b32.xlu0 %v2514, 96
      %v3271 = vpop.permute.xlu0 %3270
      %3272 = vrot.lane.b32.xlu0 %v2515, 96
      %v3273 = vpop.permute.xlu0 %3272
      %3274 = vrot.lane.b32.xlu0 %v2516, 96
      %v3275 = vpop.permute.xlu0 %3274
      %3276 = vrot.lane.b32.xlu0 %v2517, 96
      %v3277 = vpop.permute.xlu0 %3276
      %3278 = vrot.lane.b32.xlu0 %v2518, 96
      %v3279 = vpop.permute.xlu0 %3278
      %3280 = vrot.lane.b32.xlu0 %v2519, 96
      %v3281 = vpop.permute.xlu0 %3280
      %3282 = vrot.lane.b32.xlu0 %v2520, 96
      %v3283 = vpop.permute.xlu0 %3282
      %3284 = vrot.lane.b32.xlu0 %v2521, 96
      %v3285 = vpop.permute.xlu0 %3284
      %3286 = vrot.lane.b32.xlu0 %v2522, 96
      %v3287 = vpop.permute.xlu0 %3286
      %3288 = vrot.lane.b32.xlu0 %v2523, 96
      %v3289 = vpop.permute.xlu0 %3288
      %3290 = vrot.lane.b32.xlu0 %v2524, 96
      %v3291 = vpop.permute.xlu0 %3290
      %3292 = vrot.lane.b32.xlu0 %v2525, 96
      %v3293 = vpop.permute.xlu0 %3292
      %v3326 = vsel %vm334, %v2269, %v2591
      %v3327 = vsel %vm334, %v2270, %v2593
      %v3328 = vsel %vm334, %v2271, %v2595
      %v3329 = vsel %vm334, %v2272, %v2597
      %v3330 = vsel %vm334, %v2273, %v2599
      %v3331 = vsel %vm334, %v2274, %v2601
      %v3332 = vsel %vm334, %v2275, %v2603
      %v3333 = vsel %vm334, %v2276, %v2605
      %v3334 = vsel %vm334, %v2277, %v2607
      %v3335 = vsel %vm334, %v2278, %v2609
      %v3336 = vsel %vm334, %v2279, %v2611
      %v3337 = vsel %vm334, %v2280, %v2613
      %v3338 = vsel %vm334, %v2281, %v2615
      %v3339 = vsel %vm334, %v2282, %v2617
      %v3340 = vsel %vm334, %v2283, %v2619
      %v3341 = vsel %vm334, %v2284, %v2621
      %v3342 = vsel %vm334, %v2285, %v2623
      %v3343 = vsel %vm334, %v2286, %v2625
      %v3344 = vsel %vm334, %v2287, %v2627
      %v3345 = vsel %vm334, %v2288, %v2629
      %v3346 = vsel %vm334, %v2289, %v2631
      %v3347 = vsel %vm334, %v2290, %v2633
      %v3348 = vsel %vm334, %v2291, %v2635
      %v3349 = vsel %vm334, %v2292, %v2637
      %v3350 = vsel %vm334, %v2293, %v2639
      %v3351 = vsel %vm334, %v2294, %v2641
      %v3352 = vsel %vm334, %v2295, %v2643
      %v3353 = vsel %vm334, %v2296, %v2645
      %v3354 = vsel %vm334, %v2297, %v2647
      %v3355 = vsel %vm334, %v2298, %v2649
      %v3356 = vsel %vm334, %v2299, %v2651
      %v3357 = vsel %vm334, %v2300, %v2653
      %v3358 = vsel %vm390, %v3326, %v2719
      %v3359 = vsel %vm390, %v3327, %v2721
      %v3360 = vsel %vm390, %v3328, %v2723
      %v3361 = vsel %vm390, %v3329, %v2725
      %v3362 = vsel %vm390, %v3330, %v2727
      %v3363 = vsel %vm390, %v3331, %v2729
      %v3364 = vsel %vm390, %v3332, %v2731
      %v3365 = vsel %vm390, %v3333, %v2733
      %v3366 = vsel %vm390, %v3334, %v2735
      %v3367 = vsel %vm390, %v3335, %v2737
      %v3368 = vsel %vm390, %v3336, %v2739
      %v3369 = vsel %vm390, %v3337, %v2741
      %v3370 = vsel %vm390, %v3338, %v2743
      %v3371 = vsel %vm390, %v3339, %v2745
      %v3372 = vsel %vm390, %v3340, %v2747
      %v3373 = vsel %vm390, %v3341, %v2749
      %v3374 = vsel %vm390, %v3342, %v2751
      %v3375 = vsel %vm390, %v3343, %v2753
      %v3376 = vsel %vm390, %v3344, %v2755
      %v3377 = vsel %vm390, %v3345, %v2757
      %v3378 = vsel %vm390, %v3346, %v2759
      %v3379 = vsel %vm390, %v3347, %v2761
      %v3380 = vsel %vm390, %v3348, %v2763
      %v3381 = vsel %vm390, %v3349, %v2765
      %v3382 = vsel %vm390, %v3350, %v2767
      %v3383 = vsel %vm390, %v3351, %v2769
      %v3384 = vsel %vm390, %v3352, %v2771
      %v3385 = vsel %vm390, %v3353, %v2773
      %v3386 = vsel %vm390, %v3354, %v2775
      %v3387 = vsel %vm390, %v3355, %v2777
      %v3388 = vsel %vm390, %v3356, %v2779
      %v3389 = vsel %vm390, %v3357, %v2781
      %vm3390 = vcmask 785408
      %v3391 = vsel %vm3390, %v3358, %v2847
      %v3392 = vsel %vm3390, %v3359, %v2849
      %v3393 = vsel %vm3390, %v3360, %v2851
      %v3394 = vsel %vm3390, %v3361, %v2853
      %v3395 = vsel %vm3390, %v3362, %v2855
      %v3396 = vsel %vm3390, %v3363, %v2857
      %v3397 = vsel %vm3390, %v3364, %v2859
      %v3398 = vsel %vm3390, %v3365, %v2861
      %v3399 = vsel %vm3390, %v3366, %v2863
      %v3400 = vsel %vm3390, %v3367, %v2865
      %v3401 = vsel %vm3390, %v3368, %v2867
      %v3402 = vsel %vm3390, %v3369, %v2869
      %v3403 = vsel %vm3390, %v3370, %v2871
      %v3404 = vsel %vm3390, %v3371, %v2873
      %v3405 = vsel %vm3390, %v3372, %v2875
      %v3406 = vsel %vm3390, %v3373, %v2877
      %v3407 = vsel %vm3390, %v3374, %v2879
      %v3408 = vsel %vm3390, %v3375, %v2881
      %v3409 = vsel %vm3390, %v3376, %v2883
      %v3410 = vsel %vm3390, %v3377, %v2885
      %v3411 = vsel %vm3390, %v3378, %v2887
      %v3412 = vsel %vm3390, %v3379, %v2889
      %v3413 = vsel %vm3390, %v3380, %v2891
      %v3414 = vsel %vm3390, %v3381, %v2893
      %v3415 = vsel %vm3390, %v3382, %v2895
      %v3416 = vsel %vm3390, %v3383, %v2897
      %v3417 = vsel %vm3390, %v3384, %v2899
      %v3418 = vsel %vm3390, %v3385, %v2901
      %v3419 = vsel %vm3390, %v3386, %v2903
      %v3420 = vsel %vm3390, %v3387, %v2905
      %v3421 = vsel %vm3390, %v3388, %v2907
      %v3422 = vsel %vm3390, %v3389, %v2909
      %v3423 = vsel %vm334, %v2397, %v2975
      %v3424 = vsel %vm334, %v2398, %v2977
      %v3425 = vsel %vm334, %v2399, %v2979
      %v3426 = vsel %vm334, %v2400, %v2981
      %v3427 = vsel %vm334, %v2401, %v2983
      %v3428 = vsel %vm334, %v2402, %v2985
      %v3429 = vsel %vm334, %v2403, %v2987
      %v3430 = vsel %vm334, %v2404, %v2989
      %v3431 = vsel %vm334, %v2405, %v2991
      %v3432 = vsel %vm334, %v2406, %v2993
      %v3433 = vsel %vm334, %v2407, %v2995
      %v3434 = vsel %vm334, %v2408, %v2997
      %v3435 = vsel %vm334, %v2409, %v2999
      %v3436 = vsel %vm334, %v2410, %v3001
      %v3437 = vsel %vm334, %v2411, %v3003
      %v3438 = vsel %vm334, %v2412, %v3005
      %v3439 = vsel %vm334, %v2413, %v3007
      %v3440 = vsel %vm334, %v2414, %v3009
      %v3441 = vsel %vm334, %v2415, %v3011
      %v3442 = vsel %vm334, %v2416, %v3013
      %v3443 = vsel %vm334, %v2417, %v3015
      %v3444 = vsel %vm334, %v2418, %v3017
      %v3445 = vsel %vm334, %v2419, %v3019
      %v3446 = vsel %vm334, %v2420, %v3021
      %v3447 = vsel %vm334, %v2421, %v3023
      %v3448 = vsel %vm334, %v2422, %v3025
      %v3449 = vsel %vm334, %v2423, %v3027
      %v3450 = vsel %vm334, %v2424, %v3029
      %v3451 = vsel %vm334, %v2425, %v3031
      %v3452 = vsel %vm334, %v2426, %v3033
      %v3453 = vsel %vm334, %v2427, %v3035
      %v3454 = vsel %vm334, %v2428, %v3037
      %v3455 = vsel %vm390, %v3423, %v3103
      %v3456 = vsel %vm390, %v3424, %v3105
      %v3457 = vsel %vm390, %v3425, %v3107
      %v3458 = vsel %vm390, %v3426, %v3109
      %v3459 = vsel %vm390, %v3427, %v3111
      %v3460 = vsel %vm390, %v3428, %v3113
      %v3461 = vsel %vm390, %v3429, %v3115
      %v3462 = vsel %vm390, %v3430, %v3117
      %v3463 = vsel %vm390, %v3431, %v3119
      %v3464 = vsel %vm390, %v3432, %v3121
      %v3465 = vsel %vm390, %v3433, %v3123
      %v3466 = vsel %vm390, %v3434, %v3125
      %v3467 = vsel %vm390, %v3435, %v3127
      %v3468 = vsel %vm390, %v3436, %v3129
      %v3469 = vsel %vm390, %v3437, %v3131
      %v3470 = vsel %vm390, %v3438, %v3133
      %v3471 = vsel %vm390, %v3439, %v3135
      %v3472 = vsel %vm390, %v3440, %v3137
      %v3473 = vsel %vm390, %v3441, %v3139
      %v3474 = vsel %vm390, %v3442, %v3141
      %v3475 = vsel %vm390, %v3443, %v3143
      %v3476 = vsel %vm390, %v3444, %v3145
      %v3477 = vsel %vm390, %v3445, %v3147
      %v3478 = vsel %vm390, %v3446, %v3149
      %v3479 = vsel %vm390, %v3447, %v3151
      %v3480 = vsel %vm390, %v3448, %v3153
      %v3481 = vsel %vm390, %v3449, %v3155
      %v3482 = vsel %vm390, %v3450, %v3157
      %v3483 = vsel %vm390, %v3451, %v3159
      %v3484 = vsel %vm390, %v3452, %v3161
      %v3485 = vsel %vm390, %v3453, %v3163
      %v3486 = vsel %vm390, %v3454, %v3165
      %v3487 = vsel %vm3390, %v3455, %v3231
      %v3488 = vsel %vm3390, %v3456, %v3233
      %v3489 = vsel %vm3390, %v3457, %v3235
      %v3490 = vsel %vm3390, %v3458, %v3237
      %v3491 = vsel %vm3390, %v3459, %v3239
      %v3492 = vsel %vm3390, %v3460, %v3241
      %v3493 = vsel %vm3390, %v3461, %v3243
      %v3494 = vsel %vm3390, %v3462, %v3245
      %v3495 = vsel %vm3390, %v3463, %v3247
      %v3496 = vsel %vm3390, %v3464, %v3249
      %v3497 = vsel %vm3390, %v3465, %v3251
      %v3498 = vsel %vm3390, %v3466, %v3253
      %v3499 = vsel %vm3390, %v3467, %v3255
      %v3500 = vsel %vm3390, %v3468, %v3257
      %v3501 = vsel %vm3390, %v3469, %v3259
      %v3502 = vsel %vm3390, %v3470, %v3261
      %v3503 = vsel %vm3390, %v3471, %v3263
      %v3504 = vsel %vm3390, %v3472, %v3265
      %v3505 = vsel %vm3390, %v3473, %v3267
      %v3506 = vsel %vm3390, %v3474, %v3269
      %v3507 = vsel %vm3390, %v3475, %v3271
      %v3508 = vsel %vm3390, %v3476, %v3273
      %v3509 = vsel %vm3390, %v3477, %v3275
      %v3510 = vsel %vm3390, %v3478, %v3277
      %v3511 = vsel %vm3390, %v3479, %v3279
      %v3512 = vsel %vm3390, %v3480, %v3281
      %v3513 = vsel %vm3390, %v3481, %v3283
      %v3514 = vsel %vm3390, %v3482, %v3285
      %v3515 = vsel %vm3390, %v3483, %v3287
      %v3516 = vsel %vm3390, %v3484, %v3289
      %v3517 = vsel %vm3390, %v3485, %v3291
      %v3518 = vsel %vm3390, %v3486, %v3293
      %v3519 = vpack.c.bf16 %v3392, %v3391
      %v3520 = vpack.c.bf16 %v3488, %v3487
      %v3521 = vpack.c.bf16 %v2527, %v2526
      %v3522 = vpack.c.bf16 %v3394, %v3393
      %v3523 = vpack.c.bf16 %v3490, %v3489
      %v3524 = vpack.c.bf16 %v2529, %v2528
      %v3525 = vpack.c.bf16 %v3396, %v3395
      %v3526 = vpack.c.bf16 %v3492, %v3491
      %v3527 = vpack.c.bf16 %v2531, %v2530
      %v3528 = vpack.c.bf16 %v3398, %v3397
      %v3529 = vpack.c.bf16 %v3494, %v3493
      %v3530 = vpack.c.bf16 %v2533, %v2532
      %v3531 = vpack.c.bf16 %v3400, %v3399
      %v3532 = vpack.c.bf16 %v3496, %v3495
      %v3533 = vpack.c.bf16 %v2535, %v2534
      %v3534 = vpack.c.bf16 %v3402, %v3401
      %v3535 = vpack.c.bf16 %v3498, %v3497
      %v3536 = vpack.c.bf16 %v2537, %v2536
      %v3537 = vpack.c.bf16 %v3404, %v3403
      %v3538 = vpack.c.bf16 %v3500, %v3499
      %v3539 = vpack.c.bf16 %v2539, %v2538
      %v3540 = vpack.c.bf16 %v3406, %v3405
      %v3541 = vpack.c.bf16 %v3502, %v3501
      %v3542 = vpack.c.bf16 %v2541, %v2540
      %v3543 = vpack.c.bf16 %v3408, %v3407
      %v3544 = vpack.c.bf16 %v3504, %v3503
      %v3545 = vpack.c.bf16 %v2543, %v2542
      %v3546 = vpack.c.bf16 %v3410, %v3409
      %v3547 = vpack.c.bf16 %v3506, %v3505
      %v3548 = vpack.c.bf16 %v2545, %v2544
      %v3549 = vpack.c.bf16 %v3412, %v3411
      %v3550 = vpack.c.bf16 %v3508, %v3507
      %v3551 = vpack.c.bf16 %v2547, %v2546
      %v3552 = vpack.c.bf16 %v3414, %v3413
      %v3553 = vpack.c.bf16 %v3510, %v3509
      %v3554 = vpack.c.bf16 %v2549, %v2548
      %v3555 = vpack.c.bf16 %v3416, %v3415
      %v3556 = vpack.c.bf16 %v3512, %v3511
      %v3557 = vpack.c.bf16 %v2551, %v2550
      %v3558 = vpack.c.bf16 %v3418, %v3417
      %v3559 = vpack.c.bf16 %v3514, %v3513
      %v3560 = vpack.c.bf16 %v2553, %v2552
      %v3561 = vpack.c.bf16 %v3420, %v3419
      %v3562 = vpack.c.bf16 %v3516, %v3515
      %v3563 = vpack.c.bf16 %v2555, %v2554
      %v3564 = vpack.c.bf16 %v3422, %v3421
      %v3565 = vpack.c.bf16 %v3518, %v3517
      %v3566 = vpack.c.bf16 %v2557, %v2556
      %v3567 = vld [vmem:[%s3] sm:$0xf]
      %v3568 = vld [vmem:[%s3 + $0x4] sm:$0xf]
      %v3569 = vld [vmem:[%s3 + $0x8] sm:$0xf]
      %v3570 = vld [vmem:[%s3 + $0xc] sm:$0xf]
      %v3571 = vld [vmem:[%s3 + $0x10] sm:$0xf]
      %v3572 = vld [vmem:[%s3 + $0x14] sm:$0xf]
      %v3573 = vld [vmem:[%s3 + $0x18] sm:$0xf]
      %v3574 = vld [vmem:[%s3 + $0x1c] sm:$0xf]
      %v3575 = vld [vmem:[%s3 + $0x20] sm:$0xf]
      %v3576 = vld [vmem:[%s3 + $0x24] sm:$0xf]
      %v3577 = vld [vmem:[%s3 + $0x28] sm:$0xf]
      %v3578 = vld [vmem:[%s3 + $0x2c] sm:$0xf]
      %v3579 = vld [vmem:[%s3 + $0x30] sm:$0xf]
      %v3580 = vld [vmem:[%s3 + $0x34] sm:$0xf]
      %v3581 = vld [vmem:[%s3 + $0x38] sm:$0xf]
      %v3582 = vld [vmem:[%s3 + $0x3c] sm:$0xf]
      %v3583 = vld [vmem:[%s3 + $0x40] sm:$0xf]
      %v3584 = vld [vmem:[%s3 + $0x44] sm:$0xf]
      %v3585 = vld [vmem:[%s3 + $0x48] sm:$0xf]
      %v3586 = vld [vmem:[%s3 + $0x4c] sm:$0xf]
      %v3587 = vld [vmem:[%s3 + $0x50] sm:$0xf]
      %v3588 = vld [vmem:[%s3 + $0x54] sm:$0xf]
      %v3589 = vld [vmem:[%s3 + $0x58] sm:$0xf]
      %v3590 = vld [vmem:[%s3 + $0x5c] sm:$0xf]
      %v3591 = vld [vmem:[%s3 + $0x60] sm:$0xf]
      %v3592 = vld [vmem:[%s3 + $0x64] sm:$0xf]
      %v3593 = vld [vmem:[%s3 + $0x68] sm:$0xf]
      %v3594 = vld [vmem:[%s3 + $0x6c] sm:$0xf]
      %v3595 = vld [vmem:[%s3 + $0x70] sm:$0xf]
      %v3596 = vld [vmem:[%s3 + $0x74] sm:$0xf]
      %v3597 = vld [vmem:[%s3 + $0x78] sm:$0xf]
      %v3598 = vld [vmem:[%s3 + $0x7c] sm:$0xf]
      %v3599 = vld [vmem:[%s3 + $0x80] sm:$0xf]
      %v3600 = vld [vmem:[%s3 + $0x84] sm:$0xf]
      %v3601 = vld [vmem:[%s3 + $0x88] sm:$0xf]
      %v3602 = vld [vmem:[%s3 + $0x8c] sm:$0xf]
      %v3603 = vld [vmem:[%s4] sm:$0x1]
      %v3605 = vperm.slane %v3603, 0
      %v3643 = vunpack.c.l.b16 %v3567
      %v3644 = vunpack.c.l.b16 %v3568
      %v3645 = vunpack.c.l.b16 %v3569
      %v3646 = vunpack.c.l.b16 %v3570
      %v3647 = vunpack.c.l.b16 %v3571
      %v3648 = vunpack.c.l.b16 %v3572
      %v3649 = vunpack.c.l.b16 %v3573
      %v3650 = vunpack.c.l.b16 %v3574
      %v3651 = vunpack.c.l.b16 %v3575
      %v3652 = vunpack.c.l.b16 %v3576
      %v3653 = vunpack.c.l.b16 %v3577
      %v3654 = vunpack.c.l.b16 %v3578
      %v3655 = vunpack.c.l.b16 %v3579
      %v3656 = vunpack.c.l.b16 %v3580
      %v3657 = vunpack.c.l.b16 %v3581
      %v3658 = vunpack.c.l.b16 %v3582
      %v3659 = vunpack.c.l.b16 %v3583
      %v3660 = vunpack.c.l.b16 %v3584
      %v3661 = vunpack.c.l.b16 %v3585
      %v3662 = vunpack.c.l.b16 %v3586
      %v3663 = vunpack.c.l.b16 %v3587
      %v3664 = vunpack.c.l.b16 %v3588
      %v3665 = vunpack.c.l.b16 %v3589
      %v3666 = vunpack.c.l.b16 %v3590
      %v3667 = vunpack.c.l.b16 %v3591
      %v3668 = vunpack.c.l.b16 %v3592
      %v3669 = vunpack.c.l.b16 %v3593
      %v3670 = vunpack.c.l.b16 %v3594
      %v3671 = vunpack.c.l.b16 %v3595
      %v3672 = vunpack.c.l.b16 %v3596
      %v3673 = vunpack.c.l.b16 %v3597
      %v3674 = vunpack.c.l.b16 %v3598
      %v3675 = vunpack.c.l.b16 %v3599
      %v3676 = vunpack.c.l.b16 %v3600
      %v3677 = vunpack.c.l.b16 %v3601
      %v3678 = vunpack.c.l.b16 %v3602
      %v3679 = vpack.c.b16 %v3644, %v3643
      %v3680 = vpack.c.b16 %v3646, %v3645
      %v3681 = vpack.c.b16 %v3648, %v3647
      %v3682 = vpack.c.b16 %v3650, %v3649
      %v3683 = vpack.c.b16 %v3652, %v3651
      %v3684 = vpack.c.b16 %v3654, %v3653
      %v3685 = vpack.c.b16 %v3656, %v3655
      %v3686 = vpack.c.b16 %v3658, %v3657
      %v3687 = vpack.c.b16 %v3660, %v3659
      %v3688 = vpack.c.b16 %v3662, %v3661
      %v3689 = vpack.c.b16 %v3664, %v3663
      %v3690 = vpack.c.b16 %v3666, %v3665
      %v3691 = vpack.c.b16 %v3668, %v3667
      %v3692 = vpack.c.b16 %v3670, %v3669
      %v3693 = vpack.c.b16 %v3672, %v3671
      %v3694 = vpack.c.b16 %v3674, %v3673
      %v3695 = vpack.c.b16 %v3676, %v3675
      %v3696 = vpack.c.b16 %v3678, %v3677
      %v3716 = vsel %vm334, %v3521, 0
      %v3719 = vsel %vm334, %v3524, 0
      %v3722 = vsel %vm334, %v3527, 0
      %v3725 = vsel %vm334, %v3530, 0
      %v3728 = vsel %vm334, %v3533, 0
      %v3731 = vsel %vm334, %v3536, 0
      %v3734 = vsel %vm334, %v3539, 0
      %v3737 = vsel %vm334, %v3542, 0
      %v3740 = vsel %vm334, %v3545, 0
      %v3743 = vsel %vm334, %v3548, 0
      %v3746 = vsel %vm334, %v3551, 0
      %v3749 = vsel %vm334, %v3554, 0
      %v3752 = vsel %vm334, %v3557, 0
      %v3755 = vsel %vm334, %v3560, 0
      %v3758 = vsel %vm334, %v3563, 0
      %v3761 = vsel %vm334, %v3566, 0
      %3763 = vmatpush.bf16.msra.mxu0 %v3686
      %3764 = vmatpush.bf16.msra.mxu0 %v3685
      %3765 = vmatpush.bf16.msra.mxu0 %v3684
      %3766 = vmatpush.bf16.msra.mxu0 %v3683
      %3767 = vmatpush.bf16.msra.mxu0 %v3682
      %3768 = vmatpush.bf16.msra.mxu0 %v3681
      %3769 = vmatpush.bf16.msra.mxu0 %v3680
      %3770 = vmatpush.bf16.msra.mxu0 %v3679
      %3771 = vmatmul.bf16.gmra.mxu0 %v3519
      %v3772 = vpop.f32.mrf.mxu0
      %v3773 = vadd.f32 %v3605, %v3772
      %v3774 = vpop.f32.mrf.mxu0
      %v3775 = vadd.f32 %v3605, %v3774
      %3776 = vmatmul.bf16.gmra.mxu0 %v3522
      %v3777 = vpop.f32.mrf.mxu0
      %v3778 = vadd.f32 %v3605, %v3777
      %v3779 = vpop.f32.mrf.mxu0
      %v3780 = vadd.f32 %v3605, %v3779
      %3781 = vmatmul.bf16.gmra.mxu0 %v3525
      %v3782 = vpop.f32.mrf.mxu0
      %v3783 = vadd.f32 %v3605, %v3782
      %v3784 = vpop.f32.mrf.mxu0
      %v3785 = vadd.f32 %v3605, %v3784
      %3786 = vmatmul.bf16.gmra.mxu0 %v3528
      %v3787 = vpop.f32.mrf.mxu0
      %v3788 = vadd.f32 %v3605, %v3787
      %v3789 = vpop.f32.mrf.mxu0
      %v3790 = vadd.f32 %v3605, %v3789
      %3791 = vmatmul.bf16.gmra.mxu0 %v3531
      %v3792 = vpop.f32.mrf.mxu0
      %v3793 = vadd.f32 %v3605, %v3792
      %v3794 = vpop.f32.mrf.mxu0
      %v3795 = vadd.f32 %v3605, %v3794
      %3796 = vmatmul.bf16.gmra.mxu0 %v3534
      %v3797 = vpop.f32.mrf.mxu0
      %v3798 = vadd.f32 %v3605, %v3797
      %v3799 = vpop.f32.mrf.mxu0
      %v3800 = vadd.f32 %v3605, %v3799
      %3801 = vmatmul.bf16.gmra.mxu0 %v3537
      %v3802 = vpop.f32.mrf.mxu0
      %v3803 = vadd.f32 %v3605, %v3802
      %v3804 = vpop.f32.mrf.mxu0
      %v3805 = vadd.f32 %v3605, %v3804
      %3806 = vmatmul.bf16.gmra.mxu0 %v3540
      %v3807 = vpop.f32.mrf.mxu0
      %v3808 = vadd.f32 %v3605, %v3807
      %v3809 = vpop.f32.mrf.mxu0
      %v3810 = vadd.f32 %v3605, %v3809
      %3811 = vmatmul.bf16.gmra.mxu0 %v3543
      %v3812 = vpop.f32.mrf.mxu0
      %v3813 = vadd.f32 %v3605, %v3812
      %v3814 = vpop.f32.mrf.mxu0
      %v3815 = vadd.f32 %v3605, %v3814
      %3816 = vmatmul.bf16.gmra.mxu0 %v3546
      %v3817 = vpop.f32.mrf.mxu0
      %v3818 = vadd.f32 %v3605, %v3817
      %v3819 = vpop.f32.mrf.mxu0
      %v3820 = vadd.f32 %v3605, %v3819
      %3821 = vmatmul.bf16.gmra.mxu0 %v3549
      %v3822 = vpop.f32.mrf.mxu0
      %v3823 = vadd.f32 %v3605, %v3822
      %v3824 = vpop.f32.mrf.mxu0
      %v3825 = vadd.f32 %v3605, %v3824
      %3826 = vmatmul.bf16.gmra.mxu0 %v3552
      %v3827 = vpop.f32.mrf.mxu0
      %v3828 = vadd.f32 %v3605, %v3827
      %v3829 = vpop.f32.mrf.mxu0
      %v3830 = vadd.f32 %v3605, %v3829
      %3831 = vmatmul.bf16.gmra.mxu0 %v3555
      %v3832 = vpop.f32.mrf.mxu0
      %v3833 = vadd.f32 %v3605, %v3832
      %v3834 = vpop.f32.mrf.mxu0
      %v3835 = vadd.f32 %v3605, %v3834
      %3836 = vmatmul.bf16.gmra.mxu0 %v3558
      %v3837 = vpop.f32.mrf.mxu0
      %v3838 = vadd.f32 %v3605, %v3837
      %v3839 = vpop.f32.mrf.mxu0
      %v3840 = vadd.f32 %v3605, %v3839
      %3841 = vmatmul.bf16.gmra.mxu0 %v3561
      %v3842 = vpop.f32.mrf.mxu0
      %v3843 = vadd.f32 %v3605, %v3842
      %v3844 = vpop.f32.mrf.mxu0
      %v3845 = vadd.f32 %v3605, %v3844
      %3846 = vmatmul.bf16.gmra.mxu0 %v3564
      %v3847 = vpop.f32.mrf.mxu0
      %v3848 = vadd.f32 %v3605, %v3847
      %v3849 = vpop.f32.mrf.mxu0
      %v3850 = vadd.f32 %v3605, %v3849
      %3851 = vdwg.mxu0
      %3852 = vmatpush.bf16.msra.mxu0 %v3694
      %3853 = vmatpush.bf16.msra.mxu0 %v3693
      %3854 = vmatpush.bf16.msra.mxu0 %v3692
      %3855 = vmatpush.bf16.msra.mxu0 %v3691
      %3856 = vmatpush.bf16.msra.mxu0 %v3690
      %3857 = vmatpush.bf16.msra.mxu0 %v3689
      %3858 = vmatpush.bf16.msra.mxu0 %v3688
      %3859 = vmatpush.bf16.msra.mxu0 %v3687
      %3860 = vmatmul.bf16.gmra.mxu0 %v3520
      %v3861 = vpop.f32.mrf.mxu0
      %v3862 = vadd.f32 %v3773, %v3861
      %v3863 = vpop.f32.mrf.mxu0
      %v3864 = vadd.f32 %v3775, %v3863
      %3865 = vmatmul.bf16.gmra.mxu0 %v3523
      %v3866 = vpop.f32.mrf.mxu0
      %v3867 = vadd.f32 %v3778, %v3866
      %v3868 = vpop.f32.mrf.mxu0
      %v3869 = vadd.f32 %v3780, %v3868
      %3870 = vmatmul.bf16.gmra.mxu0 %v3526
      %v3871 = vpop.f32.mrf.mxu0
      %v3872 = vadd.f32 %v3783, %v3871
      %v3873 = vpop.f32.mrf.mxu0
      %v3874 = vadd.f32 %v3785, %v3873
      %3875 = vmatmul.bf16.gmra.mxu0 %v3529
      %v3876 = vpop.f32.mrf.mxu0
      %v3877 = vadd.f32 %v3788, %v3876
      %v3878 = vpop.f32.mrf.mxu0
      %v3879 = vadd.f32 %v3790, %v3878
      %3880 = vmatmul.bf16.gmra.mxu0 %v3532
      %v3881 = vpop.f32.mrf.mxu0
      %v3882 = vadd.f32 %v3793, %v3881
      %v3883 = vpop.f32.mrf.mxu0
      %v3884 = vadd.f32 %v3795, %v3883
      %3885 = vmatmul.bf16.gmra.mxu0 %v3535
      %v3886 = vpop.f32.mrf.mxu0
      %v3887 = vadd.f32 %v3798, %v3886
      %v3888 = vpop.f32.mrf.mxu0
      %v3889 = vadd.f32 %v3800, %v3888
      %3890 = vmatmul.bf16.gmra.mxu0 %v3538
      %v3891 = vpop.f32.mrf.mxu0
      %v3892 = vadd.f32 %v3803, %v3891
      %v3893 = vpop.f32.mrf.mxu0
      %v3894 = vadd.f32 %v3805, %v3893
      %3895 = vmatmul.bf16.gmra.mxu0 %v3541
      %v3896 = vpop.f32.mrf.mxu0
      %v3897 = vadd.f32 %v3808, %v3896
      %v3898 = vpop.f32.mrf.mxu0
      %v3899 = vadd.f32 %v3810, %v3898
      %3900 = vmatmul.bf16.gmra.mxu0 %v3544
      %v3901 = vpop.f32.mrf.mxu0
      %v3902 = vadd.f32 %v3813, %v3901
      %v3903 = vpop.f32.mrf.mxu0
      %v3904 = vadd.f32 %v3815, %v3903
      %3905 = vmatmul.bf16.gmra.mxu0 %v3547
      %v3906 = vpop.f32.mrf.mxu0
      %v3907 = vadd.f32 %v3818, %v3906
      %v3908 = vpop.f32.mrf.mxu0
      %v3909 = vadd.f32 %v3820, %v3908
      %3910 = vmatmul.bf16.gmra.mxu0 %v3550
      %v3911 = vpop.f32.mrf.mxu0
      %v3912 = vadd.f32 %v3823, %v3911
      %v3913 = vpop.f32.mrf.mxu0
      %v3914 = vadd.f32 %v3825, %v3913
      %3915 = vmatmul.bf16.gmra.mxu0 %v3553
      %v3916 = vpop.f32.mrf.mxu0
      %v3917 = vadd.f32 %v3828, %v3916
      %v3918 = vpop.f32.mrf.mxu0
      %v3919 = vadd.f32 %v3830, %v3918
      %3920 = vmatmul.bf16.gmra.mxu0 %v3556
      %v3921 = vpop.f32.mrf.mxu0
      %v3922 = vadd.f32 %v3833, %v3921
      %v3923 = vpop.f32.mrf.mxu0
      %v3924 = vadd.f32 %v3835, %v3923
      %3925 = vmatmul.bf16.gmra.mxu0 %v3559
      %v3926 = vpop.f32.mrf.mxu0
      %v3927 = vadd.f32 %v3838, %v3926
      %v3928 = vpop.f32.mrf.mxu0
      %v3929 = vadd.f32 %v3840, %v3928
      %3930 = vmatmul.bf16.gmra.mxu0 %v3562
      %v3931 = vpop.f32.mrf.mxu0
      %v3932 = vadd.f32 %v3843, %v3931
      %v3933 = vpop.f32.mrf.mxu0
      %v3934 = vadd.f32 %v3845, %v3933
      %3935 = vmatmul.bf16.gmra.mxu0 %v3565
      %v3936 = vpop.f32.mrf.mxu0
      %v3937 = vadd.f32 %v3848, %v3936
      %v3938 = vpop.f32.mrf.mxu0
      %v3939 = vadd.f32 %v3850, %v3938
      %3940 = vdwg.mxu0
      %3941 = vmatpush.bf16.msra.mxu0 0
      %3942 = vmatpush.bf16.msra.mxu0 0
      %3943 = vmatpush.bf16.msra.mxu0 0
      %3944 = vmatpush.bf16.msra.mxu0 0
      %3945 = vmatpush.bf16.msra.mxu0 0
      %3946 = vmatpush.bf16.msra.mxu0 0
      %3947 = vmatpush.bf16.msra.mxu0 %v3696
      %3948 = vmatpush.bf16.msra.mxu0 %v3695
      %3949 = vmatmul.bf16.gmra.mxu0 %v3716
      %v3950 = vpop.f32.mrf.mxu0
      %v3951 = vadd.f32 %v3862, %v3950
      %v3952 = vpop.f32.mrf.mxu0
      %v3953 = vadd.f32 %v3864, %v3952
      %3954 = vmatmul.bf16.gmra.mxu0 %v3719
      %v3955 = vpop.f32.mrf.mxu0
      %v3956 = vadd.f32 %v3867, %v3955
      %v3957 = vpop.f32.mrf.mxu0
      %v3958 = vadd.f32 %v3869, %v3957
      %3959 = vmatmul.bf16.gmra.mxu0 %v3722
      %v3960 = vpop.f32.mrf.mxu0
      %v3961 = vadd.f32 %v3872, %v3960
      %v3962 = vpop.f32.mrf.mxu0
      %v3963 = vadd.f32 %v3874, %v3962
      %3964 = vmatmul.bf16.gmra.mxu0 %v3725
      %v3965 = vpop.f32.mrf.mxu0
      %v3966 = vadd.f32 %v3877, %v3965
      %v3967 = vpop.f32.mrf.mxu0
      %v3968 = vadd.f32 %v3879, %v3967
      %3969 = vmatmul.bf16.gmra.mxu0 %v3728
      %v3970 = vpop.f32.mrf.mxu0
      %v3971 = vadd.f32 %v3882, %v3970
      %v3972 = vpop.f32.mrf.mxu0
      %v3973 = vadd.f32 %v3884, %v3972
      %3974 = vmatmul.bf16.gmra.mxu0 %v3731
      %v3975 = vpop.f32.mrf.mxu0
      %v3976 = vadd.f32 %v3887, %v3975
      %v3977 = vpop.f32.mrf.mxu0
      %v3978 = vadd.f32 %v3889, %v3977
      %3979 = vmatmul.bf16.gmra.mxu0 %v3734
      %v3980 = vpop.f32.mrf.mxu0
      %v3981 = vadd.f32 %v3892, %v3980
      %v3982 = vpop.f32.mrf.mxu0
      %v3983 = vadd.f32 %v3894, %v3982
      %3984 = vmatmul.bf16.gmra.mxu0 %v3737
      %v3985 = vpop.f32.mrf.mxu0
      %v3986 = vadd.f32 %v3897, %v3985
      %v3987 = vpop.f32.mrf.mxu0
      %v3988 = vadd.f32 %v3899, %v3987
      %3989 = vmatmul.bf16.gmra.mxu0 %v3740
      %v3990 = vpop.f32.mrf.mxu0
      %v3991 = vadd.f32 %v3902, %v3990
      %v3992 = vpop.f32.mrf.mxu0
      %v3993 = vadd.f32 %v3904, %v3992
      %3994 = vmatmul.bf16.gmra.mxu0 %v3743
      %v3995 = vpop.f32.mrf.mxu0
      %v3996 = vadd.f32 %v3907, %v3995
      %v3997 = vpop.f32.mrf.mxu0
      %v3998 = vadd.f32 %v3909, %v3997
      %3999 = vmatmul.bf16.gmra.mxu0 %v3746
      %v4000 = vpop.f32.mrf.mxu0
      %v4001 = vadd.f32 %v3912, %v4000
      %v4002 = vpop.f32.mrf.mxu0
      %v4003 = vadd.f32 %v3914, %v4002
      %4004 = vmatmul.bf16.gmra.mxu0 %v3749
      %v4005 = vpop.f32.mrf.mxu0
      %v4006 = vadd.f32 %v3917, %v4005
      %v4007 = vpop.f32.mrf.mxu0
      %v4008 = vadd.f32 %v3919, %v4007
      %4009 = vmatmul.bf16.gmra.mxu0 %v3752
      %v4010 = vpop.f32.mrf.mxu0
      %v4011 = vadd.f32 %v3922, %v4010
      %v4012 = vpop.f32.mrf.mxu0
      %v4013 = vadd.f32 %v3924, %v4012
      %4014 = vmatmul.bf16.gmra.mxu0 %v3755
      %v4015 = vpop.f32.mrf.mxu0
      %v4016 = vadd.f32 %v3927, %v4015
      %v4017 = vpop.f32.mrf.mxu0
      %v4018 = vadd.f32 %v3929, %v4017
      %4019 = vmatmul.bf16.gmra.mxu0 %v3758
      %v4020 = vpop.f32.mrf.mxu0
      %v4021 = vadd.f32 %v3932, %v4020
      %v4022 = vpop.f32.mrf.mxu0
      %v4023 = vadd.f32 %v3934, %v4022
      %4024 = vmatmul.bf16.gmra.mxu0 %v3761
      %v4025 = vpop.f32.mrf.mxu0
      %v4026 = vadd.f32 %v3937, %v4025
      %v4027 = vpop.f32.mrf.mxu0
      %v4028 = vadd.f32 %v3939, %v4027
      %4029 = vdwg.mxu0
      %v4030 = vmax.f32 %v3951, 0.0
      %v4031 = vmax.f32 %v3953, 0.0
      %v4032 = vmax.f32 %v3956, 0.0
      %v4033 = vmax.f32 %v3958, 0.0
      %v4034 = vmax.f32 %v3961, 0.0
      %v4035 = vmax.f32 %v3963, 0.0
      %v4036 = vmax.f32 %v3966, 0.0
      %v4037 = vmax.f32 %v3968, 0.0
      %v4038 = vmax.f32 %v3971, 0.0
      %v4039 = vmax.f32 %v3973, 0.0
      %v4040 = vmax.f32 %v3976, 0.0
      %v4041 = vmax.f32 %v3978, 0.0
      %v4042 = vmax.f32 %v3981, 0.0
      %v4043 = vmax.f32 %v3983, 0.0
      %v4044 = vmax.f32 %v3986, 0.0
      %v4045 = vmax.f32 %v3988, 0.0
      %v4046 = vmax.f32 %v3991, 0.0
      %v4047 = vmax.f32 %v3993, 0.0
      %v4048 = vmax.f32 %v3996, 0.0
      %v4049 = vmax.f32 %v3998, 0.0
      %v4050 = vmax.f32 %v4001, 0.0
      %v4051 = vmax.f32 %v4003, 0.0
      %v4052 = vmax.f32 %v4006, 0.0
      %v4053 = vmax.f32 %v4008, 0.0
      %v4054 = vmax.f32 %v4011, 0.0
      %v4055 = vmax.f32 %v4013, 0.0
      %v4056 = vmax.f32 %v4016, 0.0
      %v4057 = vmax.f32 %v4018, 0.0
      %v4058 = vmax.f32 %v4021, 0.0
      %v4059 = vmax.f32 %v4023, 0.0
      %v4060 = vmax.f32 %v4026, 0.0
      %v4061 = vmax.f32 %v4028, 0.0
      %s4062 = scalar_lea.vmem [#allocation3], 24
      %4063 = vst.msk [vmem:[%s4062 + $0x1] sm:$0xff] %vm390, %v4030
      %4064 = vst.msk [vmem:[%s4062 + $0x9] sm:$0xff] %vm390, %v4031
      %4065 = vst.msk [vmem:[%s4062 + $0x19] sm:$0xff] %vm390, %v4032
      %4066 = vst.msk [vmem:[%s4062 + $0x21] sm:$0xff] %vm390, %v4033
      %4067 = vst.msk [vmem:[%s4062 + $0x31] sm:$0xff] %vm390, %v4034
      %4068 = vst.msk [vmem:[%s4062 + $0x39] sm:$0xff] %vm390, %v4035
      %4069 = vst.msk [vmem:[%s4062 + $0x49] sm:$0xff] %vm390, %v4036
      %4070 = vst.msk [vmem:[%s4062 + $0x51] sm:$0xff] %vm390, %v4037
      %4071 = vst.msk [vmem:[%s4062 + $0x61] sm:$0xff] %vm390, %v4038
      %4072 = vst.msk [vmem:[%s4062 + $0x69] sm:$0xff] %vm390, %v4039
      %4073 = vst.msk [vmem:[%s4062 + $0x79] sm:$0xff] %vm390, %v4040
      %4074 = vst.msk [vmem:[%s4062 + $0x81] sm:$0xff] %vm390, %v4041
      %4075 = vst.msk [vmem:[%s4062 + $0x91] sm:$0xff] %vm390, %v4042
      %4076 = vst.msk [vmem:[%s4062 + $0x99] sm:$0xff] %vm390, %v4043
      %4077 = vst.msk [vmem:[%s4062 + $0xa9] sm:$0xff] %vm390, %v4044
      %4078 = vst.msk [vmem:[%s4062 + $0xb1] sm:$0xff] %vm390, %v4045
      %4079 = vst.msk [vmem:[%s4062 + $0xc1] sm:$0xff] %vm390, %v4046
      %4080 = vst.msk [vmem:[%s4062 + $0xc9] sm:$0xff] %vm390, %v4047
      %4081 = vst.msk [vmem:[%s4062 + $0xd9] sm:$0xff] %vm390, %v4048
      %4082 = vst.msk [vmem:[%s4062 + $0xe1] sm:$0xff] %vm390, %v4049
      %4083 = vst.msk [vmem:[%s4062 + $0xf1] sm:$0xff] %vm390, %v4050
      %4084 = vst.msk [vmem:[%s4062 + $0xf9] sm:$0xff] %vm390, %v4051
      %4085 = vst.msk [vmem:[%s4062 + $0x109] sm:$0xff] %vm390, %v4052
      %4086 = vst.msk [vmem:[%s4062 + $0x111] sm:$0xff] %vm390, %v4053
      %4087 = vst.msk [vmem:[%s4062 + $0x121] sm:$0xff] %vm390, %v4054
      %4088 = vst.msk [vmem:[%s4062 + $0x129] sm:$0xff] %vm390, %v4055
      %4089 = vst.msk [vmem:[%s4062 + $0x139] sm:$0xff] %vm390, %v4056
      %4090 = vst.msk [vmem:[%s4062 + $0x141] sm:$0xff] %vm390, %v4057
      %4091 = vst.msk [vmem:[%s4062 + $0x151] sm:$0xff] %vm390, %v4058
      %4092 = vst.msk [vmem:[%s4062 + $0x159] sm:$0xff] %vm390, %v4059
      %4093 = vst.msk [vmem:[%s4062 + $0x169] sm:$0xff] %vm390, %v4060
      %4094 = vst.msk [vmem:[%s4062 + $0x171] sm:$0xff] %vm390, %v4061
      %v4095 = vld [vmem:[#allocation3] sm:$0xff]
      %v4096 = vld [vmem:[#allocation3 + $0x8] sm:$0xff]
      %v4097 = vld [vmem:[#allocation3 + $0x18] sm:$0xff]
      %v4098 = vld [vmem:[#allocation3 + $0x20] sm:$0xff]
      %v4099 = vld [vmem:[#allocation3 + $0x30] sm:$0xff]
      %v4100 = vld [vmem:[#allocation3 + $0x38] sm:$0xff]
      %v4101 = vld [vmem:[#allocation3 + $0x48] sm:$0xff]
      %v4102 = vld [vmem:[#allocation3 + $0x50] sm:$0xff]
      %v4103 = vld [vmem:[#allocation3 + $0x60] sm:$0xff]
      %v4104 = vld [vmem:[#allocation3 + $0x68] sm:$0xff]
      %v4105 = vld [vmem:[#allocation3 + $0x78] sm:$0xff]
      %v4106 = vld [vmem:[#allocation3 + $0x80] sm:$0xff]
      %v4107 = vld [vmem:[#allocation3 + $0x90] sm:$0xff]
      %v4108 = vld [vmem:[#allocation3 + $0x98] sm:$0xff]
      %v4109 = vld [vmem:[#allocation3 + $0xa8] sm:$0xff]
      %v4110 = vld [vmem:[#allocation3 + $0xb0] sm:$0xff]
      %v4111 = vld [vmem:[#allocation3 + $0xc0] sm:$0xff]
      %v4112 = vld [vmem:[#allocation3 + $0xc8] sm:$0xff]
      %v4113 = vld [vmem:[#allocation3 + $0xd8] sm:$0xff]
      %v4114 = vld [vmem:[#allocation3 + $0xe0] sm:$0xff]
      %v4115 = vld [vmem:[#allocation3 + $0xf0] sm:$0xff]
      %v4116 = vld [vmem:[#allocation3 + $0xf8] sm:$0xff]
      %v4117 = vld [vmem:[#allocation3 + $0x108] sm:$0xff]
      %v4118 = vld [vmem:[#allocation3 + $0x110] sm:$0xff]
      %v4119 = vld [vmem:[#allocation3 + $0x120] sm:$0xff]
      %v4120 = vld [vmem:[#allocation3 + $0x128] sm:$0xff]
      %v4121 = vld [vmem:[#allocation3 + $0x138] sm:$0xff]
      %v4122 = vld [vmem:[#allocation3 + $0x140] sm:$0xff]
      %v4123 = vld [vmem:[#allocation3 + $0x150] sm:$0xff]
      %v4124 = vld [vmem:[#allocation3 + $0x158] sm:$0xff]
      %v4125 = vld [vmem:[#allocation3 + $0x168] sm:$0xff]
      %v4126 = vld [vmem:[#allocation3 + $0x170] sm:$0xff]
      %v4127 = vld [vmem:[#allocation3 + $0x1] sm:$0xff]
      %v4128 = vld [vmem:[#allocation3 + $0x9] sm:$0xff]
      %v4129 = vld [vmem:[#allocation3 + $0x19] sm:$0xff]
      %v4130 = vld [vmem:[#allocation3 + $0x21] sm:$0xff]
      %v4131 = vld [vmem:[#allocation3 + $0x31] sm:$0xff]
      %v4132 = vld [vmem:[#allocation3 + $0x39] sm:$0xff]
      %v4133 = vld [vmem:[#allocation3 + $0x49] sm:$0xff]
      %v4134 = vld [vmem:[#allocation3 + $0x51] sm:$0xff]
      %v4135 = vld [vmem:[#allocation3 + $0x61] sm:$0xff]
      %v4136 = vld [vmem:[#allocation3 + $0x69] sm:$0xff]
      %v4137 = vld [vmem:[#allocation3 + $0x79] sm:$0xff]
      %v4138 = vld [vmem:[#allocation3 + $0x81] sm:$0xff]
      %v4139 = vld [vmem:[#allocation3 + $0x91] sm:$0xff]
      %v4140 = vld [vmem:[#allocation3 + $0x99] sm:$0xff]
      %v4141 = vld [vmem:[#allocation3 + $0xa9] sm:$0xff]
      %v4142 = vld [vmem:[#allocation3 + $0xb1] sm:$0xff]
      %v4143 = vld [vmem:[#allocation3 + $0xc1] sm:$0xff]
      %v4144 = vld [vmem:[#allocation3 + $0xc9] sm:$0xff]
      %v4145 = vld [vmem:[#allocation3 + $0xd9] sm:$0xff]
      %v4146 = vld [vmem:[#allocation3 + $0xe1] sm:$0xff]
      %v4147 = vld [vmem:[#allocation3 + $0xf1] sm:$0xff]
      %v4148 = vld [vmem:[#allocation3 + $0xf9] sm:$0xff]
      %v4149 = vld [vmem:[#allocation3 + $0x109] sm:$0xff]
      %v4150 = vld [vmem:[#allocation3 + $0x111] sm:$0xff]
      %v4151 = vld [vmem:[#allocation3 + $0x121] sm:$0xff]
      %v4152 = vld [vmem:[#allocation3 + $0x129] sm:$0xff]
      %v4153 = vld [vmem:[#allocation3 + $0x139] sm:$0xff]
      %v4154 = vld [vmem:[#allocation3 + $0x141] sm:$0xff]
      %v4155 = vld [vmem:[#allocation3 + $0x151] sm:$0xff]
      %v4156 = vld [vmem:[#allocation3 + $0x159] sm:$0xff]
      %v4157 = vld [vmem:[#allocation3 + $0x169] sm:$0xff]
      %v4158 = vld [vmem:[#allocation3 + $0x171] sm:$0xff]
      %v4159 = vld [vmem:[#allocation3 + $0x2] sm:$0xff]
      %v4160 = vld [vmem:[#allocation3 + $0xa] sm:$0xff]
      %v4161 = vld [vmem:[#allocation3 + $0x1a] sm:$0xff]
      %v4162 = vld [vmem:[#allocation3 + $0x22] sm:$0xff]
      %v4163 = vld [vmem:[#allocation3 + $0x32] sm:$0xff]
      %v4164 = vld [vmem:[#allocation3 + $0x3a] sm:$0xff]
      %v4165 = vld [vmem:[#allocation3 + $0x4a] sm:$0xff]
      %v4166 = vld [vmem:[#allocation3 + $0x52] sm:$0xff]
      %v4167 = vld [vmem:[#allocation3 + $0x62] sm:$0xff]
      %v4168 = vld [vmem:[#allocation3 + $0x6a] sm:$0xff]
      %v4169 = vld [vmem:[#allocation3 + $0x7a] sm:$0xff]
      %v4170 = vld [vmem:[#allocation3 + $0x82] sm:$0xff]
      %v4171 = vld [vmem:[#allocation3 + $0x92] sm:$0xff]
      %v4172 = vld [vmem:[#allocation3 + $0x9a] sm:$0xff]
      %v4173 = vld [vmem:[#allocation3 + $0xaa] sm:$0xff]
      %v4174 = vld [vmem:[#allocation3 + $0xb2] sm:$0xff]
      %v4175 = vld [vmem:[#allocation3 + $0xc2] sm:$0xff]
      %v4176 = vld [vmem:[#allocation3 + $0xca] sm:$0xff]
      %v4177 = vld [vmem:[#allocation3 + $0xda] sm:$0xff]
      %v4178 = vld [vmem:[#allocation3 + $0xe2] sm:$0xff]
      %v4179 = vld [vmem:[#allocation3 + $0xf2] sm:$0xff]
      %v4180 = vld [vmem:[#allocation3 + $0xfa] sm:$0xff]
      %v4181 = vld [vmem:[#allocation3 + $0x10a] sm:$0xff]
      %v4182 = vld [vmem:[#allocation3 + $0x112] sm:$0xff]
      %v4183 = vld [vmem:[#allocation3 + $0x122] sm:$0xff]
      %v4184 = vld [vmem:[#allocation3 + $0x12a] sm:$0xff]
      %v4185 = vld [vmem:[#allocation3 + $0x13a] sm:$0xff]
      %v4186 = vld [vmem:[#allocation3 + $0x142] sm:$0xff]
      %v4187 = vld [vmem:[#allocation3 + $0x152] sm:$0xff]
      %v4188 = vld [vmem:[#allocation3 + $0x15a] sm:$0xff]
      %v4189 = vld [vmem:[#allocation3 + $0x16a] sm:$0xff]
      %v4190 = vld [vmem:[#allocation3 + $0x172] sm:$0xff]
      %v4191 = vld [vmem:[%s4062] sm:$0xff]
      %v4192 = vld [vmem:[%s4062 + $0x8] sm:$0xff]
      %v4193 = vld [vmem:[%s4062 + $0x18] sm:$0xff]
      %v4194 = vld [vmem:[%s4062 + $0x20] sm:$0xff]
      %v4195 = vld [vmem:[%s4062 + $0x30] sm:$0xff]
      %v4196 = vld [vmem:[%s4062 + $0x38] sm:$0xff]
      %v4197 = vld [vmem:[%s4062 + $0x48] sm:$0xff]
      %v4198 = vld [vmem:[%s4062 + $0x50] sm:$0xff]
      %v4199 = vld [vmem:[%s4062 + $0x60] sm:$0xff]
      %v4200 = vld [vmem:[%s4062 + $0x68] sm:$0xff]
      %v4201 = vld [vmem:[%s4062 + $0x78] sm:$0xff]
      %v4202 = vld [vmem:[%s4062 + $0x80] sm:$0xff]
      %v4203 = vld [vmem:[%s4062 + $0x90] sm:$0xff]
      %v4204 = vld [vmem:[%s4062 + $0x98] sm:$0xff]
      %v4205 = vld [vmem:[%s4062 + $0xa8] sm:$0xff]
      %v4206 = vld [vmem:[%s4062 + $0xb0] sm:$0xff]
      %v4207 = vld [vmem:[%s4062 + $0xc0] sm:$0xff]
      %v4208 = vld [vmem:[%s4062 + $0xc8] sm:$0xff]
      %v4209 = vld [vmem:[%s4062 + $0xd8] sm:$0xff]
      %v4210 = vld [vmem:[%s4062 + $0xe0] sm:$0xff]
      %v4211 = vld [vmem:[%s4062 + $0xf0] sm:$0xff]
      %v4212 = vld [vmem:[%s4062 + $0xf8] sm:$0xff]
      %v4213 = vld [vmem:[%s4062 + $0x108] sm:$0xff]
      %v4214 = vld [vmem:[%s4062 + $0x110] sm:$0xff]
      %v4215 = vld [vmem:[%s4062 + $0x120] sm:$0xff]
      %v4216 = vld [vmem:[%s4062 + $0x128] sm:$0xff]
      %v4217 = vld [vmem:[%s4062 + $0x138] sm:$0xff]
      %v4218 = vld [vmem:[%s4062 + $0x140] sm:$0xff]
      %v4219 = vld [vmem:[%s4062 + $0x150] sm:$0xff]
      %v4220 = vld [vmem:[%s4062 + $0x158] sm:$0xff]
      %v4221 = vld [vmem:[%s4062 + $0x168] sm:$0xff]
      %v4222 = vld [vmem:[%s4062 + $0x170] sm:$0xff]
      %v4223 = vld [vmem:[%s4062 + $0x1] sm:$0xff]
      %v4224 = vld [vmem:[%s4062 + $0x9] sm:$0xff]
      %v4225 = vld [vmem:[%s4062 + $0x19] sm:$0xff]
      %v4226 = vld [vmem:[%s4062 + $0x21] sm:$0xff]
      %v4227 = vld [vmem:[%s4062 + $0x31] sm:$0xff]
      %v4228 = vld [vmem:[%s4062 + $0x39] sm:$0xff]
      %v4229 = vld [vmem:[%s4062 + $0x49] sm:$0xff]
      %v4230 = vld [vmem:[%s4062 + $0x51] sm:$0xff]
      %v4231 = vld [vmem:[%s4062 + $0x61] sm:$0xff]
      %v4232 = vld [vmem:[%s4062 + $0x69] sm:$0xff]
      %v4233 = vld [vmem:[%s4062 + $0x79] sm:$0xff]
      %v4234 = vld [vmem:[%s4062 + $0x81] sm:$0xff]
      %v4235 = vld [vmem:[%s4062 + $0x91] sm:$0xff]
      %v4236 = vld [vmem:[%s4062 + $0x99] sm:$0xff]
      %v4237 = vld [vmem:[%s4062 + $0xa9] sm:$0xff]
      %v4238 = vld [vmem:[%s4062 + $0xb1] sm:$0xff]
      %v4239 = vld [vmem:[%s4062 + $0xc1] sm:$0xff]
      %v4240 = vld [vmem:[%s4062 + $0xc9] sm:$0xff]
      %v4241 = vld [vmem:[%s4062 + $0xd9] sm:$0xff]
      %v4242 = vld [vmem:[%s4062 + $0xe1] sm:$0xff]
      %v4243 = vld [vmem:[%s4062 + $0xf1] sm:$0xff]
      %v4244 = vld [vmem:[%s4062 + $0xf9] sm:$0xff]
      %v4245 = vld [vmem:[%s4062 + $0x109] sm:$0xff]
      %v4246 = vld [vmem:[%s4062 + $0x111] sm:$0xff]
      %v4247 = vld [vmem:[%s4062 + $0x121] sm:$0xff]
      %v4248 = vld [vmem:[%s4062 + $0x129] sm:$0xff]
      %v4249 = vld [vmem:[%s4062 + $0x139] sm:$0xff]
      %v4250 = vld [vmem:[%s4062 + $0x141] sm:$0xff]
      %v4251 = vld [vmem:[%s4062 + $0x151] sm:$0xff]
      %v4252 = vld [vmem:[%s4062 + $0x159] sm:$0xff]
      %v4253 = vld [vmem:[%s4062 + $0x169] sm:$0xff]
      %v4254 = vld [vmem:[%s4062 + $0x171] sm:$0xff]
      %v4255 = vld [vmem:[%s4062 + $0x2] sm:$0xff]
      %v4256 = vld [vmem:[%s4062 + $0xa] sm:$0xff]
      %v4257 = vld [vmem:[%s4062 + $0x1a] sm:$0xff]
      %v4258 = vld [vmem:[%s4062 + $0x22] sm:$0xff]
      %v4259 = vld [vmem:[%s4062 + $0x32] sm:$0xff]
      %v4260 = vld [vmem:[%s4062 + $0x3a] sm:$0xff]
      %v4261 = vld [vmem:[%s4062 + $0x4a] sm:$0xff]
      %v4262 = vld [vmem:[%s4062 + $0x52] sm:$0xff]
      %v4263 = vld [vmem:[%s4062 + $0x62] sm:$0xff]
      %v4264 = vld [vmem:[%s4062 + $0x6a] sm:$0xff]
      %v4265 = vld [vmem:[%s4062 + $0x7a] sm:$0xff]
      %v4266 = vld [vmem:[%s4062 + $0x82] sm:$0xff]
      %v4267 = vld [vmem:[%s4062 + $0x92] sm:$0xff]
      %v4268 = vld [vmem:[%s4062 + $0x9a] sm:$0xff]
      %v4269 = vld [vmem:[%s4062 + $0xaa] sm:$0xff]
      %v4270 = vld [vmem:[%s4062 + $0xb2] sm:$0xff]
      %v4271 = vld [vmem:[%s4062 + $0xc2] sm:$0xff]
      %v4272 = vld [vmem:[%s4062 + $0xca] sm:$0xff]
      %v4273 = vld [vmem:[%s4062 + $0xda] sm:$0xff]
      %v4274 = vld [vmem:[%s4062 + $0xe2] sm:$0xff]
      %v4275 = vld [vmem:[%s4062 + $0xf2] sm:$0xff]
      %v4276 = vld [vmem:[%s4062 + $0xfa] sm:$0xff]
      %v4277 = vld [vmem:[%s4062 + $0x10a] sm:$0xff]
      %v4278 = vld [vmem:[%s4062 + $0x112] sm:$0xff]
      %v4279 = vld [vmem:[%s4062 + $0x122] sm:$0xff]
      %v4280 = vld [vmem:[%s4062 + $0x12a] sm:$0xff]
      %v4281 = vld [vmem:[%s4062 + $0x13a] sm:$0xff]
      %v4282 = vld [vmem:[%s4062 + $0x142] sm:$0xff]
      %v4283 = vld [vmem:[%s4062 + $0x152] sm:$0xff]
      %v4284 = vld [vmem:[%s4062 + $0x15a] sm:$0xff]
      %v4285 = vld [vmem:[%s4062 + $0x16a] sm:$0xff]
      %v4286 = vld [vmem:[%s4062 + $0x172] sm:$0xff]
      %s4287 = scalar_lea.vmem [#allocation3], 48
      %v4288 = vld [vmem:[%s4287] sm:$0xff]
      %v4289 = vld [vmem:[%s4287 + $0x8] sm:$0xff]
      %v4290 = vld [vmem:[%s4287 + $0x18] sm:$0xff]
      %v4291 = vld [vmem:[%s4287 + $0x20] sm:$0xff]
      %v4292 = vld [vmem:[%s4287 + $0x30] sm:$0xff]
      %v4293 = vld [vmem:[%s4287 + $0x38] sm:$0xff]
      %v4294 = vld [vmem:[%s4287 + $0x48] sm:$0xff]
      %v4295 = vld [vmem:[%s4287 + $0x50] sm:$0xff]
      %v4296 = vld [vmem:[%s4287 + $0x60] sm:$0xff]
      %v4297 = vld [vmem:[%s4287 + $0x68] sm:$0xff]
      %v4298 = vld [vmem:[%s4287 + $0x78] sm:$0xff]
      %v4299 = vld [vmem:[%s4287 + $0x80] sm:$0xff]
      %v4300 = vld [vmem:[%s4287 + $0x90] sm:$0xff]
      %v4301 = vld [vmem:[%s4287 + $0x98] sm:$0xff]
      %v4302 = vld [vmem:[%s4287 + $0xa8] sm:$0xff]
      %v4303 = vld [vmem:[%s4287 + $0xb0] sm:$0xff]
      %v4304 = vld [vmem:[%s4287 + $0xc0] sm:$0xff]
      %v4305 = vld [vmem:[%s4287 + $0xc8] sm:$0xff]
      %v4306 = vld [vmem:[%s4287 + $0xd8] sm:$0xff]
      %v4307 = vld [vmem:[%s4287 + $0xe0] sm:$0xff]
      %v4308 = vld [vmem:[%s4287 + $0xf0] sm:$0xff]
      %v4309 = vld [vmem:[%s4287 + $0xf8] sm:$0xff]
      %v4310 = vld [vmem:[%s4287 + $0x108] sm:$0xff]
      %v4311 = vld [vmem:[%s4287 + $0x110] sm:$0xff]
      %v4312 = vld [vmem:[%s4287 + $0x120] sm:$0xff]
      %v4313 = vld [vmem:[%s4287 + $0x128] sm:$0xff]
      %v4314 = vld [vmem:[%s4287 + $0x138] sm:$0xff]
      %v4315 = vld [vmem:[%s4287 + $0x140] sm:$0xff]
      %v4316 = vld [vmem:[%s4287 + $0x150] sm:$0xff]
      %v4317 = vld [vmem:[%s4287 + $0x158] sm:$0xff]
      %v4318 = vld [vmem:[%s4287 + $0x168] sm:$0xff]
      %v4319 = vld [vmem:[%s4287 + $0x170] sm:$0xff]
      %v4320 = vld [vmem:[%s4287 + $0x1] sm:$0xff]
      %v4321 = vld [vmem:[%s4287 + $0x9] sm:$0xff]
      %v4322 = vld [vmem:[%s4287 + $0x19] sm:$0xff]
      %v4323 = vld [vmem:[%s4287 + $0x21] sm:$0xff]
      %v4324 = vld [vmem:[%s4287 + $0x31] sm:$0xff]
      %v4325 = vld [vmem:[%s4287 + $0x39] sm:$0xff]
      %v4326 = vld [vmem:[%s4287 + $0x49] sm:$0xff]
      %v4327 = vld [vmem:[%s4287 + $0x51] sm:$0xff]
      %v4328 = vld [vmem:[%s4287 + $0x61] sm:$0xff]
      %v4329 = vld [vmem:[%s4287 + $0x69] sm:$0xff]
      %v4330 = vld [vmem:[%s4287 + $0x79] sm:$0xff]
      %v4331 = vld [vmem:[%s4287 + $0x81] sm:$0xff]
      %v4332 = vld [vmem:[%s4287 + $0x91] sm:$0xff]
      %v4333 = vld [vmem:[%s4287 + $0x99] sm:$0xff]
      %v4334 = vld [vmem:[%s4287 + $0xa9] sm:$0xff]
      %v4335 = vld [vmem:[%s4287 + $0xb1] sm:$0xff]
      %v4336 = vld [vmem:[%s4287 + $0xc1] sm:$0xff]
      %v4337 = vld [vmem:[%s4287 + $0xc9] sm:$0xff]
      %v4338 = vld [vmem:[%s4287 + $0xd9] sm:$0xff]
      %v4339 = vld [vmem:[%s4287 + $0xe1] sm:$0xff]
      %v4340 = vld [vmem:[%s4287 + $0xf1] sm:$0xff]
      %v4341 = vld [vmem:[%s4287 + $0xf9] sm:$0xff]
      %v4342 = vld [vmem:[%s4287 + $0x109] sm:$0xff]
      %v4343 = vld [vmem:[%s4287 + $0x111] sm:$0xff]
      %v4344 = vld [vmem:[%s4287 + $0x121] sm:$0xff]
      %v4345 = vld [vmem:[%s4287 + $0x129] sm:$0xff]
      %v4346 = vld [vmem:[%s4287 + $0x139] sm:$0xff]
      %v4347 = vld [vmem:[%s4287 + $0x141] sm:$0xff]
      %v4348 = vld [vmem:[%s4287 + $0x151] sm:$0xff]
      %v4349 = vld [vmem:[%s4287 + $0x159] sm:$0xff]
      %v4350 = vld [vmem:[%s4287 + $0x169] sm:$0xff]
      %v4351 = vld [vmem:[%s4287 + $0x171] sm:$0xff]
      %v4352 = vld [vmem:[%s4287 + $0x2] sm:$0xff]
      %v4353 = vld [vmem:[%s4287 + $0xa] sm:$0xff]
      %v4354 = vld [vmem:[%s4287 + $0x1a] sm:$0xff]
      %v4355 = vld [vmem:[%s4287 + $0x22] sm:$0xff]
      %v4356 = vld [vmem:[%s4287 + $0x32] sm:$0xff]
      %v4357 = vld [vmem:[%s4287 + $0x3a] sm:$0xff]
      %v4358 = vld [vmem:[%s4287 + $0x4a] sm:$0xff]
      %v4359 = vld [vmem:[%s4287 + $0x52] sm:$0xff]
      %v4360 = vld [vmem:[%s4287 + $0x62] sm:$0xff]
      %v4361 = vld [vmem:[%s4287 + $0x6a] sm:$0xff]
      %v4362 = vld [vmem:[%s4287 + $0x7a] sm:$0xff]
      %v4363 = vld [vmem:[%s4287 + $0x82] sm:$0xff]
      %v4364 = vld [vmem:[%s4287 + $0x92] sm:$0xff]
      %v4365 = vld [vmem:[%s4287 + $0x9a] sm:$0xff]
      %v4366 = vld [vmem:[%s4287 + $0xaa] sm:$0xff]
      %v4367 = vld [vmem:[%s4287 + $0xb2] sm:$0xff]
      %v4368 = vld [vmem:[%s4287 + $0xc2] sm:$0xff]
      %v4369 = vld [vmem:[%s4287 + $0xca] sm:$0xff]
      %v4370 = vld [vmem:[%s4287 + $0xda] sm:$0xff]
      %v4371 = vld [vmem:[%s4287 + $0xe2] sm:$0xff]
      %v4372 = vld [vmem:[%s4287 + $0xf2] sm:$0xff]
      %v4373 = vld [vmem:[%s4287 + $0xfa] sm:$0xff]
      %v4374 = vld [vmem:[%s4287 + $0x10a] sm:$0xff]
      %v4375 = vld [vmem:[%s4287 + $0x112] sm:$0xff]
      %v4376 = vld [vmem:[%s4287 + $0x122] sm:$0xff]
      %v4377 = vld [vmem:[%s4287 + $0x12a] sm:$0xff]
      %v4378 = vld [vmem:[%s4287 + $0x13a] sm:$0xff]
      %v4379 = vld [vmem:[%s4287 + $0x142] sm:$0xff]
      %v4380 = vld [vmem:[%s4287 + $0x152] sm:$0xff]
      %v4381 = vld [vmem:[%s4287 + $0x15a] sm:$0xff]
      %v4382 = vld [vmem:[%s4287 + $0x16a] sm:$0xff]
      %v4383 = vld [vmem:[%s4287 + $0x172] sm:$0xff]
      %4416 = vrot.lane.b32.xlu0 %v4127, 64
      %v4417 = vpop.permute.xlu0 %4416
      %4418 = vrot.lane.b32.xlu0 %v4128, 64
      %v4419 = vpop.permute.xlu0 %4418
      %4420 = vrot.lane.b32.xlu0 %v4129, 64
      %v4421 = vpop.permute.xlu0 %4420
      %4422 = vrot.lane.b32.xlu0 %v4130, 64
      %v4423 = vpop.permute.xlu0 %4422
      %4424 = vrot.lane.b32.xlu0 %v4131, 64
      %v4425 = vpop.permute.xlu0 %4424
      %4426 = vrot.lane.b32.xlu0 %v4132, 64
      %v4427 = vpop.permute.xlu0 %4426
      %4428 = vrot.lane.b32.xlu0 %v4133, 64
      %v4429 = vpop.permute.xlu0 %4428
      %4430 = vrot.lane.b32.xlu0 %v4134, 64
      %v4431 = vpop.permute.xlu0 %4430
      %4432 = vrot.lane.b32.xlu0 %v4135, 64
      %v4433 = vpop.permute.xlu0 %4432
      %4434 = vrot.lane.b32.xlu0 %v4136, 64
      %v4435 = vpop.permute.xlu0 %4434
      %4436 = vrot.lane.b32.xlu0 %v4137, 64
      %v4437 = vpop.permute.xlu0 %4436
      %4438 = vrot.lane.b32.xlu0 %v4138, 64
      %v4439 = vpop.permute.xlu0 %4438
      %4440 = vrot.lane.b32.xlu0 %v4139, 64
      %v4441 = vpop.permute.xlu0 %4440
      %4442 = vrot.lane.b32.xlu0 %v4140, 64
      %v4443 = vpop.permute.xlu0 %4442
      %4444 = vrot.lane.b32.xlu0 %v4141, 64
      %v4445 = vpop.permute.xlu0 %4444
      %4446 = vrot.lane.b32.xlu0 %v4142, 64
      %v4447 = vpop.permute.xlu0 %4446
      %4448 = vrot.lane.b32.xlu0 %v4143, 64
      %v4449 = vpop.permute.xlu0 %4448
      %4450 = vrot.lane.b32.xlu0 %v4144, 64
      %v4451 = vpop.permute.xlu0 %4450
      %4452 = vrot.lane.b32.xlu0 %v4145, 64
      %v4453 = vpop.permute.xlu0 %4452
      %4454 = vrot.lane.b32.xlu0 %v4146, 64
      %v4455 = vpop.permute.xlu0 %4454
      %4456 = vrot.lane.b32.xlu0 %v4147, 64
      %v4457 = vpop.permute.xlu0 %4456
      %4458 = vrot.lane.b32.xlu0 %v4148, 64
      %v4459 = vpop.permute.xlu0 %4458
      %4460 = vrot.lane.b32.xlu0 %v4149, 64
      %v4461 = vpop.permute.xlu0 %4460
      %4462 = vrot.lane.b32.xlu0 %v4150, 64
      %v4463 = vpop.permute.xlu0 %4462
      %4464 = vrot.lane.b32.xlu0 %v4151, 64
      %v4465 = vpop.permute.xlu0 %4464
      %4466 = vrot.lane.b32.xlu0 %v4152, 64
      %v4467 = vpop.permute.xlu0 %4466
      %4468 = vrot.lane.b32.xlu0 %v4153, 64
      %v4469 = vpop.permute.xlu0 %4468
      %4470 = vrot.lane.b32.xlu0 %v4154, 64
      %v4471 = vpop.permute.xlu0 %4470
      %4472 = vrot.lane.b32.xlu0 %v4155, 64
      %v4473 = vpop.permute.xlu0 %4472
      %4474 = vrot.lane.b32.xlu0 %v4156, 64
      %v4475 = vpop.permute.xlu0 %4474
      %4476 = vrot.lane.b32.xlu0 %v4157, 64
      %v4477 = vpop.permute.xlu0 %4476
      %4478 = vrot.lane.b32.xlu0 %v4158, 64
      %v4479 = vpop.permute.xlu0 %4478
      %4544 = vrot.lane.b32.xlu0 %v4191, 64
      %v4545 = vpop.permute.xlu0 %4544
      %4546 = vrot.lane.b32.xlu0 %v4192, 64
      %v4547 = vpop.permute.xlu0 %4546
      %4548 = vrot.lane.b32.xlu0 %v4193, 64
      %v4549 = vpop.permute.xlu0 %4548
      %4550 = vrot.lane.b32.xlu0 %v4194, 64
      %v4551 = vpop.permute.xlu0 %4550
      %4552 = vrot.lane.b32.xlu0 %v4195, 64
      %v4553 = vpop.permute.xlu0 %4552
      %4554 = vrot.lane.b32.xlu0 %v4196, 64
      %v4555 = vpop.permute.xlu0 %4554
      %4556 = vrot.lane.b32.xlu0 %v4197, 64
      %v4557 = vpop.permute.xlu0 %4556
      %4558 = vrot.lane.b32.xlu0 %v4198, 64
      %v4559 = vpop.permute.xlu0 %4558
      %4560 = vrot.lane.b32.xlu0 %v4199, 64
      %v4561 = vpop.permute.xlu0 %4560
      %4562 = vrot.lane.b32.xlu0 %v4200, 64
      %v4563 = vpop.permute.xlu0 %4562
      %4564 = vrot.lane.b32.xlu0 %v4201, 64
      %v4565 = vpop.permute.xlu0 %4564
      %4566 = vrot.lane.b32.xlu0 %v4202, 64
      %v4567 = vpop.permute.xlu0 %4566
      %4568 = vrot.lane.b32.xlu0 %v4203, 64
      %v4569 = vpop.permute.xlu0 %4568
      %4570 = vrot.lane.b32.xlu0 %v4204, 64
      %v4571 = vpop.permute.xlu0 %4570
      %4572 = vrot.lane.b32.xlu0 %v4205, 64
      %v4573 = vpop.permute.xlu0 %4572
      %4574 = vrot.lane.b32.xlu0 %v4206, 64
      %v4575 = vpop.permute.xlu0 %4574
      %4576 = vrot.lane.b32.xlu0 %v4207, 64
      %v4577 = vpop.permute.xlu0 %4576
      %4578 = vrot.lane.b32.xlu0 %v4208, 64
      %v4579 = vpop.permute.xlu0 %4578
      %4580 = vrot.lane.b32.xlu0 %v4209, 64
      %v4581 = vpop.permute.xlu0 %4580
      %4582 = vrot.lane.b32.xlu0 %v4210, 64
      %v4583 = vpop.permute.xlu0 %4582
      %4584 = vrot.lane.b32.xlu0 %v4211, 64
      %v4585 = vpop.permute.xlu0 %4584
      %4586 = vrot.lane.b32.xlu0 %v4212, 64
      %v4587 = vpop.permute.xlu0 %4586
      %4588 = vrot.lane.b32.xlu0 %v4213, 64
      %v4589 = vpop.permute.xlu0 %4588
      %4590 = vrot.lane.b32.xlu0 %v4214, 64
      %v4591 = vpop.permute.xlu0 %4590
      %4592 = vrot.lane.b32.xlu0 %v4215, 64
      %v4593 = vpop.permute.xlu0 %4592
      %4594 = vrot.lane.b32.xlu0 %v4216, 64
      %v4595 = vpop.permute.xlu0 %4594
      %4596 = vrot.lane.b32.xlu0 %v4217, 64
      %v4597 = vpop.permute.xlu0 %4596
      %4598 = vrot.lane.b32.xlu0 %v4218, 64
      %v4599 = vpop.permute.xlu0 %4598
      %4600 = vrot.lane.b32.xlu0 %v4219, 64
      %v4601 = vpop.permute.xlu0 %4600
      %4602 = vrot.lane.b32.xlu0 %v4220, 64
      %v4603 = vpop.permute.xlu0 %4602
      %4604 = vrot.lane.b32.xlu0 %v4221, 64
      %v4605 = vpop.permute.xlu0 %4604
      %4606 = vrot.lane.b32.xlu0 %v4222, 64
      %v4607 = vpop.permute.xlu0 %4606
      %4672 = vrot.lane.b32.xlu0 %v4255, 64
      %v4673 = vpop.permute.xlu0 %4672
      %4674 = vrot.lane.b32.xlu0 %v4256, 64
      %v4675 = vpop.permute.xlu0 %4674
      %4676 = vrot.lane.b32.xlu0 %v4257, 64
      %v4677 = vpop.permute.xlu0 %4676
      %4678 = vrot.lane.b32.xlu0 %v4258, 64
      %v4679 = vpop.permute.xlu0 %4678
      %4680 = vrot.lane.b32.xlu0 %v4259, 64
      %v4681 = vpop.permute.xlu0 %4680
      %4682 = vrot.lane.b32.xlu0 %v4260, 64
      %v4683 = vpop.permute.xlu0 %4682
      %4684 = vrot.lane.b32.xlu0 %v4261, 64
      %v4685 = vpop.permute.xlu0 %4684
      %4686 = vrot.lane.b32.xlu0 %v4262, 64
      %v4687 = vpop.permute.xlu0 %4686
      %4688 = vrot.lane.b32.xlu0 %v4263, 64
      %v4689 = vpop.permute.xlu0 %4688
      %4690 = vrot.lane.b32.xlu0 %v4264, 64
      %v4691 = vpop.permute.xlu0 %4690
      %4692 = vrot.lane.b32.xlu0 %v4265, 64
      %v4693 = vpop.permute.xlu0 %4692
      %4694 = vrot.lane.b32.xlu0 %v4266, 64
      %v4695 = vpop.permute.xlu0 %4694
      %4696 = vrot.lane.b32.xlu0 %v4267, 64
      %v4697 = vpop.permute.xlu0 %4696
      %4698 = vrot.lane.b32.xlu0 %v4268, 64
      %v4699 = vpop.permute.xlu0 %4698
      %4700 = vrot.lane.b32.xlu0 %v4269, 64
      %v4701 = vpop.permute.xlu0 %4700
      %4702 = vrot.lane.b32.xlu0 %v4270, 64
      %v4703 = vpop.permute.xlu0 %4702
      %4704 = vrot.lane.b32.xlu0 %v4271, 64
      %v4705 = vpop.permute.xlu0 %4704
      %4706 = vrot.lane.b32.xlu0 %v4272, 64
      %v4707 = vpop.permute.xlu0 %4706
      %4708 = vrot.lane.b32.xlu0 %v4273, 64
      %v4709 = vpop.permute.xlu0 %4708
      %4710 = vrot.lane.b32.xlu0 %v4274, 64
      %v4711 = vpop.permute.xlu0 %4710
      %4712 = vrot.lane.b32.xlu0 %v4275, 64
      %v4713 = vpop.permute.xlu0 %4712
      %4714 = vrot.lane.b32.xlu0 %v4276, 64
      %v4715 = vpop.permute.xlu0 %4714
      %4716 = vrot.lane.b32.xlu0 %v4277, 64
      %v4717 = vpop.permute.xlu0 %4716
      %4718 = vrot.lane.b32.xlu0 %v4278, 64
      %v4719 = vpop.permute.xlu0 %4718
      %4720 = vrot.lane.b32.xlu0 %v4279, 64
      %v4721 = vpop.permute.xlu0 %4720
      %4722 = vrot.lane.b32.xlu0 %v4280, 64
      %v4723 = vpop.permute.xlu0 %4722
      %4724 = vrot.lane.b32.xlu0 %v4281, 64
      %v4725 = vpop.permute.xlu0 %4724
      %4726 = vrot.lane.b32.xlu0 %v4282, 64
      %v4727 = vpop.permute.xlu0 %4726
      %4728 = vrot.lane.b32.xlu0 %v4283, 64
      %v4729 = vpop.permute.xlu0 %4728
      %4730 = vrot.lane.b32.xlu0 %v4284, 64
      %v4731 = vpop.permute.xlu0 %4730
      %4732 = vrot.lane.b32.xlu0 %v4285, 64
      %v4733 = vpop.permute.xlu0 %4732
      %4734 = vrot.lane.b32.xlu0 %v4286, 64
      %v4735 = vpop.permute.xlu0 %4734
      %4800 = vrot.lane.b32.xlu0 %v4320, 64
      %v4801 = vpop.permute.xlu0 %4800
      %4802 = vrot.lane.b32.xlu0 %v4321, 64
      %v4803 = vpop.permute.xlu0 %4802
      %4804 = vrot.lane.b32.xlu0 %v4322, 64
      %v4805 = vpop.permute.xlu0 %4804
      %4806 = vrot.lane.b32.xlu0 %v4323, 64
      %v4807 = vpop.permute.xlu0 %4806
      %4808 = vrot.lane.b32.xlu0 %v4324, 64
      %v4809 = vpop.permute.xlu0 %4808
      %4810 = vrot.lane.b32.xlu0 %v4325, 64
      %v4811 = vpop.permute.xlu0 %4810
      %4812 = vrot.lane.b32.xlu0 %v4326, 64
      %v4813 = vpop.permute.xlu0 %4812
      %4814 = vrot.lane.b32.xlu0 %v4327, 64
      %v4815 = vpop.permute.xlu0 %4814
      %4816 = vrot.lane.b32.xlu0 %v4328, 64
      %v4817 = vpop.permute.xlu0 %4816
      %4818 = vrot.lane.b32.xlu0 %v4329, 64
      %v4819 = vpop.permute.xlu0 %4818
      %4820 = vrot.lane.b32.xlu0 %v4330, 64
      %v4821 = vpop.permute.xlu0 %4820
      %4822 = vrot.lane.b32.xlu0 %v4331, 64
      %v4823 = vpop.permute.xlu0 %4822
      %4824 = vrot.lane.b32.xlu0 %v4332, 64
      %v4825 = vpop.permute.xlu0 %4824
      %4826 = vrot.lane.b32.xlu0 %v4333, 64
      %v4827 = vpop.permute.xlu0 %4826
      %4828 = vrot.lane.b32.xlu0 %v4334, 64
      %v4829 = vpop.permute.xlu0 %4828
      %4830 = vrot.lane.b32.xlu0 %v4335, 64
      %v4831 = vpop.permute.xlu0 %4830
      %4832 = vrot.lane.b32.xlu0 %v4336, 64
      %v4833 = vpop.permute.xlu0 %4832
      %4834 = vrot.lane.b32.xlu0 %v4337, 64
      %v4835 = vpop.permute.xlu0 %4834
      %4836 = vrot.lane.b32.xlu0 %v4338, 64
      %v4837 = vpop.permute.xlu0 %4836
      %4838 = vrot.lane.b32.xlu0 %v4339, 64
      %v4839 = vpop.permute.xlu0 %4838
      %4840 = vrot.lane.b32.xlu0 %v4340, 64
      %v4841 = vpop.permute.xlu0 %4840
      %4842 = vrot.lane.b32.xlu0 %v4341, 64
      %v4843 = vpop.permute.xlu0 %4842
      %4844 = vrot.lane.b32.xlu0 %v4342, 64
      %v4845 = vpop.permute.xlu0 %4844
      %4846 = vrot.lane.b32.xlu0 %v4343, 64
      %v4847 = vpop.permute.xlu0 %4846
      %4848 = vrot.lane.b32.xlu0 %v4344, 64
      %v4849 = vpop.permute.xlu0 %4848
      %4850 = vrot.lane.b32.xlu0 %v4345, 64
      %v4851 = vpop.permute.xlu0 %4850
      %4852 = vrot.lane.b32.xlu0 %v4346, 64
      %v4853 = vpop.permute.xlu0 %4852
      %4854 = vrot.lane.b32.xlu0 %v4347, 64
      %v4855 = vpop.permute.xlu0 %4854
      %4856 = vrot.lane.b32.xlu0 %v4348, 64
      %v4857 = vpop.permute.xlu0 %4856
      %4858 = vrot.lane.b32.xlu0 %v4349, 64
      %v4859 = vpop.permute.xlu0 %4858
      %4860 = vrot.lane.b32.xlu0 %v4350, 64
      %v4861 = vpop.permute.xlu0 %4860
      %4862 = vrot.lane.b32.xlu0 %v4351, 64
      %v4863 = vpop.permute.xlu0 %4862
      %v4896 = vsel %vm390, %v4095, %v4417
      %v4897 = vsel %vm390, %v4096, %v4419
      %v4898 = vsel %vm390, %v4097, %v4421
      %v4899 = vsel %vm390, %v4098, %v4423
      %v4900 = vsel %vm390, %v4099, %v4425
      %v4901 = vsel %vm390, %v4100, %v4427
      %v4902 = vsel %vm390, %v4101, %v4429
      %v4903 = vsel %vm390, %v4102, %v4431
      %v4904 = vsel %vm390, %v4103, %v4433
      %v4905 = vsel %vm390, %v4104, %v4435
      %v4906 = vsel %vm390, %v4105, %v4437
      %v4907 = vsel %vm390, %v4106, %v4439
      %v4908 = vsel %vm390, %v4107, %v4441
      %v4909 = vsel %vm390, %v4108, %v4443
      %v4910 = vsel %vm390, %v4109, %v4445
      %v4911 = vsel %vm390, %v4110, %v4447
      %v4912 = vsel %vm390, %v4111, %v4449
      %v4913 = vsel %vm390, %v4112, %v4451
      %v4914 = vsel %vm390, %v4113, %v4453
      %v4915 = vsel %vm390, %v4114, %v4455
      %v4916 = vsel %vm390, %v4115, %v4457
      %v4917 = vsel %vm390, %v4116, %v4459
      %v4918 = vsel %vm390, %v4117, %v4461
      %v4919 = vsel %vm390, %v4118, %v4463
      %v4920 = vsel %vm390, %v4119, %v4465
      %v4921 = vsel %vm390, %v4120, %v4467
      %v4922 = vsel %vm390, %v4121, %v4469
      %v4923 = vsel %vm390, %v4122, %v4471
      %v4924 = vsel %vm390, %v4123, %v4473
      %v4925 = vsel %vm390, %v4124, %v4475
      %v4926 = vsel %vm390, %v4125, %v4477
      %v4927 = vsel %vm390, %v4126, %v4479
      %v4928 = vsel %vm390, %v4159, %v4545
      %v4929 = vsel %vm390, %v4160, %v4547
      %v4930 = vsel %vm390, %v4161, %v4549
      %v4931 = vsel %vm390, %v4162, %v4551
      %v4932 = vsel %vm390, %v4163, %v4553
      %v4933 = vsel %vm390, %v4164, %v4555
      %v4934 = vsel %vm390, %v4165, %v4557
      %v4935 = vsel %vm390, %v4166, %v4559
      %v4936 = vsel %vm390, %v4167, %v4561
      %v4937 = vsel %vm390, %v4168, %v4563
      %v4938 = vsel %vm390, %v4169, %v4565
      %v4939 = vsel %vm390, %v4170, %v4567
      %v4940 = vsel %vm390, %v4171, %v4569
      %v4941 = vsel %vm390, %v4172, %v4571
      %v4942 = vsel %vm390, %v4173, %v4573
      %v4943 = vsel %vm390, %v4174, %v4575
      %v4944 = vsel %vm390, %v4175, %v4577
      %v4945 = vsel %vm390, %v4176, %v4579
      %v4946 = vsel %vm390, %v4177, %v4581
      %v4947 = vsel %vm390, %v4178, %v4583
      %v4948 = vsel %vm390, %v4179, %v4585
      %v4949 = vsel %vm390, %v4180, %v4587
      %v4950 = vsel %vm390, %v4181, %v4589
      %v4951 = vsel %vm390, %v4182, %v4591
      %v4952 = vsel %vm390, %v4183, %v4593
      %v4953 = vsel %vm390, %v4184, %v4595
      %v4954 = vsel %vm390, %v4185, %v4597
      %v4955 = vsel %vm390, %v4186, %v4599
      %v4956 = vsel %vm390, %v4187, %v4601
      %v4957 = vsel %vm390, %v4188, %v4603
      %v4958 = vsel %vm390, %v4189, %v4605
      %v4959 = vsel %vm390, %v4190, %v4607
      %v4960 = vsel %vm390, %v4223, %v4673
      %v4961 = vsel %vm390, %v4224, %v4675
      %v4962 = vsel %vm390, %v4225, %v4677
      %v4963 = vsel %vm390, %v4226, %v4679
      %v4964 = vsel %vm390, %v4227, %v4681
      %v4965 = vsel %vm390, %v4228, %v4683
      %v4966 = vsel %vm390, %v4229, %v4685
      %v4967 = vsel %vm390, %v4230, %v4687
      %v4968 = vsel %vm390, %v4231, %v4689
      %v4969 = vsel %vm390, %v4232, %v4691
      %v4970 = vsel %vm390, %v4233, %v4693
      %v4971 = vsel %vm390, %v4234, %v4695
      %v4972 = vsel %vm390, %v4235, %v4697
      %v4973 = vsel %vm390, %v4236, %v4699
      %v4974 = vsel %vm390, %v4237, %v4701
      %v4975 = vsel %vm390, %v4238, %v4703
      %v4976 = vsel %vm390, %v4239, %v4705
      %v4977 = vsel %vm390, %v4240, %v4707
      %v4978 = vsel %vm390, %v4241, %v4709
      %v4979 = vsel %vm390, %v4242, %v4711
      %v4980 = vsel %vm390, %v4243, %v4713
      %v4981 = vsel %vm390, %v4244, %v4715
      %v4982 = vsel %vm390, %v4245, %v4717
      %v4983 = vsel %vm390, %v4246, %v4719
      %v4984 = vsel %vm390, %v4247, %v4721
      %v4985 = vsel %vm390, %v4248, %v4723
      %v4986 = vsel %vm390, %v4249, %v4725
      %v4987 = vsel %vm390, %v4250, %v4727
      %v4988 = vsel %vm390, %v4251, %v4729
      %v4989 = vsel %vm390, %v4252, %v4731
      %v4990 = vsel %vm390, %v4253, %v4733
      %v4991 = vsel %vm390, %v4254, %v4735
      %v4992 = vsel %vm390, %v4288, %v4801
      %v4993 = vsel %vm390, %v4289, %v4803
      %v4994 = vsel %vm390, %v4290, %v4805
      %v4995 = vsel %vm390, %v4291, %v4807
      %v4996 = vsel %vm390, %v4292, %v4809
      %v4997 = vsel %vm390, %v4293, %v4811
      %v4998 = vsel %vm390, %v4294, %v4813
      %v4999 = vsel %vm390, %v4295, %v4815
      %v5000 = vsel %vm390, %v4296, %v4817
      %v5001 = vsel %vm390, %v4297, %v4819
      %v5002 = vsel %vm390, %v4298, %v4821
      %v5003 = vsel %vm390, %v4299, %v4823
      %v5004 = vsel %vm390, %v4300, %v4825
      %v5005 = vsel %vm390, %v4301, %v4827
      %v5006 = vsel %vm390, %v4302, %v4829
      %v5007 = vsel %vm390, %v4303, %v4831
      %v5008 = vsel %vm390, %v4304, %v4833
      %v5009 = vsel %vm390, %v4305, %v4835
      %v5010 = vsel %vm390, %v4306, %v4837
      %v5011 = vsel %vm390, %v4307, %v4839
      %v5012 = vsel %vm390, %v4308, %v4841
      %v5013 = vsel %vm390, %v4309, %v4843
      %v5014 = vsel %vm390, %v4310, %v4845
      %v5015 = vsel %vm390, %v4311, %v4847
      %v5016 = vsel %vm390, %v4312, %v4849
      %v5017 = vsel %vm390, %v4313, %v4851
      %v5018 = vsel %vm390, %v4314, %v4853
      %v5019 = vsel %vm390, %v4315, %v4855
      %v5020 = vsel %vm390, %v4316, %v4857
      %v5021 = vsel %vm390, %v4317, %v4859
      %v5022 = vsel %vm390, %v4318, %v4861
      %v5023 = vsel %vm390, %v4319, %v4863
      %v5024 = vpack.c.bf16 %v4897, %v4896
      %v5025 = vpack.c.bf16 %v4929, %v4928
      %v5026 = vpack.c.bf16 %v4961, %v4960
      %v5027 = vpack.c.bf16 %v4993, %v4992
      %v5028 = vpack.c.bf16 %v4353, %v4352
      %v5029 = vpack.c.bf16 %v4899, %v4898
      %v5030 = vpack.c.bf16 %v4931, %v4930
      %v5031 = vpack.c.bf16 %v4963, %v4962
      %v5032 = vpack.c.bf16 %v4995, %v4994
      %v5033 = vpack.c.bf16 %v4355, %v4354
      %v5034 = vpack.c.bf16 %v4901, %v4900
      %v5035 = vpack.c.bf16 %v4933, %v4932
      %v5036 = vpack.c.bf16 %v4965, %v4964
      %v5037 = vpack.c.bf16 %v4997, %v4996
      %v5038 = vpack.c.bf16 %v4357, %v4356
      %v5039 = vpack.c.bf16 %v4903, %v4902
      %v5040 = vpack.c.bf16 %v4935, %v4934
      %v5041 = vpack.c.bf16 %v4967, %v4966
      %v5042 = vpack.c.bf16 %v4999, %v4998
      %v5043 = vpack.c.bf16 %v4359, %v4358
      %v5044 = vpack.c.bf16 %v4905, %v4904
      %v5045 = vpack.c.bf16 %v4937, %v4936
      %v5046 = vpack.c.bf16 %v4969, %v4968
      %v5047 = vpack.c.bf16 %v5001, %v5000
      %v5048 = vpack.c.bf16 %v4361, %v4360
      %v5049 = vpack.c.bf16 %v4907, %v4906
      %v5050 = vpack.c.bf16 %v4939, %v4938
      %v5051 = vpack.c.bf16 %v4971, %v4970
      %v5052 = vpack.c.bf16 %v5003, %v5002
      %v5053 = vpack.c.bf16 %v4363, %v4362
      %v5054 = vpack.c.bf16 %v4909, %v4908
      %v5055 = vpack.c.bf16 %v4941, %v4940
      %v5056 = vpack.c.bf16 %v4973, %v4972
      %v5057 = vpack.c.bf16 %v5005, %v5004
      %v5058 = vpack.c.bf16 %v4365, %v4364
      %v5059 = vpack.c.bf16 %v4911, %v4910
      %v5060 = vpack.c.bf16 %v4943, %v4942
      %v5061 = vpack.c.bf16 %v4975, %v4974
      %v5062 = vpack.c.bf16 %v5007, %v5006
      %v5063 = vpack.c.bf16 %v4367, %v4366
      %v5064 = vpack.c.bf16 %v4913, %v4912
      %v5065 = vpack.c.bf16 %v4945, %v4944
      %v5066 = vpack.c.bf16 %v4977, %v4976
      %v5067 = vpack.c.bf16 %v5009, %v5008
      %v5068 = vpack.c.bf16 %v4369, %v4368
      %v5069 = vpack.c.bf16 %v4915, %v4914
      %v5070 = vpack.c.bf16 %v4947, %v4946
      %v5071 = vpack.c.bf16 %v4979, %v4978
      %v5072 = vpack.c.bf16 %v5011, %v5010
      %v5073 = vpack.c.bf16 %v4371, %v4370
      %v5074 = vpack.c.bf16 %v4917, %v4916
      %v5075 = vpack.c.bf16 %v4949, %v4948
      %v5076 = vpack.c.bf16 %v4981, %v4980
      %v5077 = vpack.c.bf16 %v5013, %v5012
      %v5078 = vpack.c.bf16 %v4373, %v4372
      %v5079 = vpack.c.bf16 %v4919, %v4918
      %v5080 = vpack.c.bf16 %v4951, %v4950
      %v5081 = vpack.c.bf16 %v4983, %v4982
      %v5082 = vpack.c.bf16 %v5015, %v5014
      %v5083 = vpack.c.bf16 %v4375, %v4374
      %v5084 = vpack.c.bf16 %v4921, %v4920
      %v5085 = vpack.c.bf16 %v4953, %v4952
      %v5086 = vpack.c.bf16 %v4985, %v4984
      %v5087 = vpack.c.bf16 %v5017, %v5016
      %v5088 = vpack.c.bf16 %v4377, %v4376
      %v5089 = vpack.c.bf16 %v4923, %v4922
      %v5090 = vpack.c.bf16 %v4955, %v4954
      %v5091 = vpack.c.bf16 %v4987, %v4986
      %v5092 = vpack.c.bf16 %v5019, %v5018
      %v5093 = vpack.c.bf16 %v4379, %v4378
      %v5094 = vpack.c.bf16 %v4925, %v4924
      %v5095 = vpack.c.bf16 %v4957, %v4956
      %v5096 = vpack.c.bf16 %v4989, %v4988
      %v5097 = vpack.c.bf16 %v5021, %v5020
      %v5098 = vpack.c.bf16 %v4381, %v4380
      %v5099 = vpack.c.bf16 %v4927, %v4926
      %v5100 = vpack.c.bf16 %v4959, %v4958
      %v5101 = vpack.c.bf16 %v4991, %v4990
      %v5102 = vpack.c.bf16 %v5023, %v5022
      %v5103 = vpack.c.bf16 %v4383, %v4382
      %v5104 = vld [vmem:[%s5] sm:$0xf]
      %v5105 = vld [vmem:[%s5 + $0x4] sm:$0xf]
      %v5106 = vld [vmem:[%s5 + $0x8] sm:$0xf]
      %v5107 = vld [vmem:[%s5 + $0xc] sm:$0xf]
      %v5108 = vld [vmem:[%s5 + $0x10] sm:$0xf]
      %v5109 = vld [vmem:[%s5 + $0x14] sm:$0xf]
      %v5110 = vld [vmem:[%s5 + $0x18] sm:$0xf]
      %v5111 = vld [vmem:[%s5 + $0x1c] sm:$0xf]
      %v5112 = vld [vmem:[%s5 + $0x20] sm:$0xf]
      %v5113 = vld [vmem:[%s5 + $0x24] sm:$0xf]
      %v5114 = vld [vmem:[%s5 + $0x28] sm:$0xf]
      %v5115 = vld [vmem:[%s5 + $0x2c] sm:$0xf]
      %v5116 = vld [vmem:[%s5 + $0x30] sm:$0xf]
      %v5117 = vld [vmem:[%s5 + $0x34] sm:$0xf]
      %v5118 = vld [vmem:[%s5 + $0x38] sm:$0xf]
      %v5119 = vld [vmem:[%s5 + $0x3c] sm:$0xf]
      %v5120 = vld [vmem:[%s5 + $0x40] sm:$0xf]
      %v5121 = vld [vmem:[%s5 + $0x44] sm:$0xf]
      %v5122 = vld [vmem:[%s5 + $0x48] sm:$0xf]
      %v5123 = vld [vmem:[%s5 + $0x4c] sm:$0xf]
      %v5124 = vld [vmem:[%s5 + $0x50] sm:$0xf]
      %v5125 = vld [vmem:[%s5 + $0x54] sm:$0xf]
      %v5126 = vld [vmem:[%s5 + $0x58] sm:$0xf]
      %v5127 = vld [vmem:[%s5 + $0x5c] sm:$0xf]
      %v5128 = vld [vmem:[%s5 + $0x60] sm:$0xf]
      %v5129 = vld [vmem:[%s5 + $0x64] sm:$0xf]
      %v5130 = vld [vmem:[%s5 + $0x68] sm:$0xf]
      %v5131 = vld [vmem:[%s5 + $0x6c] sm:$0xf]
      %v5132 = vld [vmem:[%s5 + $0x70] sm:$0xf]
      %v5133 = vld [vmem:[%s5 + $0x74] sm:$0xf]
      %v5134 = vld [vmem:[%s5 + $0x78] sm:$0xf]
      %v5135 = vld [vmem:[%s5 + $0x7c] sm:$0xf]
      %v5136 = vld [vmem:[%s5 + $0x80] sm:$0xf]
      %v5137 = vld [vmem:[%s5 + $0x84] sm:$0xf]
      %v5138 = vld [vmem:[%s5 + $0x88] sm:$0xf]
      %v5139 = vld [vmem:[%s5 + $0x8c] sm:$0xf]
      %v5140 = vld [vmem:[%s5 + $0x90] sm:$0xf]
      %v5141 = vld [vmem:[%s5 + $0x94] sm:$0xf]
      %v5142 = vld [vmem:[%s5 + $0x98] sm:$0xf]
      %v5143 = vld [vmem:[%s5 + $0x9c] sm:$0xf]
      %v5144 = vld [vmem:[%s5 + $0xa0] sm:$0xf]
      %v5145 = vld [vmem:[%s5 + $0xa4] sm:$0xf]
      %v5146 = vld [vmem:[%s5 + $0xa8] sm:$0xf]
      %v5147 = vld [vmem:[%s5 + $0xac] sm:$0xf]
      %v5148 = vld [vmem:[%s5 + $0xb0] sm:$0xf]
      %v5149 = vld [vmem:[%s5 + $0xb4] sm:$0xf]
      %v5150 = vld [vmem:[%s5 + $0xb8] sm:$0xf]
      %v5151 = vld [vmem:[%s5 + $0xbc] sm:$0xf]
      %v5152 = vld [vmem:[%s5 + $0xc0] sm:$0xf]
      %v5153 = vld [vmem:[%s5 + $0xc4] sm:$0xf]
      %v5154 = vld [vmem:[%s5 + $0xc8] sm:$0xf]
      %v5155 = vld [vmem:[%s5 + $0xcc] sm:$0xf]
      %v5156 = vld [vmem:[%s5 + $0xd0] sm:$0xf]
      %v5157 = vld [vmem:[%s5 + $0xd4] sm:$0xf]
      %v5158 = vld [vmem:[%s5 + $0xd8] sm:$0xf]
      %v5159 = vld [vmem:[%s5 + $0xdc] sm:$0xf]
      %v5160 = vld [vmem:[%s5 + $0xe0] sm:$0xf]
      %v5161 = vld [vmem:[%s5 + $0xe4] sm:$0xf]
      %v5162 = vld [vmem:[%s5 + $0xe8] sm:$0xf]
      %v5163 = vld [vmem:[%s5 + $0xec] sm:$0xf]
      %v5164 = vld [vmem:[%s5 + $0xf0] sm:$0xf]
      %v5165 = vld [vmem:[%s5 + $0xf4] sm:$0xf]
      %v5166 = vld [vmem:[%s5 + $0xf8] sm:$0xf]
      %v5167 = vld [vmem:[%s5 + $0xfc] sm:$0xf]
      %v5168 = vld [vmem:[%s5 + $0x100] sm:$0xf]
      %v5169 = vld [vmem:[%s5 + $0x104] sm:$0xf]
      %v5170 = vld [vmem:[%s5 + $0x108] sm:$0xf]
      %v5171 = vld [vmem:[%s5 + $0x10c] sm:$0xf]
      %v5172 = vld [vmem:[%s5 + $0x110] sm:$0xf]
      %v5173 = vld [vmem:[%s5 + $0x114] sm:$0xf]
      %v5174 = vld [vmem:[%s5 + $0x118] sm:$0xf]
      %v5175 = vld [vmem:[%s5 + $0x11c] sm:$0xf]
      %v5176 = vld [vmem:[%s6] sm:$0x1]
      %v5178 = vperm.slane %v5176, 0
      %v5252 = vunpack.c.l.b16 %v5104
      %v5253 = vunpack.c.l.b16 %v5105
      %v5254 = vunpack.c.l.b16 %v5106
      %v5255 = vunpack.c.l.b16 %v5107
      %v5256 = vunpack.c.l.b16 %v5108
      %v5257 = vunpack.c.l.b16 %v5109
      %v5258 = vunpack.c.l.b16 %v5110
      %v5259 = vunpack.c.l.b16 %v5111
      %v5260 = vunpack.c.l.b16 %v5112
      %v5261 = vunpack.c.l.b16 %v5113
      %v5262 = vunpack.c.l.b16 %v5114
      %v5263 = vunpack.c.l.b16 %v5115
      %v5264 = vunpack.c.l.b16 %v5116
      %v5265 = vunpack.c.l.b16 %v5117
      %v5266 = vunpack.c.l.b16 %v5118
      %v5267 = vunpack.c.l.b16 %v5119
      %v5268 = vunpack.c.l.b16 %v5120
      %v5269 = vunpack.c.l.b16 %v5121
      %v5270 = vunpack.c.l.b16 %v5122
      %v5271 = vunpack.c.l.b16 %v5123
      %v5272 = vunpack.c.l.b16 %v5124
      %v5273 = vunpack.c.l.b16 %v5125
      %v5274 = vunpack.c.l.b16 %v5126
      %v5275 = vunpack.c.l.b16 %v5127
      %v5276 = vunpack.c.l.b16 %v5128
      %v5277 = vunpack.c.l.b16 %v5129
      %v5278 = vunpack.c.l.b16 %v5130
      %v5279 = vunpack.c.l.b16 %v5131
      %v5280 = vunpack.c.l.b16 %v5132
      %v5281 = vunpack.c.l.b16 %v5133
      %v5282 = vunpack.c.l.b16 %v5134
      %v5283 = vunpack.c.l.b16 %v5135
      %v5284 = vunpack.c.l.b16 %v5136
      %v5285 = vunpack.c.l.b16 %v5137
      %v5286 = vunpack.c.l.b16 %v5138
      %v5287 = vunpack.c.l.b16 %v5139
      %v5288 = vunpack.c.l.b16 %v5140
      %v5289 = vunpack.c.l.b16 %v5141
      %v5290 = vunpack.c.l.b16 %v5142
      %v5291 = vunpack.c.l.b16 %v5143
      %v5292 = vunpack.c.l.b16 %v5144
      %v5293 = vunpack.c.l.b16 %v5145
      %v5294 = vunpack.c.l.b16 %v5146
      %v5295 = vunpack.c.l.b16 %v5147
      %v5296 = vunpack.c.l.b16 %v5148
      %v5297 = vunpack.c.l.b16 %v5149
      %v5298 = vunpack.c.l.b16 %v5150
      %v5299 = vunpack.c.l.b16 %v5151
      %v5300 = vunpack.c.l.b16 %v5152
      %v5301 = vunpack.c.l.b16 %v5153
      %v5302 = vunpack.c.l.b16 %v5154
      %v5303 = vunpack.c.l.b16 %v5155
      %v5304 = vunpack.c.l.b16 %v5156
      %v5305 = vunpack.c.l.b16 %v5157
      %v5306 = vunpack.c.l.b16 %v5158
      %v5307 = vunpack.c.l.b16 %v5159
      %v5308 = vunpack.c.l.b16 %v5160
      %v5309 = vunpack.c.l.b16 %v5161
      %v5310 = vunpack.c.l.b16 %v5162
      %v5311 = vunpack.c.l.b16 %v5163
      %v5312 = vunpack.c.l.b16 %v5164
      %v5313 = vunpack.c.l.b16 %v5165
      %v5314 = vunpack.c.l.b16 %v5166
      %v5315 = vunpack.c.l.b16 %v5167
      %v5316 = vunpack.c.l.b16 %v5168
      %v5317 = vunpack.c.l.b16 %v5169
      %v5318 = vunpack.c.l.b16 %v5170
      %v5319 = vunpack.c.l.b16 %v5171
      %v5320 = vunpack.c.l.b16 %v5172
      %v5321 = vunpack.c.l.b16 %v5173
      %v5322 = vunpack.c.l.b16 %v5174
      %v5323 = vunpack.c.l.b16 %v5175
      %v5324 = vpack.c.b16 %v5253, %v5252
      %v5325 = vpack.c.b16 %v5255, %v5254
      %v5326 = vpack.c.b16 %v5257, %v5256
      %v5327 = vpack.c.b16 %v5259, %v5258
      %v5328 = vpack.c.b16 %v5261, %v5260
      %v5329 = vpack.c.b16 %v5263, %v5262
      %v5330 = vpack.c.b16 %v5265, %v5264
      %v5331 = vpack.c.b16 %v5267, %v5266
      %v5332 = vpack.c.b16 %v5269, %v5268
      %v5333 = vpack.c.b16 %v5271, %v5270
      %v5334 = vpack.c.b16 %v5273, %v5272
      %v5335 = vpack.c.b16 %v5275, %v5274
      %v5336 = vpack.c.b16 %v5277, %v5276
      %v5337 = vpack.c.b16 %v5279, %v5278
      %v5338 = vpack.c.b16 %v5281, %v5280
      %v5339 = vpack.c.b16 %v5283, %v5282
      %v5340 = vpack.c.b16 %v5285, %v5284
      %v5341 = vpack.c.b16 %v5287, %v5286
      %v5342 = vpack.c.b16 %v5289, %v5288
      %v5343 = vpack.c.b16 %v5291, %v5290
      %v5344 = vpack.c.b16 %v5293, %v5292
      %v5345 = vpack.c.b16 %v5295, %v5294
      %v5346 = vpack.c.b16 %v5297, %v5296
      %v5347 = vpack.c.b16 %v5299, %v5298
      %v5348 = vpack.c.b16 %v5301, %v5300
      %v5349 = vpack.c.b16 %v5303, %v5302
      %v5350 = vpack.c.b16 %v5305, %v5304
      %v5351 = vpack.c.b16 %v5307, %v5306
      %v5352 = vpack.c.b16 %v5309, %v5308
      %v5353 = vpack.c.b16 %v5311, %v5310
      %v5354 = vpack.c.b16 %v5313, %v5312
      %v5355 = vpack.c.b16 %v5315, %v5314
      %v5356 = vpack.c.b16 %v5317, %v5316
      %v5357 = vpack.c.b16 %v5319, %v5318
      %v5358 = vpack.c.b16 %v5321, %v5320
      %v5359 = vpack.c.b16 %v5323, %v5322
      %v5397 = vsel %vm390, %v5028, 0
      %v5400 = vsel %vm390, %v5033, 0
      %v5403 = vsel %vm390, %v5038, 0
      %v5406 = vsel %vm390, %v5043, 0
      %v5409 = vsel %vm390, %v5048, 0
      %v5412 = vsel %vm390, %v5053, 0
      %v5415 = vsel %vm390, %v5058, 0
      %v5418 = vsel %vm390, %v5063, 0
      %v5421 = vsel %vm390, %v5068, 0
      %v5424 = vsel %vm390, %v5073, 0
      %v5427 = vsel %vm390, %v5078, 0
      %v5430 = vsel %vm390, %v5083, 0
      %v5433 = vsel %vm390, %v5088, 0
      %v5436 = vsel %vm390, %v5093, 0
      %v5439 = vsel %vm390, %v5098, 0
      %v5442 = vsel %vm390, %v5103, 0
      %5444 = vmatpush.bf16.msra.mxu0 %v5331
      %5445 = vmatpush.bf16.msra.mxu0 %v5330
      %5446 = vmatpush.bf16.msra.mxu0 %v5329
      %5447 = vmatpush.bf16.msra.mxu0 %v5328
      %5448 = vmatpush.bf16.msra.mxu0 %v5327
      %5449 = vmatpush.bf16.msra.mxu0 %v5326
      %5450 = vmatpush.bf16.msra.mxu0 %v5325
      %5451 = vmatpush.bf16.msra.mxu0 %v5324
      %5452 = vmatmul.bf16.gmra.mxu0 %v5024
      %v5453 = vpop.f32.mrf.mxu0
      %v5454 = vadd.f32 %v5178, %v5453
      %v5455 = vpop.f32.mrf.mxu0
      %v5456 = vadd.f32 %v5178, %v5455
      %5457 = vmatmul.bf16.gmra.mxu0 %v5029
      %v5458 = vpop.f32.mrf.mxu0
      %v5459 = vadd.f32 %v5178, %v5458
      %v5460 = vpop.f32.mrf.mxu0
      %v5461 = vadd.f32 %v5178, %v5460
      %5462 = vmatmul.bf16.gmra.mxu0 %v5034
      %v5463 = vpop.f32.mrf.mxu0
      %v5464 = vadd.f32 %v5178, %v5463
      %v5465 = vpop.f32.mrf.mxu0
      %v5466 = vadd.f32 %v5178, %v5465
      %5467 = vmatmul.bf16.gmra.mxu0 %v5039
      %v5468 = vpop.f32.mrf.mxu0
      %v5469 = vadd.f32 %v5178, %v5468
      %v5470 = vpop.f32.mrf.mxu0
      %v5471 = vadd.f32 %v5178, %v5470
      %5472 = vmatmul.bf16.gmra.mxu0 %v5044
      %v5473 = vpop.f32.mrf.mxu0
      %v5474 = vadd.f32 %v5178, %v5473
      %v5475 = vpop.f32.mrf.mxu0
      %v5476 = vadd.f32 %v5178, %v5475
      %5477 = vmatmul.bf16.gmra.mxu0 %v5049
      %v5478 = vpop.f32.mrf.mxu0
      %v5479 = vadd.f32 %v5178, %v5478
      %v5480 = vpop.f32.mrf.mxu0
      %v5481 = vadd.f32 %v5178, %v5480
      %5482 = vmatmul.bf16.gmra.mxu0 %v5054
      %v5483 = vpop.f32.mrf.mxu0
      %v5484 = vadd.f32 %v5178, %v5483
      %v5485 = vpop.f32.mrf.mxu0
      %v5486 = vadd.f32 %v5178, %v5485
      %5487 = vmatmul.bf16.gmra.mxu0 %v5059
      %v5488 = vpop.f32.mrf.mxu0
      %v5489 = vadd.f32 %v5178, %v5488
      %v5490 = vpop.f32.mrf.mxu0
      %v5491 = vadd.f32 %v5178, %v5490
      %5492 = vmatmul.bf16.gmra.mxu0 %v5064
      %v5493 = vpop.f32.mrf.mxu0
      %v5494 = vadd.f32 %v5178, %v5493
      %v5495 = vpop.f32.mrf.mxu0
      %v5496 = vadd.f32 %v5178, %v5495
      %5497 = vmatmul.bf16.gmra.mxu0 %v5069
      %v5498 = vpop.f32.mrf.mxu0
      %v5499 = vadd.f32 %v5178, %v5498
      %v5500 = vpop.f32.mrf.mxu0
      %v5501 = vadd.f32 %v5178, %v5500
      %5502 = vmatmul.bf16.gmra.mxu0 %v5074
      %v5503 = vpop.f32.mrf.mxu0
      %v5504 = vadd.f32 %v5178, %v5503
      %v5505 = vpop.f32.mrf.mxu0
      %v5506 = vadd.f32 %v5178, %v5505
      %5507 = vmatmul.bf16.gmra.mxu0 %v5079
      %v5508 = vpop.f32.mrf.mxu0
      %v5509 = vadd.f32 %v5178, %v5508
      %v5510 = vpop.f32.mrf.mxu0
      %v5511 = vadd.f32 %v5178, %v5510
      %5512 = vmatmul.bf16.gmra.mxu0 %v5084
      %v5513 = vpop.f32.mrf.mxu0
      %v5514 = vadd.f32 %v5178, %v5513
      %v5515 = vpop.f32.mrf.mxu0
      %v5516 = vadd.f32 %v5178, %v5515
      %5517 = vmatmul.bf16.gmra.mxu0 %v5089
      %v5518 = vpop.f32.mrf.mxu0
      %v5519 = vadd.f32 %v5178, %v5518
      %v5520 = vpop.f32.mrf.mxu0
      %v5521 = vadd.f32 %v5178, %v5520
      %5522 = vmatmul.bf16.gmra.mxu0 %v5094
      %v5523 = vpop.f32.mrf.mxu0
      %v5524 = vadd.f32 %v5178, %v5523
      %v5525 = vpop.f32.mrf.mxu0
      %v5526 = vadd.f32 %v5178, %v5525
      %5527 = vmatmul.bf16.gmra.mxu0 %v5099
      %v5528 = vpop.f32.mrf.mxu0
      %v5529 = vadd.f32 %v5178, %v5528
      %v5530 = vpop.f32.mrf.mxu0
      %v5531 = vadd.f32 %v5178, %v5530
      %5532 = vdwg.mxu0
      %5533 = vmatpush.bf16.msra.mxu0 %v5339
      %5534 = vmatpush.bf16.msra.mxu0 %v5338
      %5535 = vmatpush.bf16.msra.mxu0 %v5337
      %5536 = vmatpush.bf16.msra.mxu0 %v5336
      %5537 = vmatpush.bf16.msra.mxu0 %v5335
      %5538 = vmatpush.bf16.msra.mxu0 %v5334
      %5539 = vmatpush.bf16.msra.mxu0 %v5333
      %5540 = vmatpush.bf16.msra.mxu0 %v5332
      %5541 = vmatmul.bf16.gmra.mxu0 %v5025
      %v5542 = vpop.f32.mrf.mxu0
      %v5543 = vadd.f32 %v5454, %v5542
      %v5544 = vpop.f32.mrf.mxu0
      %v5545 = vadd.f32 %v5456, %v5544
      %5546 = vmatmul.bf16.gmra.mxu0 %v5030
      %v5547 = vpop.f32.mrf.mxu0
      %v5548 = vadd.f32 %v5459, %v5547
      %v5549 = vpop.f32.mrf.mxu0
      %v5550 = vadd.f32 %v5461, %v5549
      %5551 = vmatmul.bf16.gmra.mxu0 %v5035
      %v5552 = vpop.f32.mrf.mxu0
      %v5553 = vadd.f32 %v5464, %v5552
      %v5554 = vpop.f32.mrf.mxu0
      %v5555 = vadd.f32 %v5466, %v5554
      %5556 = vmatmul.bf16.gmra.mxu0 %v5040
      %v5557 = vpop.f32.mrf.mxu0
      %v5558 = vadd.f32 %v5469, %v5557
      %v5559 = vpop.f32.mrf.mxu0
      %v5560 = vadd.f32 %v5471, %v5559
      %5561 = vmatmul.bf16.gmra.mxu0 %v5045
      %v5562 = vpop.f32.mrf.mxu0
      %v5563 = vadd.f32 %v5474, %v5562
      %v5564 = vpop.f32.mrf.mxu0
      %v5565 = vadd.f32 %v5476, %v5564
      %5566 = vmatmul.bf16.gmra.mxu0 %v5050
      %v5567 = vpop.f32.mrf.mxu0
      %v5568 = vadd.f32 %v5479, %v5567
      %v5569 = vpop.f32.mrf.mxu0
      %v5570 = vadd.f32 %v5481, %v5569
      %5571 = vmatmul.bf16.gmra.mxu0 %v5055
      %v5572 = vpop.f32.mrf.mxu0
      %v5573 = vadd.f32 %v5484, %v5572
      %v5574 = vpop.f32.mrf.mxu0
      %v5575 = vadd.f32 %v5486, %v5574
      %5576 = vmatmul.bf16.gmra.mxu0 %v5060
      %v5577 = vpop.f32.mrf.mxu0
      %v5578 = vadd.f32 %v5489, %v5577
      %v5579 = vpop.f32.mrf.mxu0
      %v5580 = vadd.f32 %v5491, %v5579
      %5581 = vmatmul.bf16.gmra.mxu0 %v5065
      %v5582 = vpop.f32.mrf.mxu0
      %v5583 = vadd.f32 %v5494, %v5582
      %v5584 = vpop.f32.mrf.mxu0
      %v5585 = vadd.f32 %v5496, %v5584
      %5586 = vmatmul.bf16.gmra.mxu0 %v5070
      %v5587 = vpop.f32.mrf.mxu0
      %v5588 = vadd.f32 %v5499, %v5587
      %v5589 = vpop.f32.mrf.mxu0
      %v5590 = vadd.f32 %v5501, %v5589
      %5591 = vmatmul.bf16.gmra.mxu0 %v5075
      %v5592 = vpop.f32.mrf.mxu0
      %v5593 = vadd.f32 %v5504, %v5592
      %v5594 = vpop.f32.mrf.mxu0
      %v5595 = vadd.f32 %v5506, %v5594
      %5596 = vmatmul.bf16.gmra.mxu0 %v5080
      %v5597 = vpop.f32.mrf.mxu0
      %v5598 = vadd.f32 %v5509, %v5597
      %v5599 = vpop.f32.mrf.mxu0
      %v5600 = vadd.f32 %v5511, %v5599
      %5601 = vmatmul.bf16.gmra.mxu0 %v5085
      %v5602 = vpop.f32.mrf.mxu0
      %v5603 = vadd.f32 %v5514, %v5602
      %v5604 = vpop.f32.mrf.mxu0
      %v5605 = vadd.f32 %v5516, %v5604
      %5606 = vmatmul.bf16.gmra.mxu0 %v5090
      %v5607 = vpop.f32.mrf.mxu0
      %v5608 = vadd.f32 %v5519, %v5607
      %v5609 = vpop.f32.mrf.mxu0
      %v5610 = vadd.f32 %v5521, %v5609
      %5611 = vmatmul.bf16.gmra.mxu0 %v5095
      %v5612 = vpop.f32.mrf.mxu0
      %v5613 = vadd.f32 %v5524, %v5612
      %v5614 = vpop.f32.mrf.mxu0
      %v5615 = vadd.f32 %v5526, %v5614
      %5616 = vmatmul.bf16.gmra.mxu0 %v5100
      %v5617 = vpop.f32.mrf.mxu0
      %v5618 = vadd.f32 %v5529, %v5617
      %v5619 = vpop.f32.mrf.mxu0
      %v5620 = vadd.f32 %v5531, %v5619
      %5621 = vdwg.mxu0
      %5622 = vmatpush.bf16.msra.mxu0 %v5347
      %5623 = vmatpush.bf16.msra.mxu0 %v5346
      %5624 = vmatpush.bf16.msra.mxu0 %v5345
      %5625 = vmatpush.bf16.msra.mxu0 %v5344
      %5626 = vmatpush.bf16.msra.mxu0 %v5343
      %5627 = vmatpush.bf16.msra.mxu0 %v5342
      %5628 = vmatpush.bf16.msra.mxu0 %v5341
      %5629 = vmatpush.bf16.msra.mxu0 %v5340
      %5630 = vmatmul.bf16.gmra.mxu0 %v5026
      %v5631 = vpop.f32.mrf.mxu0
      %v5632 = vadd.f32 %v5543, %v5631
      %v5633 = vpop.f32.mrf.mxu0
      %v5634 = vadd.f32 %v5545, %v5633
      %5635 = vmatmul.bf16.gmra.mxu0 %v5031
      %v5636 = vpop.f32.mrf.mxu0
      %v5637 = vadd.f32 %v5548, %v5636
      %v5638 = vpop.f32.mrf.mxu0
      %v5639 = vadd.f32 %v5550, %v5638
      %5640 = vmatmul.bf16.gmra.mxu0 %v5036
      %v5641 = vpop.f32.mrf.mxu0
      %v5642 = vadd.f32 %v5553, %v5641
      %v5643 = vpop.f32.mrf.mxu0
      %v5644 = vadd.f32 %v5555, %v5643
      %5645 = vmatmul.bf16.gmra.mxu0 %v5041
      %v5646 = vpop.f32.mrf.mxu0
      %v5647 = vadd.f32 %v5558, %v5646
      %v5648 = vpop.f32.mrf.mxu0
      %v5649 = vadd.f32 %v5560, %v5648
      %5650 = vmatmul.bf16.gmra.mxu0 %v5046
      %v5651 = vpop.f32.mrf.mxu0
      %v5652 = vadd.f32 %v5563, %v5651
      %v5653 = vpop.f32.mrf.mxu0
      %v5654 = vadd.f32 %v5565, %v5653
      %5655 = vmatmul.bf16.gmra.mxu0 %v5051
      %v5656 = vpop.f32.mrf.mxu0
      %v5657 = vadd.f32 %v5568, %v5656
      %v5658 = vpop.f32.mrf.mxu0
      %v5659 = vadd.f32 %v5570, %v5658
      %5660 = vmatmul.bf16.gmra.mxu0 %v5056
      %v5661 = vpop.f32.mrf.mxu0
      %v5662 = vadd.f32 %v5573, %v5661
      %v5663 = vpop.f32.mrf.mxu0
      %v5664 = vadd.f32 %v5575, %v5663
      %5665 = vmatmul.bf16.gmra.mxu0 %v5061
      %v5666 = vpop.f32.mrf.mxu0
      %v5667 = vadd.f32 %v5578, %v5666
      %v5668 = vpop.f32.mrf.mxu0
      %v5669 = vadd.f32 %v5580, %v5668
      %5670 = vmatmul.bf16.gmra.mxu0 %v5066
      %v5671 = vpop.f32.mrf.mxu0
      %v5672 = vadd.f32 %v5583, %v5671
      %v5673 = vpop.f32.mrf.mxu0
      %v5674 = vadd.f32 %v5585, %v5673
      %5675 = vmatmul.bf16.gmra.mxu0 %v5071
      %v5676 = vpop.f32.mrf.mxu0
      %v5677 = vadd.f32 %v5588, %v5676
      %v5678 = vpop.f32.mrf.mxu0
      %v5679 = vadd.f32 %v5590, %v5678
      %5680 = vmatmul.bf16.gmra.mxu0 %v5076
      %v5681 = vpop.f32.mrf.mxu0
      %v5682 = vadd.f32 %v5593, %v5681
      %v5683 = vpop.f32.mrf.mxu0
      %v5684 = vadd.f32 %v5595, %v5683
      %5685 = vmatmul.bf16.gmra.mxu0 %v5081
      %v5686 = vpop.f32.mrf.mxu0
      %v5687 = vadd.f32 %v5598, %v5686
      %v5688 = vpop.f32.mrf.mxu0
      %v5689 = vadd.f32 %v5600, %v5688
      %5690 = vmatmul.bf16.gmra.mxu0 %v5086
      %v5691 = vpop.f32.mrf.mxu0
      %v5692 = vadd.f32 %v5603, %v5691
      %v5693 = vpop.f32.mrf.mxu0
      %v5694 = vadd.f32 %v5605, %v5693
      %5695 = vmatmul.bf16.gmra.mxu0 %v5091
      %v5696 = vpop.f32.mrf.mxu0
      %v5697 = vadd.f32 %v5608, %v5696
      %v5698 = vpop.f32.mrf.mxu0
      %v5699 = vadd.f32 %v5610, %v5698
      %5700 = vmatmul.bf16.gmra.mxu0 %v5096
      %v5701 = vpop.f32.mrf.mxu0
      %v5702 = vadd.f32 %v5613, %v5701
      %v5703 = vpop.f32.mrf.mxu0
      %v5704 = vadd.f32 %v5615, %v5703
      %5705 = vmatmul.bf16.gmra.mxu0 %v5101
      %v5706 = vpop.f32.mrf.mxu0
      %v5707 = vadd.f32 %v5618, %v5706
      %v5708 = vpop.f32.mrf.mxu0
      %v5709 = vadd.f32 %v5620, %v5708
      %5710 = vdwg.mxu0
      %5711 = vmatpush.bf16.msra.mxu0 %v5355
      %5712 = vmatpush.bf16.msra.mxu0 %v5354
      %5713 = vmatpush.bf16.msra.mxu0 %v5353
      %5714 = vmatpush.bf16.msra.mxu0 %v5352
      %5715 = vmatpush.bf16.msra.mxu0 %v5351
      %5716 = vmatpush.bf16.msra.mxu0 %v5350
      %5717 = vmatpush.bf16.msra.mxu0 %v5349
      %5718 = vmatpush.bf16.msra.mxu0 %v5348
      %5719 = vmatmul.bf16.gmra.mxu0 %v5027
      %v5720 = vpop.f32.mrf.mxu0
      %v5721 = vadd.f32 %v5632, %v5720
      %v5722 = vpop.f32.mrf.mxu0
      %v5723 = vadd.f32 %v5634, %v5722
      %5724 = vmatmul.bf16.gmra.mxu0 %v5032
      %v5725 = vpop.f32.mrf.mxu0
      %v5726 = vadd.f32 %v5637, %v5725
      %v5727 = vpop.f32.mrf.mxu0
      %v5728 = vadd.f32 %v5639, %v5727
      %5729 = vmatmul.bf16.gmra.mxu0 %v5037
      %v5730 = vpop.f32.mrf.mxu0
      %v5731 = vadd.f32 %v5642, %v5730
      %v5732 = vpop.f32.mrf.mxu0
      %v5733 = vadd.f32 %v5644, %v5732
      %5734 = vmatmul.bf16.gmra.mxu0 %v5042
      %v5735 = vpop.f32.mrf.mxu0
      %v5736 = vadd.f32 %v5647, %v5735
      %v5737 = vpop.f32.mrf.mxu0
      %v5738 = vadd.f32 %v5649, %v5737
      %5739 = vmatmul.bf16.gmra.mxu0 %v5047
      %v5740 = vpop.f32.mrf.mxu0
      %v5741 = vadd.f32 %v5652, %v5740
      %v5742 = vpop.f32.mrf.mxu0
      %v5743 = vadd.f32 %v5654, %v5742
      %5744 = vmatmul.bf16.gmra.mxu0 %v5052
      %v5745 = vpop.f32.mrf.mxu0
      %v5746 = vadd.f32 %v5657, %v5745
      %v5747 = vpop.f32.mrf.mxu0
      %v5748 = vadd.f32 %v5659, %v5747
      %5749 = vmatmul.bf16.gmra.mxu0 %v5057
      %v5750 = vpop.f32.mrf.mxu0
      %v5751 = vadd.f32 %v5662, %v5750
      %v5752 = vpop.f32.mrf.mxu0
      %v5753 = vadd.f32 %v5664, %v5752
      %5754 = vmatmul.bf16.gmra.mxu0 %v5062
      %v5755 = vpop.f32.mrf.mxu0
      %v5756 = vadd.f32 %v5667, %v5755
      %v5757 = vpop.f32.mrf.mxu0
      %v5758 = vadd.f32 %v5669, %v5757
      %5759 = vmatmul.bf16.gmra.mxu0 %v5067
      %v5760 = vpop.f32.mrf.mxu0
      %v5761 = vadd.f32 %v5672, %v5760
      %v5762 = vpop.f32.mrf.mxu0
      %v5763 = vadd.f32 %v5674, %v5762
      %5764 = vmatmul.bf16.gmra.mxu0 %v5072
      %v5765 = vpop.f32.mrf.mxu0
      %v5766 = vadd.f32 %v5677, %v5765
      %v5767 = vpop.f32.mrf.mxu0
      %v5768 = vadd.f32 %v5679, %v5767
      %5769 = vmatmul.bf16.gmra.mxu0 %v5077
      %v5770 = vpop.f32.mrf.mxu0
      %v5771 = vadd.f32 %v5682, %v5770
      %v5772 = vpop.f32.mrf.mxu0
      %v5773 = vadd.f32 %v5684, %v5772
      %5774 = vmatmul.bf16.gmra.mxu0 %v5082
      %v5775 = vpop.f32.mrf.mxu0
      %v5776 = vadd.f32 %v5687, %v5775
      %v5777 = vpop.f32.mrf.mxu0
      %v5778 = vadd.f32 %v5689, %v5777
      %5779 = vmatmul.bf16.gmra.mxu0 %v5087
      %v5780 = vpop.f32.mrf.mxu0
      %v5781 = vadd.f32 %v5692, %v5780
      %v5782 = vpop.f32.mrf.mxu0
      %v5783 = vadd.f32 %v5694, %v5782
      %5784 = vmatmul.bf16.gmra.mxu0 %v5092
      %v5785 = vpop.f32.mrf.mxu0
      %v5786 = vadd.f32 %v5697, %v5785
      %v5787 = vpop.f32.mrf.mxu0
      %v5788 = vadd.f32 %v5699, %v5787
      %5789 = vmatmul.bf16.gmra.mxu0 %v5097
      %v5790 = vpop.f32.mrf.mxu0
      %v5791 = vadd.f32 %v5702, %v5790
      %v5792 = vpop.f32.mrf.mxu0
      %v5793 = vadd.f32 %v5704, %v5792
      %5794 = vmatmul.bf16.gmra.mxu0 %v5102
      %v5795 = vpop.f32.mrf.mxu0
      %v5796 = vadd.f32 %v5707, %v5795
      %v5797 = vpop.f32.mrf.mxu0
      %v5798 = vadd.f32 %v5709, %v5797
      %5799 = vdwg.mxu0
      %5800 = vmatpush.bf16.msra.mxu0 0
      %5801 = vmatpush.bf16.msra.mxu0 0
      %5802 = vmatpush.bf16.msra.mxu0 0
      %5803 = vmatpush.bf16.msra.mxu0 0
      %5804 = vmatpush.bf16.msra.mxu0 %v5359
      %5805 = vmatpush.bf16.msra.mxu0 %v5358
      %5806 = vmatpush.bf16.msra.mxu0 %v5357
      %5807 = vmatpush.bf16.msra.mxu0 %v5356
      %5808 = vmatmul.bf16.gmra.mxu0 %v5397
      %v5809 = vpop.f32.mrf.mxu0
      %v5810 = vadd.f32 %v5721, %v5809
      %v5811 = vpop.f32.mrf.mxu0
      %v5812 = vadd.f32 %v5723, %v5811
      %5813 = vmatmul.bf16.gmra.mxu0 %v5400
      %v5814 = vpop.f32.mrf.mxu0
      %v5815 = vadd.f32 %v5726, %v5814
      %v5816 = vpop.f32.mrf.mxu0
      %v5817 = vadd.f32 %v5728, %v5816
      %5818 = vmatmul.bf16.gmra.mxu0 %v5403
      %v5819 = vpop.f32.mrf.mxu0
      %v5820 = vadd.f32 %v5731, %v5819
      %v5821 = vpop.f32.mrf.mxu0
      %v5822 = vadd.f32 %v5733, %v5821
      %5823 = vmatmul.bf16.gmra.mxu0 %v5406
      %v5824 = vpop.f32.mrf.mxu0
      %v5825 = vadd.f32 %v5736, %v5824
      %v5826 = vpop.f32.mrf.mxu0
      %v5827 = vadd.f32 %v5738, %v5826
      %5828 = vmatmul.bf16.gmra.mxu0 %v5409
      %v5829 = vpop.f32.mrf.mxu0
      %v5830 = vadd.f32 %v5741, %v5829
      %v5831 = vpop.f32.mrf.mxu0
      %v5832 = vadd.f32 %v5743, %v5831
      %5833 = vmatmul.bf16.gmra.mxu0 %v5412
      %v5834 = vpop.f32.mrf.mxu0
      %v5835 = vadd.f32 %v5746, %v5834
      %v5836 = vpop.f32.mrf.mxu0
      %v5837 = vadd.f32 %v5748, %v5836
      %5838 = vmatmul.bf16.gmra.mxu0 %v5415
      %v5839 = vpop.f32.mrf.mxu0
      %v5840 = vadd.f32 %v5751, %v5839
      %v5841 = vpop.f32.mrf.mxu0
      %v5842 = vadd.f32 %v5753, %v5841
      %5843 = vmatmul.bf16.gmra.mxu0 %v5418
      %v5844 = vpop.f32.mrf.mxu0
      %v5845 = vadd.f32 %v5756, %v5844
      %v5846 = vpop.f32.mrf.mxu0
      %v5847 = vadd.f32 %v5758, %v5846
      %5848 = vmatmul.bf16.gmra.mxu0 %v5421
      %v5849 = vpop.f32.mrf.mxu0
      %v5850 = vadd.f32 %v5761, %v5849
      %v5851 = vpop.f32.mrf.mxu0
      %v5852 = vadd.f32 %v5763, %v5851
      %5853 = vmatmul.bf16.gmra.mxu0 %v5424
      %v5854 = vpop.f32.mrf.mxu0
      %v5855 = vadd.f32 %v5766, %v5854
      %v5856 = vpop.f32.mrf.mxu0
      %v5857 = vadd.f32 %v5768, %v5856
      %5858 = vmatmul.bf16.gmra.mxu0 %v5427
      %v5859 = vpop.f32.mrf.mxu0
      %v5860 = vadd.f32 %v5771, %v5859
      %v5861 = vpop.f32.mrf.mxu0
      %v5862 = vadd.f32 %v5773, %v5861
      %5863 = vmatmul.bf16.gmra.mxu0 %v5430
      %v5864 = vpop.f32.mrf.mxu0
      %v5865 = vadd.f32 %v5776, %v5864
      %v5866 = vpop.f32.mrf.mxu0
      %v5867 = vadd.f32 %v5778, %v5866
      %5868 = vmatmul.bf16.gmra.mxu0 %v5433
      %v5869 = vpop.f32.mrf.mxu0
      %v5870 = vadd.f32 %v5781, %v5869
      %v5871 = vpop.f32.mrf.mxu0
      %v5872 = vadd.f32 %v5783, %v5871
      %5873 = vmatmul.bf16.gmra.mxu0 %v5436
      %v5874 = vpop.f32.mrf.mxu0
      %v5875 = vadd.f32 %v5786, %v5874
      %v5876 = vpop.f32.mrf.mxu0
      %v5877 = vadd.f32 %v5788, %v5876
      %5878 = vmatmul.bf16.gmra.mxu0 %v5439
      %v5879 = vpop.f32.mrf.mxu0
      %v5880 = vadd.f32 %v5791, %v5879
      %v5881 = vpop.f32.mrf.mxu0
      %v5882 = vadd.f32 %v5793, %v5881
      %5883 = vmatmul.bf16.gmra.mxu0 %v5442
      %v5884 = vpop.f32.mrf.mxu0
      %v5885 = vadd.f32 %v5796, %v5884
      %v5886 = vpop.f32.mrf.mxu0
      %v5887 = vadd.f32 %v5798, %v5886
      %5888 = vdwg.mxu0
      %v5889 = vmax.f32 %v5810, 0.0
      %v5890 = vmax.f32 %v5812, 0.0
      %v5891 = vmax.f32 %v5815, 0.0
      %v5892 = vmax.f32 %v5817, 0.0
      %v5893 = vmax.f32 %v5820, 0.0
      %v5894 = vmax.f32 %v5822, 0.0
      %v5895 = vmax.f32 %v5825, 0.0
      %v5896 = vmax.f32 %v5827, 0.0
      %v5897 = vmax.f32 %v5830, 0.0
      %v5898 = vmax.f32 %v5832, 0.0
      %v5899 = vmax.f32 %v5835, 0.0
      %v5900 = vmax.f32 %v5837, 0.0
      %v5901 = vmax.f32 %v5840, 0.0
      %v5902 = vmax.f32 %v5842, 0.0
      %v5903 = vmax.f32 %v5845, 0.0
      %v5904 = vmax.f32 %v5847, 0.0
      %v5905 = vmax.f32 %v5850, 0.0
      %v5906 = vmax.f32 %v5852, 0.0
      %v5907 = vmax.f32 %v5855, 0.0
      %v5908 = vmax.f32 %v5857, 0.0
      %v5909 = vmax.f32 %v5860, 0.0
      %v5910 = vmax.f32 %v5862, 0.0
      %v5911 = vmax.f32 %v5865, 0.0
      %v5912 = vmax.f32 %v5867, 0.0
      %v5913 = vmax.f32 %v5870, 0.0
      %v5914 = vmax.f32 %v5872, 0.0
      %v5915 = vmax.f32 %v5875, 0.0
      %v5916 = vmax.f32 %v5877, 0.0
      %v5917 = vmax.f32 %v5880, 0.0
      %v5918 = vmax.f32 %v5882, 0.0
      %v5919 = vmax.f32 %v5885, 0.0
      %v5920 = vmax.f32 %v5887, 0.0
      %v5921 = vpack.c.bf16 %v5890, %v5889
      %v5922 = vpack.c.bf16 %v5892, %v5891
      %v5923 = vpack.c.bf16 %v5894, %v5893
      %v5924 = vpack.c.bf16 %v5896, %v5895
      %v5925 = vpack.c.bf16 %v5898, %v5897
      %v5926 = vpack.c.bf16 %v5900, %v5899
      %v5927 = vpack.c.bf16 %v5902, %v5901
      %v5928 = vpack.c.bf16 %v5904, %v5903
      %v5929 = vpack.c.bf16 %v5906, %v5905
      %v5930 = vpack.c.bf16 %v5908, %v5907
      %v5931 = vpack.c.bf16 %v5910, %v5909
      %v5932 = vpack.c.bf16 %v5912, %v5911
      %v5933 = vpack.c.bf16 %v5914, %v5913
      %v5934 = vpack.c.bf16 %v5916, %v5915
      %v5935 = vpack.c.bf16 %v5918, %v5917
      %v5936 = vpack.c.bf16 %v5920, %v5919
      %v5937 = vld [vmem:[%s7] sm:$0xf]
      %v5938 = vld [vmem:[%s7 + $0x4] sm:$0xf]
      %v5939 = vld [vmem:[%s7 + $0x8] sm:$0xf]
      %v5940 = vld [vmem:[%s7 + $0xc] sm:$0xf]
      %v5941 = vld [vmem:[#allocation4] sm:$0x1]
      %v5943 = vperm.slane %v5941, 0
      %v5949 = vunpack.c.l.b16 %v5937
      %v5950 = vunpack.c.l.b16 %v5938
      %v5951 = vunpack.c.l.b16 %v5939
      %v5952 = vunpack.c.l.b16 %v5940
      %v5953 = vpack.c.b16 %v5950, %v5949
      %v5954 = vpack.c.b16 %v5952, %v5951
      %v5958 = vsel %vm334, %v5921, 0
      %v5961 = vsel %vm334, %v5922, 0
      %v5964 = vsel %vm334, %v5923, 0
      %v5967 = vsel %vm334, %v5924, 0
      %v5970 = vsel %vm334, %v5925, 0
      %v5973 = vsel %vm334, %v5926, 0
      %v5976 = vsel %vm334, %v5927, 0
      %v5979 = vsel %vm334, %v5928, 0
      %v5982 = vsel %vm334, %v5929, 0
      %v5985 = vsel %vm334, %v5930, 0
      %v5988 = vsel %vm334, %v5931, 0
      %v5991 = vsel %vm334, %v5932, 0
      %v5994 = vsel %vm334, %v5933, 0
      %v5997 = vsel %vm334, %v5934, 0
      %v6000 = vsel %vm334, %v5935, 0
      %v6003 = vsel %vm334, %v5936, 0
      %6005 = vmatpush.bf16.msra.mxu0 0
      %6006 = vmatpush.bf16.msra.mxu0 0
      %6007 = vmatpush.bf16.msra.mxu0 0
      %6008 = vmatpush.bf16.msra.mxu0 0
      %6009 = vmatpush.bf16.msra.mxu0 0
      %6010 = vmatpush.bf16.msra.mxu0 0
      %6011 = vmatpush.bf16.msra.mxu0 %v5954
      %6012 = vmatpush.bf16.msra.mxu0 %v5953
      %6013 = vmatmul.bf16.gmra.mxu0 %v5958
      %v6014 = vpop.f32.mrf.mxu0
      %v6015 = vadd.f32 %v5943, %v6014
      %v6016 = vpop.f32.mrf.mxu0
      %v6017 = vadd.f32 %v5943, %v6016
      %6018 = vmatmul.bf16.gmra.mxu0 %v5961
      %v6019 = vpop.f32.mrf.mxu0
      %v6020 = vadd.f32 %v5943, %v6019
      %v6021 = vpop.f32.mrf.mxu0
      %v6022 = vadd.f32 %v5943, %v6021
      %6023 = vmatmul.bf16.gmra.mxu0 %v5964
      %v6024 = vpop.f32.mrf.mxu0
      %v6025 = vadd.f32 %v5943, %v6024
      %v6026 = vpop.f32.mrf.mxu0
      %v6027 = vadd.f32 %v5943, %v6026
      %6028 = vmatmul.bf16.gmra.mxu0 %v5967
      %v6029 = vpop.f32.mrf.mxu0
      %v6030 = vadd.f32 %v5943, %v6029
      %v6031 = vpop.f32.mrf.mxu0
      %v6032 = vadd.f32 %v5943, %v6031
      %6033 = vmatmul.bf16.gmra.mxu0 %v5970
      %v6034 = vpop.f32.mrf.mxu0
      %v6035 = vadd.f32 %v5943, %v6034
      %v6036 = vpop.f32.mrf.mxu0
      %v6037 = vadd.f32 %v5943, %v6036
      %6038 = vmatmul.bf16.gmra.mxu0 %v5973
      %v6039 = vpop.f32.mrf.mxu0
      %v6040 = vadd.f32 %v5943, %v6039
      %v6041 = vpop.f32.mrf.mxu0
      %v6042 = vadd.f32 %v5943, %v6041
      %6043 = vmatmul.bf16.gmra.mxu0 %v5976
      %v6044 = vpop.f32.mrf.mxu0
      %v6045 = vadd.f32 %v5943, %v6044
      %v6046 = vpop.f32.mrf.mxu0
      %v6047 = vadd.f32 %v5943, %v6046
      %6048 = vmatmul.bf16.gmra.mxu0 %v5979
      %v6049 = vpop.f32.mrf.mxu0
      %v6050 = vadd.f32 %v5943, %v6049
      %v6051 = vpop.f32.mrf.mxu0
      %v6052 = vadd.f32 %v5943, %v6051
      %6053 = vmatmul.bf16.gmra.mxu0 %v5982
      %v6054 = vpop.f32.mrf.mxu0
      %v6055 = vadd.f32 %v5943, %v6054
      %v6056 = vpop.f32.mrf.mxu0
      %v6057 = vadd.f32 %v5943, %v6056
      %6058 = vmatmul.bf16.gmra.mxu0 %v5985
      %v6059 = vpop.f32.mrf.mxu0
      %v6060 = vadd.f32 %v5943, %v6059
      %v6061 = vpop.f32.mrf.mxu0
      %v6062 = vadd.f32 %v5943, %v6061
      %6063 = vmatmul.bf16.gmra.mxu0 %v5988
      %v6064 = vpop.f32.mrf.mxu0
      %v6065 = vadd.f32 %v5943, %v6064
      %v6066 = vpop.f32.mrf.mxu0
      %v6067 = vadd.f32 %v5943, %v6066
      %6068 = vmatmul.bf16.gmra.mxu0 %v5991
      %v6069 = vpop.f32.mrf.mxu0
      %v6070 = vadd.f32 %v5943, %v6069
      %v6071 = vpop.f32.mrf.mxu0
      %v6072 = vadd.f32 %v5943, %v6071
      %6073 = vmatmul.bf16.gmra.mxu0 %v5994
      %v6074 = vpop.f32.mrf.mxu0
      %v6075 = vadd.f32 %v5943, %v6074
      %v6076 = vpop.f32.mrf.mxu0
      %v6077 = vadd.f32 %v5943, %v6076
      %6078 = vmatmul.bf16.gmra.mxu0 %v5997
      %v6079 = vpop.f32.mrf.mxu0
      %v6080 = vadd.f32 %v5943, %v6079
      %v6081 = vpop.f32.mrf.mxu0
      %v6082 = vadd.f32 %v5943, %v6081
      %6083 = vmatmul.bf16.gmra.mxu0 %v6000
      %v6084 = vpop.f32.mrf.mxu0
      %v6085 = vadd.f32 %v5943, %v6084
      %v6086 = vpop.f32.mrf.mxu0
      %v6087 = vadd.f32 %v5943, %v6086
      %6088 = vmatmul.bf16.gmra.mxu0 %v6003
      %v6089 = vpop.f32.mrf.mxu0
      %v6090 = vadd.f32 %v5943, %v6089
      %v6091 = vpop.f32.mrf.mxu0
      %v6092 = vadd.f32 %v5943, %v6091
      %6093 = vdwg.mxu0
      %v6126 = vrot.slane %v6015, 1
      %v6127 = vrot.slane %v6015, 2
      %v6128 = vrot.slane %v6015, 3
      %v6129 = vrot.slane %v6015, 4
      %v6130 = vrot.slane %v6015, 5
      %v6131 = vrot.slane %v6015, 6
      %v6132 = vrot.slane %v6015, 7
      %v6133 = vrot.slane %v6017, 1
      %v6134 = vrot.slane %v6017, 2
      %v6135 = vrot.slane %v6017, 3
      %v6136 = vrot.slane %v6017, 4
      %v6137 = vrot.slane %v6017, 5
      %v6138 = vrot.slane %v6017, 6
      %v6139 = vrot.slane %v6017, 7
      %v6140 = vrot.slane %v6020, 1
      %v6141 = vrot.slane %v6020, 2
      %v6142 = vrot.slane %v6020, 3
      %v6143 = vrot.slane %v6020, 4
      %v6144 = vrot.slane %v6020, 5
      %v6145 = vrot.slane %v6020, 6
      %v6146 = vrot.slane %v6020, 7
      %v6147 = vrot.slane %v6022, 1
      %v6148 = vrot.slane %v6022, 2
      %v6149 = vrot.slane %v6022, 3
      %v6150 = vrot.slane %v6022, 4
      %v6151 = vrot.slane %v6022, 5
      %v6152 = vrot.slane %v6022, 6
      %v6153 = vrot.slane %v6022, 7
      %v6154 = vrot.slane %v6025, 1
      %v6155 = vrot.slane %v6025, 2
      %v6156 = vrot.slane %v6025, 3
      %v6157 = vrot.slane %v6025, 4
      %v6158 = vrot.slane %v6025, 5
      %v6159 = vrot.slane %v6025, 6
      %v6160 = vrot.slane %v6025, 7
      %v6161 = vrot.slane %v6027, 1
      %v6162 = vrot.slane %v6027, 2
      %v6163 = vrot.slane %v6027, 3
      %v6164 = vrot.slane %v6027, 4
      %v6165 = vrot.slane %v6027, 5
      %v6166 = vrot.slane %v6027, 6
      %v6167 = vrot.slane %v6027, 7
      %v6168 = vrot.slane %v6030, 1
      %v6169 = vrot.slane %v6030, 2
      %v6170 = vrot.slane %v6030, 3
      %v6171 = vrot.slane %v6030, 4
      %v6172 = vrot.slane %v6030, 5
      %v6173 = vrot.slane %v6030, 6
      %v6174 = vrot.slane %v6030, 7
      %v6175 = vrot.slane %v6032, 1
      %v6176 = vrot.slane %v6032, 2
      %v6177 = vrot.slane %v6032, 3
      %v6178 = vrot.slane %v6032, 4
      %v6179 = vrot.slane %v6032, 5
      %v6180 = vrot.slane %v6032, 6
      %v6181 = vrot.slane %v6032, 7
      %v6182 = vrot.slane %v6035, 1
      %v6183 = vrot.slane %v6035, 2
      %v6184 = vrot.slane %v6035, 3
      %v6185 = vrot.slane %v6035, 4
      %v6186 = vrot.slane %v6035, 5
      %v6187 = vrot.slane %v6035, 6
      %v6188 = vrot.slane %v6035, 7
      %v6189 = vrot.slane %v6037, 1
      %v6190 = vrot.slane %v6037, 2
      %v6191 = vrot.slane %v6037, 3
      %v6192 = vrot.slane %v6037, 4
      %v6193 = vrot.slane %v6037, 5
      %v6194 = vrot.slane %v6037, 6
      %v6195 = vrot.slane %v6037, 7
      %v6196 = vrot.slane %v6040, 1
      %v6197 = vrot.slane %v6040, 2
      %v6198 = vrot.slane %v6040, 3
      %v6199 = vrot.slane %v6040, 4
      %v6200 = vrot.slane %v6040, 5
      %v6201 = vrot.slane %v6040, 6
      %v6202 = vrot.slane %v6040, 7
      %v6203 = vrot.slane %v6042, 1
      %v6204 = vrot.slane %v6042, 2
      %v6205 = vrot.slane %v6042, 3
      %v6206 = vrot.slane %v6042, 4
      %v6207 = vrot.slane %v6042, 5
      %v6208 = vrot.slane %v6042, 6
      %v6209 = vrot.slane %v6042, 7
      %v6210 = vrot.slane %v6045, 1
      %v6211 = vrot.slane %v6045, 2
      %v6212 = vrot.slane %v6045, 3
      %v6213 = vrot.slane %v6045, 4
      %v6214 = vrot.slane %v6045, 5
      %v6215 = vrot.slane %v6045, 6
      %v6216 = vrot.slane %v6045, 7
      %v6217 = vrot.slane %v6047, 1
      %v6218 = vrot.slane %v6047, 2
      %v6219 = vrot.slane %v6047, 3
      %v6220 = vrot.slane %v6047, 4
      %v6221 = vrot.slane %v6047, 5
      %v6222 = vrot.slane %v6047, 6
      %v6223 = vrot.slane %v6047, 7
      %v6224 = vrot.slane %v6050, 1
      %v6225 = vrot.slane %v6050, 2
      %v6226 = vrot.slane %v6050, 3
      %v6227 = vrot.slane %v6050, 4
      %v6228 = vrot.slane %v6050, 5
      %v6229 = vrot.slane %v6050, 6
      %v6230 = vrot.slane %v6050, 7
      %v6231 = vrot.slane %v6052, 1
      %v6232 = vrot.slane %v6052, 2
      %v6233 = vrot.slane %v6052, 3
      %v6234 = vrot.slane %v6052, 4
      %v6235 = vrot.slane %v6052, 5
      %v6236 = vrot.slane %v6052, 6
      %v6237 = vrot.slane %v6052, 7
      %v6238 = vrot.slane %v6055, 1
      %v6239 = vrot.slane %v6055, 2
      %v6240 = vrot.slane %v6055, 3
      %v6241 = vrot.slane %v6055, 4
      %v6242 = vrot.slane %v6055, 5
      %v6243 = vrot.slane %v6055, 6
      %v6244 = vrot.slane %v6055, 7
      %v6245 = vrot.slane %v6057, 1
      %v6246 = vrot.slane %v6057, 2
      %v6247 = vrot.slane %v6057, 3
      %v6248 = vrot.slane %v6057, 4
      %v6249 = vrot.slane %v6057, 5
      %v6250 = vrot.slane %v6057, 6
      %v6251 = vrot.slane %v6057, 7
      %v6252 = vrot.slane %v6060, 1
      %v6253 = vrot.slane %v6060, 2
      %v6254 = vrot.slane %v6060, 3
      %v6255 = vrot.slane %v6060, 4
      %v6256 = vrot.slane %v6060, 5
      %v6257 = vrot.slane %v6060, 6
      %v6258 = vrot.slane %v6060, 7
      %v6259 = vrot.slane %v6062, 1
      %v6260 = vrot.slane %v6062, 2
      %v6261 = vrot.slane %v6062, 3
      %v6262 = vrot.slane %v6062, 4
      %v6263 = vrot.slane %v6062, 5
      %v6264 = vrot.slane %v6062, 6
      %v6265 = vrot.slane %v6062, 7
      %v6266 = vrot.slane %v6065, 1
      %v6267 = vrot.slane %v6065, 2
      %v6268 = vrot.slane %v6065, 3
      %v6269 = vrot.slane %v6065, 4
      %v6270 = vrot.slane %v6065, 5
      %v6271 = vrot.slane %v6065, 6
      %v6272 = vrot.slane %v6065, 7
      %v6273 = vrot.slane %v6067, 1
      %v6274 = vrot.slane %v6067, 2
      %v6275 = vrot.slane %v6067, 3
      %v6276 = vrot.slane %v6067, 4
      %v6277 = vrot.slane %v6067, 5
      %v6278 = vrot.slane %v6067, 6
      %v6279 = vrot.slane %v6067, 7
      %v6280 = vrot.slane %v6070, 1
      %v6281 = vrot.slane %v6070, 2
      %v6282 = vrot.slane %v6070, 3
      %v6283 = vrot.slane %v6070, 4
      %v6284 = vrot.slane %v6070, 5
      %v6285 = vrot.slane %v6070, 6
      %v6286 = vrot.slane %v6070, 7
      %v6287 = vrot.slane %v6072, 1
      %v6288 = vrot.slane %v6072, 2
      %v6289 = vrot.slane %v6072, 3
      %v6290 = vrot.slane %v6072, 4
      %v6291 = vrot.slane %v6072, 5
      %v6292 = vrot.slane %v6072, 6
      %v6293 = vrot.slane %v6072, 7
      %v6294 = vrot.slane %v6075, 1
      %v6295 = vrot.slane %v6075, 2
      %v6296 = vrot.slane %v6075, 3
      %v6297 = vrot.slane %v6075, 4
      %v6298 = vrot.slane %v6075, 5
      %v6299 = vrot.slane %v6075, 6
      %v6300 = vrot.slane %v6075, 7
      %v6301 = vrot.slane %v6077, 1
      %v6302 = vrot.slane %v6077, 2
      %v6303 = vrot.slane %v6077, 3
      %v6304 = vrot.slane %v6077, 4
      %v6305 = vrot.slane %v6077, 5
      %v6306 = vrot.slane %v6077, 6
      %v6307 = vrot.slane %v6077, 7
      %v6308 = vrot.slane %v6080, 1
      %v6309 = vrot.slane %v6080, 2
      %v6310 = vrot.slane %v6080, 3
      %v6311 = vrot.slane %v6080, 4
      %v6312 = vrot.slane %v6080, 5
      %v6313 = vrot.slane %v6080, 6
      %v6314 = vrot.slane %v6080, 7
      %v6315 = vrot.slane %v6082, 1
      %v6316 = vrot.slane %v6082, 2
      %v6317 = vrot.slane %v6082, 3
      %v6318 = vrot.slane %v6082, 4
      %v6319 = vrot.slane %v6082, 5
      %v6320 = vrot.slane %v6082, 6
      %v6321 = vrot.slane %v6082, 7
      %v6322 = vrot.slane %v6085, 1
      %v6323 = vrot.slane %v6085, 2
      %v6324 = vrot.slane %v6085, 3
      %v6325 = vrot.slane %v6085, 4
      %v6326 = vrot.slane %v6085, 5
      %v6327 = vrot.slane %v6085, 6
      %v6328 = vrot.slane %v6085, 7
      %v6329 = vrot.slane %v6087, 1
      %v6330 = vrot.slane %v6087, 2
      %v6331 = vrot.slane %v6087, 3
      %v6332 = vrot.slane %v6087, 4
      %v6333 = vrot.slane %v6087, 5
      %v6334 = vrot.slane %v6087, 6
      %v6335 = vrot.slane %v6087, 7
      %v6336 = vrot.slane %v6090, 1
      %v6337 = vrot.slane %v6090, 2
      %v6338 = vrot.slane %v6090, 3
      %v6339 = vrot.slane %v6090, 4
      %v6340 = vrot.slane %v6090, 5
      %v6341 = vrot.slane %v6090, 6
      %v6342 = vrot.slane %v6090, 7
      %v6343 = vrot.slane %v6092, 1
      %v6344 = vrot.slane %v6092, 2
      %v6345 = vrot.slane %v6092, 3
      %v6346 = vrot.slane %v6092, 4
      %v6347 = vrot.slane %v6092, 5
      %v6348 = vrot.slane %v6092, 6
      %v6349 = vrot.slane %v6092, 7
      %6350 = vst [vmem:[#allocation1] ss:$9 sm:$0xff] %v6015
      %s6351 = scalar_lea.vmem [#allocation1], 1
      %6352 = vst [vmem:[%s6351] ss:$9 sm:$0xff] %v6126
      %s6353 = scalar_lea.vmem [#allocation1], 2
      %6354 = vst [vmem:[%s6353] ss:$9 sm:$0xff] %v6127
      %s6355 = scalar_lea.vmem [#allocation1], 3
      %6356 = vst [vmem:[%s6355] ss:$9 sm:$0xff] %v6128
      %s6357 = scalar_lea.vmem [#allocation1], 4
      %6358 = vst [vmem:[%s6357] ss:$9 sm:$0xff] %v6129
      %s6359 = scalar_lea.vmem [#allocation1], 5
      %6360 = vst [vmem:[%s6359] ss:$9 sm:$0xff] %v6130
      %s6361 = scalar_lea.vmem [#allocation1], 6
      %6362 = vst [vmem:[%s6361] ss:$9 sm:$0xff] %v6131
      %s6363 = scalar_lea.vmem [#allocation1], 7
      %6364 = vst [vmem:[%s6363] ss:$9 sm:$0xff] %v6132
      %v6365 = vld [vmem:[#allocation1] sm:$0xff]
      %6366 = vst [vmem:[#allocation1] ss:$9 sm:$0xff] %v6017
      %6367 = vst [vmem:[%s6351] ss:$9 sm:$0xff] %v6133
      %6368 = vst [vmem:[%s6353] ss:$9 sm:$0xff] %v6134
      %6369 = vst [vmem:[%s6355] ss:$9 sm:$0xff] %v6135
      %6370 = vst [vmem:[%s6357] ss:$9 sm:$0xff] %v6136
      %6371 = vst [vmem:[%s6359] ss:$9 sm:$0xff] %v6137
      %6372 = vst [vmem:[%s6361] ss:$9 sm:$0xff] %v6138
      %6373 = vst [vmem:[%s6363] ss:$9 sm:$0xff] %v6139
      %v6374 = vld [vmem:[#allocation1] sm:$0xff]
      %6375 = vst [vmem:[#allocation1] ss:$9 sm:$0xff] %v6020
      %6376 = vst [vmem:[%s6351] ss:$9 sm:$0xff] %v6140
      %6377 = vst [vmem:[%s6353] ss:$9 sm:$0xff] %v6141
      %6378 = vst [vmem:[%s6355] ss:$9 sm:$0xff] %v6142
      %6379 = vst [vmem:[%s6357] ss:$9 sm:$0xff] %v6143
      %6380 = vst [vmem:[%s6359] ss:$9 sm:$0xff] %v6144
      %6381 = vst [vmem:[%s6361] ss:$9 sm:$0xff] %v6145
      %6382 = vst [vmem:[%s6363] ss:$9 sm:$0xff] %v6146
      %v6383 = vld [vmem:[#allocation1] sm:$0xff]
      %6384 = vst [vmem:[#allocation1] ss:$9 sm:$0xff] %v6022
      %6385 = vst [vmem:[%s6351] ss:$9 sm:$0xff] %v6147
      %6386 = vst [vmem:[%s6353] ss:$9 sm:$0xff] %v6148
      %6387 = vst [vmem:[%s6355] ss:$9 sm:$0xff] %v6149
      %6388 = vst [vmem:[%s6357] ss:$9 sm:$0xff] %v6150
      %6389 = vst [vmem:[%s6359] ss:$9 sm:$0xff] %v6151
      %6390 = vst [vmem:[%s6361] ss:$9 sm:$0xff] %v6152
      %6391 = vst [vmem:[%s6363] ss:$9 sm:$0xff] %v6153
      %v6392 = vld [vmem:[#allocation1] sm:$0xff]
      %6393 = vst [vmem:[#allocation1] ss:$9 sm:$0xff] %v6025
      %6394 = vst [vmem:[%s6351] ss:$9 sm:$0xff] %v6154
      %6395 = vst [vmem:[%s6353] ss:$9 sm:$0xff] %v6155
      %6396 = vst [vmem:[%s6355] ss:$9 sm:$0xff] %v6156
      %6397 = vst [vmem:[%s6357] ss:$9 sm:$0xff] %v6157
      %6398 = vst [vmem:[%s6359] ss:$9 sm:$0xff] %v6158
      %6399 = vst [vmem:[%s6361] ss:$9 sm:$0xff] %v6159
      %6400 = vst [vmem:[%s6363] ss:$9 sm:$0xff] %v6160
      %v6401 = vld [vmem:[#allocation1] sm:$0xff]
      %6402 = vst [vmem:[#allocation1] ss:$9 sm:$0xff] %v6027
      %6403 = vst [vmem:[%s6351] ss:$9 sm:$0xff] %v6161
      %6404 = vst [vmem:[%s6353] ss:$9 sm:$0xff] %v6162
      %6405 = vst [vmem:[%s6355] ss:$9 sm:$0xff] %v6163
      %6406 = vst [vmem:[%s6357] ss:$9 sm:$0xff] %v6164
      %6407 = vst [vmem:[%s6359] ss:$9 sm:$0xff] %v6165
      %6408 = vst [vmem:[%s6361] ss:$9 sm:$0xff] %v6166
      %6409 = vst [vmem:[%s6363] ss:$9 sm:$0xff] %v6167
      %v6410 = vld [vmem:[#allocation1] sm:$0xff]
      %6411 = vst [vmem:[#allocation1] ss:$9 sm:$0xff] %v6030
      %6412 = vst [vmem:[%s6351] ss:$9 sm:$0xff] %v6168
      %6413 = vst [vmem:[%s6353] ss:$9 sm:$0xff] %v6169
      %6414 = vst [vmem:[%s6355] ss:$9 sm:$0xff] %v6170
      %6415 = vst [vmem:[%s6357] ss:$9 sm:$0xff] %v6171
      %6416 = vst [vmem:[%s6359] ss:$9 sm:$0xff] %v6172
      %6417 = vst [vmem:[%s6361] ss:$9 sm:$0xff] %v6173
      %6418 = vst [vmem:[%s6363] ss:$9 sm:$0xff] %v6174
      %v6419 = vld [vmem:[#allocation1] sm:$0xff]
      %6420 = vst [vmem:[#allocation1] ss:$9 sm:$0xff] %v6032
      %6421 = vst [vmem:[%s6351] ss:$9 sm:$0xff] %v6175
      %6422 = vst [vmem:[%s6353] ss:$9 sm:$0xff] %v6176
      %6423 = vst [vmem:[%s6355] ss:$9 sm:$0xff] %v6177
      %6424 = vst [vmem:[%s6357] ss:$9 sm:$0xff] %v6178
      %6425 = vst [vmem:[%s6359] ss:$9 sm:$0xff] %v6179
      %6426 = vst [vmem:[%s6361] ss:$9 sm:$0xff] %v6180
      %6427 = vst [vmem:[%s6363] ss:$9 sm:$0xff] %v6181
      %v6428 = vld [vmem:[#allocation1] sm:$0xff]
      %6429 = vst [vmem:[#allocation1] ss:$9 sm:$0xff] %v6035
      %6430 = vst [vmem:[%s6351] ss:$9 sm:$0xff] %v6182
      %6431 = vst [vmem:[%s6353] ss:$9 sm:$0xff] %v6183
      %6432 = vst [vmem:[%s6355] ss:$9 sm:$0xff] %v6184
      %6433 = vst [vmem:[%s6357] ss:$9 sm:$0xff] %v6185
      %6434 = vst [vmem:[%s6359] ss:$9 sm:$0xff] %v6186
      %6435 = vst [vmem:[%s6361] ss:$9 sm:$0xff] %v6187
      %6436 = vst [vmem:[%s6363] ss:$9 sm:$0xff] %v6188
      %v6437 = vld [vmem:[#allocation1] sm:$0xff]
      %6438 = vst [vmem:[#allocation1] ss:$9 sm:$0xff] %v6037
      %6439 = vst [vmem:[%s6351] ss:$9 sm:$0xff] %v6189
      %6440 = vst [vmem:[%s6353] ss:$9 sm:$0xff] %v6190
      %6441 = vst [vmem:[%s6355] ss:$9 sm:$0xff] %v6191
      %6442 = vst [vmem:[%s6357] ss:$9 sm:$0xff] %v6192
      %6443 = vst [vmem:[%s6359] ss:$9 sm:$0xff] %v6193
      %6444 = vst [vmem:[%s6361] ss:$9 sm:$0xff] %v6194
      %6445 = vst [vmem:[%s6363] ss:$9 sm:$0xff] %v6195
      %v6446 = vld [vmem:[#allocation1] sm:$0xff]
      %6447 = vst [vmem:[#allocation1] ss:$9 sm:$0xff] %v6040
      %6448 = vst [vmem:[%s6351] ss:$9 sm:$0xff] %v6196
      %6449 = vst [vmem:[%s6353] ss:$9 sm:$0xff] %v6197
      %6450 = vst [vmem:[%s6355] ss:$9 sm:$0xff] %v6198
      %6451 = vst [vmem:[%s6357] ss:$9 sm:$0xff] %v6199
      %6452 = vst [vmem:[%s6359] ss:$9 sm:$0xff] %v6200
      %6453 = vst [vmem:[%s6361] ss:$9 sm:$0xff] %v6201
      %6454 = vst [vmem:[%s6363] ss:$9 sm:$0xff] %v6202
      %v6455 = vld [vmem:[#allocation1] sm:$0xff]
      %6456 = vst [vmem:[#allocation1] ss:$9 sm:$0xff] %v6042
      %6457 = vst [vmem:[%s6351] ss:$9 sm:$0xff] %v6203
      %6458 = vst [vmem:[%s6353] ss:$9 sm:$0xff] %v6204
      %6459 = vst [vmem:[%s6355] ss:$9 sm:$0xff] %v6205
      %6460 = vst [vmem:[%s6357] ss:$9 sm:$0xff] %v6206
      %6461 = vst [vmem:[%s6359] ss:$9 sm:$0xff] %v6207
      %6462 = vst [vmem:[%s6361] ss:$9 sm:$0xff] %v6208
      %6463 = vst [vmem:[%s6363] ss:$9 sm:$0xff] %v6209
      %v6464 = vld [vmem:[#allocation1] sm:$0xff]
      %6465 = vst [vmem:[#allocation1] ss:$9 sm:$0xff] %v6045
      %6466 = vst [vmem:[%s6351] ss:$9 sm:$0xff] %v6210
      %6467 = vst [vmem:[%s6353] ss:$9 sm:$0xff] %v6211
      %6468 = vst [vmem:[%s6355] ss:$9 sm:$0xff] %v6212
      %6469 = vst [vmem:[%s6357] ss:$9 sm:$0xff] %v6213
      %6470 = vst [vmem:[%s6359] ss:$9 sm:$0xff] %v6214
      %6471 = vst [vmem:[%s6361] ss:$9 sm:$0xff] %v6215
      %6472 = vst [vmem:[%s6363] ss:$9 sm:$0xff] %v6216
      %v6473 = vld [vmem:[#allocation1] sm:$0xff]
      %6474 = vst [vmem:[#allocation1] ss:$9 sm:$0xff] %v6047
      %6475 = vst [vmem:[%s6351] ss:$9 sm:$0xff] %v6217
      %6476 = vst [vmem:[%s6353] ss:$9 sm:$0xff] %v6218
      %6477 = vst [vmem:[%s6355] ss:$9 sm:$0xff] %v6219
      %6478 = vst [vmem:[%s6357] ss:$9 sm:$0xff] %v6220
      %6479 = vst [vmem:[%s6359] ss:$9 sm:$0xff] %v6221
      %6480 = vst [vmem:[%s6361] ss:$9 sm:$0xff] %v6222
      %6481 = vst [vmem:[%s6363] ss:$9 sm:$0xff] %v6223
      %v6482 = vld [vmem:[#allocation1] sm:$0xff]
      %6483 = vst [vmem:[#allocation1] ss:$9 sm:$0xff] %v6050
      %6484 = vst [vmem:[%s6351] ss:$9 sm:$0xff] %v6224
      %6485 = vst [vmem:[%s6353] ss:$9 sm:$0xff] %v6225
      %6486 = vst [vmem:[%s6355] ss:$9 sm:$0xff] %v6226
      %6487 = vst [vmem:[%s6357] ss:$9 sm:$0xff] %v6227
      %6488 = vst [vmem:[%s6359] ss:$9 sm:$0xff] %v6228
      %6489 = vst [vmem:[%s6361] ss:$9 sm:$0xff] %v6229
      %6490 = vst [vmem:[%s6363] ss:$9 sm:$0xff] %v6230
      %v6491 = vld [vmem:[#allocation1] sm:$0xff]
      %6492 = vst [vmem:[#allocation1] ss:$9 sm:$0xff] %v6052
      %6493 = vst [vmem:[%s6351] ss:$9 sm:$0xff] %v6231
      %6494 = vst [vmem:[%s6353] ss:$9 sm:$0xff] %v6232
      %6495 = vst [vmem:[%s6355] ss:$9 sm:$0xff] %v6233
      %6496 = vst [vmem:[%s6357] ss:$9 sm:$0xff] %v6234
      %6497 = vst [vmem:[%s6359] ss:$9 sm:$0xff] %v6235
      %6498 = vst [vmem:[%s6361] ss:$9 sm:$0xff] %v6236
      %6499 = vst [vmem:[%s6363] ss:$9 sm:$0xff] %v6237
      %v6500 = vld [vmem:[#allocation1] sm:$0xff]
      %6501 = vst [vmem:[#allocation1] ss:$9 sm:$0xff] %v6055
      %6502 = vst [vmem:[%s6351] ss:$9 sm:$0xff] %v6238
      %6503 = vst [vmem:[%s6353] ss:$9 sm:$0xff] %v6239
      %6504 = vst [vmem:[%s6355] ss:$9 sm:$0xff] %v6240
      %6505 = vst [vmem:[%s6357] ss:$9 sm:$0xff] %v6241
      %6506 = vst [vmem:[%s6359] ss:$9 sm:$0xff] %v6242
      %6507 = vst [vmem:[%s6361] ss:$9 sm:$0xff] %v6243
      %6508 = vst [vmem:[%s6363] ss:$9 sm:$0xff] %v6244
      %v6509 = vld [vmem:[#allocation1] sm:$0xff]
      %6510 = vst [vmem:[#allocation1] ss:$9 sm:$0xff] %v6057
      %6511 = vst [vmem:[%s6351] ss:$9 sm:$0xff] %v6245
      %6512 = vst [vmem:[%s6353] ss:$9 sm:$0xff] %v6246
      %6513 = vst [vmem:[%s6355] ss:$9 sm:$0xff] %v6247
      %6514 = vst [vmem:[%s6357] ss:$9 sm:$0xff] %v6248
      %6515 = vst [vmem:[%s6359] ss:$9 sm:$0xff] %v6249
      %6516 = vst [vmem:[%s6361] ss:$9 sm:$0xff] %v6250
      %6517 = vst [vmem:[%s6363] ss:$9 sm:$0xff] %v6251
      %v6518 = vld [vmem:[#allocation1] sm:$0xff]
      %6519 = vst [vmem:[#allocation1] ss:$9 sm:$0xff] %v6060
      %6520 = vst [vmem:[%s6351] ss:$9 sm:$0xff] %v6252
      %6521 = vst [vmem:[%s6353] ss:$9 sm:$0xff] %v6253
      %6522 = vst [vmem:[%s6355] ss:$9 sm:$0xff] %v6254
      %6523 = vst [vmem:[%s6357] ss:$9 sm:$0xff] %v6255
      %6524 = vst [vmem:[%s6359] ss:$9 sm:$0xff] %v6256
      %6525 = vst [vmem:[%s6361] ss:$9 sm:$0xff] %v6257
      %6526 = vst [vmem:[%s6363] ss:$9 sm:$0xff] %v6258
      %v6527 = vld [vmem:[#allocation1] sm:$0xff]
      %6528 = vst [vmem:[#allocation1] ss:$9 sm:$0xff] %v6062
      %6529 = vst [vmem:[%s6351] ss:$9 sm:$0xff] %v6259
      %6530 = vst [vmem:[%s6353] ss:$9 sm:$0xff] %v6260
      %6531 = vst [vmem:[%s6355] ss:$9 sm:$0xff] %v6261
      %6532 = vst [vmem:[%s6357] ss:$9 sm:$0xff] %v6262
      %6533 = vst [vmem:[%s6359] ss:$9 sm:$0xff] %v6263
      %6534 = vst [vmem:[%s6361] ss:$9 sm:$0xff] %v6264
      %6535 = vst [vmem:[%s6363] ss:$9 sm:$0xff] %v6265
      %v6536 = vld [vmem:[#allocation1] sm:$0xff]
      %6537 = vst [vmem:[#allocation1] ss:$9 sm:$0xff] %v6065
      %6538 = vst [vmem:[%s6351] ss:$9 sm:$0xff] %v6266
      %6539 = vst [vmem:[%s6353] ss:$9 sm:$0xff] %v6267
      %6540 = vst [vmem:[%s6355] ss:$9 sm:$0xff] %v6268
      %6541 = vst [vmem:[%s6357] ss:$9 sm:$0xff] %v6269
      %6542 = vst [vmem:[%s6359] ss:$9 sm:$0xff] %v6270
      %6543 = vst [vmem:[%s6361] ss:$9 sm:$0xff] %v6271
      %6544 = vst [vmem:[%s6363] ss:$9 sm:$0xff] %v6272
      %v6545 = vld [vmem:[#allocation1] sm:$0xff]
      %6546 = vst [vmem:[#allocation1] ss:$9 sm:$0xff] %v6067
      %6547 = vst [vmem:[%s6351] ss:$9 sm:$0xff] %v6273
      %6548 = vst [vmem:[%s6353] ss:$9 sm:$0xff] %v6274
      %6549 = vst [vmem:[%s6355] ss:$9 sm:$0xff] %v6275
      %6550 = vst [vmem:[%s6357] ss:$9 sm:$0xff] %v6276
      %6551 = vst [vmem:[%s6359] ss:$9 sm:$0xff] %v6277
      %6552 = vst [vmem:[%s6361] ss:$9 sm:$0xff] %v6278
      %6553 = vst [vmem:[%s6363] ss:$9 sm:$0xff] %v6279
      %v6554 = vld [vmem:[#allocation1] sm:$0xff]
      %6555 = vst [vmem:[#allocation1] ss:$9 sm:$0xff] %v6070
      %6556 = vst [vmem:[%s6351] ss:$9 sm:$0xff] %v6280
      %6557 = vst [vmem:[%s6353] ss:$9 sm:$0xff] %v6281
      %6558 = vst [vmem:[%s6355] ss:$9 sm:$0xff] %v6282
      %6559 = vst [vmem:[%s6357] ss:$9 sm:$0xff] %v6283
      %6560 = vst [vmem:[%s6359] ss:$9 sm:$0xff] %v6284
      %6561 = vst [vmem:[%s6361] ss:$9 sm:$0xff] %v6285
      %6562 = vst [vmem:[%s6363] ss:$9 sm:$0xff] %v6286
      %v6563 = vld [vmem:[#allocation1] sm:$0xff]
      %6564 = vst [vmem:[#allocation1] ss:$9 sm:$0xff] %v6072
      %6565 = vst [vmem:[%s6351] ss:$9 sm:$0xff] %v6287
      %6566 = vst [vmem:[%s6353] ss:$9 sm:$0xff] %v6288
      %6567 = vst [vmem:[%s6355] ss:$9 sm:$0xff] %v6289
      %6568 = vst [vmem:[%s6357] ss:$9 sm:$0xff] %v6290
      %6569 = vst [vmem:[%s6359] ss:$9 sm:$0xff] %v6291
      %6570 = vst [vmem:[%s6361] ss:$9 sm:$0xff] %v6292
      %6571 = vst [vmem:[%s6363] ss:$9 sm:$0xff] %v6293
      %v6572 = vld [vmem:[#allocation1] sm:$0xff]
      %6573 = vst [vmem:[#allocation1] ss:$9 sm:$0xff] %v6075
      %6574 = vst [vmem:[%s6351] ss:$9 sm:$0xff] %v6294
      %6575 = vst [vmem:[%s6353] ss:$9 sm:$0xff] %v6295
      %6576 = vst [vmem:[%s6355] ss:$9 sm:$0xff] %v6296
      %6577 = vst [vmem:[%s6357] ss:$9 sm:$0xff] %v6297
      %6578 = vst [vmem:[%s6359] ss:$9 sm:$0xff] %v6298
      %6579 = vst [vmem:[%s6361] ss:$9 sm:$0xff] %v6299
      %6580 = vst [vmem:[%s6363] ss:$9 sm:$0xff] %v6300
      %v6581 = vld [vmem:[#allocation1] sm:$0xff]
      %6582 = vst [vmem:[#allocation1] ss:$9 sm:$0xff] %v6077
      %6583 = vst [vmem:[%s6351] ss:$9 sm:$0xff] %v6301
      %6584 = vst [vmem:[%s6353] ss:$9 sm:$0xff] %v6302
      %6585 = vst [vmem:[%s6355] ss:$9 sm:$0xff] %v6303
      %6586 = vst [vmem:[%s6357] ss:$9 sm:$0xff] %v6304
      %6587 = vst [vmem:[%s6359] ss:$9 sm:$0xff] %v6305
      %6588 = vst [vmem:[%s6361] ss:$9 sm:$0xff] %v6306
      %6589 = vst [vmem:[%s6363] ss:$9 sm:$0xff] %v6307
      %v6590 = vld [vmem:[#allocation1] sm:$0xff]
      %6591 = vst [vmem:[#allocation1] ss:$9 sm:$0xff] %v6080
      %6592 = vst [vmem:[%s6351] ss:$9 sm:$0xff] %v6308
      %6593 = vst [vmem:[%s6353] ss:$9 sm:$0xff] %v6309
      %6594 = vst [vmem:[%s6355] ss:$9 sm:$0xff] %v6310
      %6595 = vst [vmem:[%s6357] ss:$9 sm:$0xff] %v6311
      %6596 = vst [vmem:[%s6359] ss:$9 sm:$0xff] %v6312
      %6597 = vst [vmem:[%s6361] ss:$9 sm:$0xff] %v6313
      %6598 = vst [vmem:[%s6363] ss:$9 sm:$0xff] %v6314
      %v6599 = vld [vmem:[#allocation1] sm:$0xff]
      %6600 = vst [vmem:[#allocation1] ss:$9 sm:$0xff] %v6082
      %6601 = vst [vmem:[%s6351] ss:$9 sm:$0xff] %v6315
      %6602 = vst [vmem:[%s6353] ss:$9 sm:$0xff] %v6316
      %6603 = vst [vmem:[%s6355] ss:$9 sm:$0xff] %v6317
      %6604 = vst [vmem:[%s6357] ss:$9 sm:$0xff] %v6318
      %6605 = vst [vmem:[%s6359] ss:$9 sm:$0xff] %v6319
      %6606 = vst [vmem:[%s6361] ss:$9 sm:$0xff] %v6320
      %6607 = vst [vmem:[%s6363] ss:$9 sm:$0xff] %v6321
      %v6608 = vld [vmem:[#allocation1] sm:$0xff]
      %6609 = vst [vmem:[#allocation1] ss:$9 sm:$0xff] %v6085
      %6610 = vst [vmem:[%s6351] ss:$9 sm:$0xff] %v6322
      %6611 = vst [vmem:[%s6353] ss:$9 sm:$0xff] %v6323
      %6612 = vst [vmem:[%s6355] ss:$9 sm:$0xff] %v6324
      %6613 = vst [vmem:[%s6357] ss:$9 sm:$0xff] %v6325
      %6614 = vst [vmem:[%s6359] ss:$9 sm:$0xff] %v6326
      %6615 = vst [vmem:[%s6361] ss:$9 sm:$0xff] %v6327
      %6616 = vst [vmem:[%s6363] ss:$9 sm:$0xff] %v6328
      %v6617 = vld [vmem:[#allocation1] sm:$0xff]
      %6618 = vst [vmem:[#allocation1] ss:$9 sm:$0xff] %v6087
      %6619 = vst [vmem:[%s6351] ss:$9 sm:$0xff] %v6329
      %6620 = vst [vmem:[%s6353] ss:$9 sm:$0xff] %v6330
      %6621 = vst [vmem:[%s6355] ss:$9 sm:$0xff] %v6331
      %6622 = vst [vmem:[%s6357] ss:$9 sm:$0xff] %v6332
      %6623 = vst [vmem:[%s6359] ss:$9 sm:$0xff] %v6333
      %6624 = vst [vmem:[%s6361] ss:$9 sm:$0xff] %v6334
      %6625 = vst [vmem:[%s6363] ss:$9 sm:$0xff] %v6335
      %v6626 = vld [vmem:[#allocation1] sm:$0xff]
      %6627 = vst [vmem:[#allocation1] ss:$9 sm:$0xff] %v6090
      %6628 = vst [vmem:[%s6351] ss:$9 sm:$0xff] %v6336
      %6629 = vst [vmem:[%s6353] ss:$9 sm:$0xff] %v6337
      %6630 = vst [vmem:[%s6355] ss:$9 sm:$0xff] %v6338
      %6631 = vst [vmem:[%s6357] ss:$9 sm:$0xff] %v6339
      %6632 = vst [vmem:[%s6359] ss:$9 sm:$0xff] %v6340
      %6633 = vst [vmem:[%s6361] ss:$9 sm:$0xff] %v6341
      %6634 = vst [vmem:[%s6363] ss:$9 sm:$0xff] %v6342
      %v6635 = vld [vmem:[#allocation1] sm:$0xff]
      %6636 = vst [vmem:[#allocation1] ss:$9 sm:$0xff] %v6092
      %6637 = vst [vmem:[%s6351] ss:$9 sm:$0xff] %v6343
      %6638 = vst [vmem:[%s6353] ss:$9 sm:$0xff] %v6344
      %6639 = vst [vmem:[%s6355] ss:$9 sm:$0xff] %v6345
      %6640 = vst [vmem:[%s6357] ss:$9 sm:$0xff] %v6346
      %6641 = vst [vmem:[%s6359] ss:$9 sm:$0xff] %v6347
      %6642 = vst [vmem:[%s6361] ss:$9 sm:$0xff] %v6348
      %6643 = vst [vmem:[%s6363] ss:$9 sm:$0xff] %v6349
      %v6644 = vld [vmem:[#allocation1] sm:$0xff]
      %6645 = vset.pattern.permute.xlu0 0
      %6646 = vperm.xlu0 %6645, %v6365
      %v6647 = vpop.permute.xlu0 %6646
      %6648 = vset.pattern.permute.xlu0 0
      %6649 = vperm.xlu0 %6648, %v6374
      %v6650 = vpop.permute.xlu0 %6649
      %6651 = vset.pattern.permute.xlu0 0
      %6652 = vperm.xlu0 %6651, %v6383
      %v6653 = vpop.permute.xlu0 %6652
      %6654 = vset.pattern.permute.xlu0 0
      %6655 = vperm.xlu0 %6654, %v6392
      %v6656 = vpop.permute.xlu0 %6655
      %6657 = vset.pattern.permute.xlu0 0
      %6658 = vperm.xlu0 %6657, %v6401
      %v6659 = vpop.permute.xlu0 %6658
      %6660 = vset.pattern.permute.xlu0 0
      %6661 = vperm.xlu0 %6660, %v6410
      %v6662 = vpop.permute.xlu0 %6661
      %6663 = vset.pattern.permute.xlu0 0
      %6664 = vperm.xlu0 %6663, %v6419
      %v6665 = vpop.permute.xlu0 %6664
      %6666 = vset.pattern.permute.xlu0 0
      %6667 = vperm.xlu0 %6666, %v6428
      %v6668 = vpop.permute.xlu0 %6667
      %6669 = vset.pattern.permute.xlu0 0
      %6670 = vperm.xlu0 %6669, %v6437
      %v6671 = vpop.permute.xlu0 %6670
      %6672 = vset.pattern.permute.xlu0 0
      %6673 = vperm.xlu0 %6672, %v6446
      %v6674 = vpop.permute.xlu0 %6673
      %6675 = vset.pattern.permute.xlu0 0
      %6676 = vperm.xlu0 %6675, %v6455
      %v6677 = vpop.permute.xlu0 %6676
      %6678 = vset.pattern.permute.xlu0 0
      %6679 = vperm.xlu0 %6678, %v6464
      %v6680 = vpop.permute.xlu0 %6679
      %6681 = vset.pattern.permute.xlu0 0
      %6682 = vperm.xlu0 %6681, %v6473
      %v6683 = vpop.permute.xlu0 %6682
      %6684 = vset.pattern.permute.xlu0 0
      %6685 = vperm.xlu0 %6684, %v6482
      %v6686 = vpop.permute.xlu0 %6685
      %6687 = vset.pattern.permute.xlu0 0
      %6688 = vperm.xlu0 %6687, %v6491
      %v6689 = vpop.permute.xlu0 %6688
      %6690 = vset.pattern.permute.xlu0 0
      %6691 = vperm.xlu0 %6690, %v6500
      %v6692 = vpop.permute.xlu0 %6691
      %6693 = vset.pattern.permute.xlu0 0
      %6694 = vperm.xlu0 %6693, %v6509
      %v6695 = vpop.permute.xlu0 %6694
      %6696 = vset.pattern.permute.xlu0 0
      %6697 = vperm.xlu0 %6696, %v6518
      %v6698 = vpop.permute.xlu0 %6697
      %6699 = vset.pattern.permute.xlu0 0
      %6700 = vperm.xlu0 %6699, %v6527
      %v6701 = vpop.permute.xlu0 %6700
      %6702 = vset.pattern.permute.xlu0 0
      %6703 = vperm.xlu0 %6702, %v6536
      %v6704 = vpop.permute.xlu0 %6703
      %6705 = vset.pattern.permute.xlu0 0
      %6706 = vperm.xlu0 %6705, %v6545
      %v6707 = vpop.permute.xlu0 %6706
      %6708 = vset.pattern.permute.xlu0 0
      %6709 = vperm.xlu0 %6708, %v6554
      %v6710 = vpop.permute.xlu0 %6709
      %6711 = vset.pattern.permute.xlu0 0
      %6712 = vperm.xlu0 %6711, %v6563
      %v6713 = vpop.permute.xlu0 %6712
      %6714 = vset.pattern.permute.xlu0 0
      %6715 = vperm.xlu0 %6714, %v6572
      %v6716 = vpop.permute.xlu0 %6715
      %6717 = vset.pattern.permute.xlu0 0
      %6718 = vperm.xlu0 %6717, %v6581
      %v6719 = vpop.permute.xlu0 %6718
      %6720 = vset.pattern.permute.xlu0 0
      %6721 = vperm.xlu0 %6720, %v6590
      %v6722 = vpop.permute.xlu0 %6721
      %6723 = vset.pattern.permute.xlu0 0
      %6724 = vperm.xlu0 %6723, %v6599
      %v6725 = vpop.permute.xlu0 %6724
      %6726 = vset.pattern.permute.xlu0 0
      %6727 = vperm.xlu0 %6726, %v6608
      %v6728 = vpop.permute.xlu0 %6727
      %6729 = vset.pattern.permute.xlu0 0
      %6730 = vperm.xlu0 %6729, %v6617
      %v6731 = vpop.permute.xlu0 %6730
      %6732 = vset.pattern.permute.xlu0 0
      %6733 = vperm.xlu0 %6732, %v6626
      %v6734 = vpop.permute.xlu0 %6733
      %6735 = vset.pattern.permute.xlu0 0
      %6736 = vperm.xlu0 %6735, %v6635
      %v6737 = vpop.permute.xlu0 %6736
      %6738 = vset.pattern.permute.xlu0 0
      %6739 = vperm.xlu0 %6738, %v6644
      %v6740 = vpop.permute.xlu0 %6739
      %v6741 = vlaneseq
      %v6742 = vand.u32 %v6741, 127
      %v6743 = vperm.slane %v6647, %v6742
      %v6744 = vadd.s32 %v6742, 4294967288
      %v6745 = vperm.slane %v6650, %v6744
      %vm6746 = vcmask 130112
      %v6747 = vsel %vm6746, %v6745, %v6743
      %v6748 = vadd.s32 %v6742, 4294967280
      %v6749 = vperm.slane %v6653, %v6748
      %vm6750 = vcmask 195712
      %v6751 = vsel %vm6750, %v6749, %v6747
      %v6752 = vadd.s32 %v6742, 4294967272
      %v6753 = vperm.slane %v6656, %v6752
      %vm6754 = vcmask 261312
      %v6755 = vsel %vm6754, %v6753, %v6751
      %v6756 = vadd.s32 %v6742, 4294967264
      %v6757 = vperm.slane %v6659, %v6756
      %vm6758 = vcmask 326912
      %v6759 = vsel %vm6758, %v6757, %v6755
      %v6760 = vadd.s32 %v6742, 4294967256
      %v6761 = vperm.slane %v6662, %v6760
      %vm6762 = vcmask 392512
      %v6763 = vsel %vm6762, %v6761, %v6759
      %v6764 = vadd.s32 %v6742, 4294967248
      %v6765 = vperm.slane %v6665, %v6764
      %vm6766 = vcmask 458112
      %v6767 = vsel %vm6766, %v6765, %v6763
      %v6768 = vadd.s32 %v6742, 4294967240
      %v6769 = vperm.slane %v6668, %v6768
      %vm6770 = vcmask 523712
      %v6771 = vsel %vm6770, %v6769, %v6767
      %v6772 = vadd.s32 %v6742, 4294967232
      %v6773 = vperm.slane %v6671, %v6772
      %vm6774 = vcmask 589312
      %v6775 = vsel %vm6774, %v6773, %v6771
      %v6776 = vadd.s32 %v6742, 4294967224
      %v6777 = vperm.slane %v6674, %v6776
      %vm6778 = vcmask 654912
      %v6779 = vsel %vm6778, %v6777, %v6775
      %v6780 = vadd.s32 %v6742, 4294967216
      %v6781 = vperm.slane %v6677, %v6780
      %vm6782 = vcmask 720512
      %v6783 = vsel %vm6782, %v6781, %v6779
      %v6784 = vadd.s32 %v6742, 4294967208
      %v6785 = vperm.slane %v6680, %v6784
      %vm6786 = vcmask 786112
      %v6787 = vsel %vm6786, %v6785, %v6783
      %v6788 = vadd.s32 %v6742, 4294967200
      %v6789 = vperm.slane %v6683, %v6788
      %vm6790 = vcmask 851712
      %v6791 = vsel %vm6790, %v6789, %v6787
      %v6792 = vadd.s32 %v6742, 4294967192
      %v6793 = vperm.slane %v6686, %v6792
      %vm6794 = vcmask 917312
      %v6795 = vsel %vm6794, %v6793, %v6791
      %v6796 = vadd.s32 %v6742, 4294967184
      %v6797 = vperm.slane %v6689, %v6796
      %vm6798 = vcmask 982912
      %v6799 = vsel %vm6798, %v6797, %v6795
      %v6800 = vadd.s32 %v6742, 4294967176
      %v6801 = vperm.slane %v6692, %v6800
      %vm6802 = vcmask 1048512
      %v6803 = vsel %vm6802, %v6801, %v6799
      %v6804 = vperm.slane %v6695, %v6742
      %v6805 = vperm.slane %v6698, %v6744
      %v6806 = vsel %vm6746, %v6805, %v6804
      %v6807 = vperm.slane %v6701, %v6748
      %v6808 = vsel %vm6750, %v6807, %v6806
      %v6809 = vperm.slane %v6704, %v6752
      %v6810 = vsel %vm6754, %v6809, %v6808
      %v6811 = vperm.slane %v6707, %v6756
      %v6812 = vsel %vm6758, %v6811, %v6810
      %v6813 = vperm.slane %v6710, %v6760
      %v6814 = vsel %vm6762, %v6813, %v6812
      %v6815 = vperm.slane %v6713, %v6764
      %v6816 = vsel %vm6766, %v6815, %v6814
      %v6817 = vperm.slane %v6716, %v6768
      %v6818 = vsel %vm6770, %v6817, %v6816
      %v6819 = vperm.slane %v6719, %v6772
      %v6820 = vsel %vm6774, %v6819, %v6818
      %v6821 = vperm.slane %v6722, %v6776
      %v6822 = vsel %vm6778, %v6821, %v6820
      %v6823 = vperm.slane %v6725, %v6780
      %v6824 = vsel %vm6782, %v6823, %v6822
      %v6825 = vperm.slane %v6728, %v6784
      %v6826 = vsel %vm6786, %v6825, %v6824
      %v6827 = vperm.slane %v6731, %v6788
      %v6828 = vsel %vm6790, %v6827, %v6826
      %v6829 = vperm.slane %v6734, %v6792
      %v6830 = vsel %vm6794, %v6829, %v6828
      %v6831 = vperm.slane %v6737, %v6796
      %v6832 = vsel %vm6798, %v6831, %v6830
      %v6833 = vperm.slane %v6740, %v6800
      %v6834 = vsel %vm6802, %v6833, %v6832
      %v6835 = vrot.slane %v6834, 7
      %vm6836 = vcmask 1040384
      %v6837 = vsel %vm6836, %v6803, %v6835
      %v6839 = vlaneseq
      %vm6840 = vcmp.ge.s32.totalorder %v6839, 0
      %vm6841 = vcmp.lt.s32.totalorder %v6839, 256
      %vm6842 = vmand %vm6840, %vm6841
      %6843 = vst.msk [vmem:[%s332] sm:$0x3] %vm6842, %v6837
      %p6844 = scmp.lt.s32.totalorder %s22, 1
      %s6845 = scalar_select %p6844, %s22, 1
      %s6846 = smul.addr %s6845, 2
      %s6847 = scalar_lea.vmem %s9, %s6846
      // Predicated region
      $region57: #{mini_unet_forward.1} parent=55 // pred_check
        %p6848 = pneg %p234
      $region58: #{mini_unet_forward.1} parent=55 // pred_check_branch
        %6850 = sbr.rel (%p6848) target = $region60
      $region59: #{mini_unet_forward.1} parent=55 // pred_region
        _
      $region60: #{mini_unet_forward.1} parent=55 // pred_fallthru
        _
    $region56: #{mini_unet_forward.1} parent=5 // pred_fallthru
      _
    %p6851 = scmp.le.s32.totalorder 2, %s17
    // Predicated region
    $region61: #{mini_unet_forward.1} parent=5 // pred_check
      %p6852 = pneg %p6851
    $region62: #{mini_unet_forward.1} parent=5 // pred_check_branch
      %6854 = sbr.rel (%p6852) target = $region64
    $region63: #{mini_unet_forward.1} parent=5 // pred_region
      %s6855 = ssub.s32 %s17, 2
      // Predicated region
      $region65: #{mini_unet_forward.1} parent=63 // pred_check
        %p6856 = pneg %p240
      $region66: #{mini_unet_forward.1} parent=63 // pred_check_branch
        %6858 = sbr.rel (%p6856) target = $region68
      $region67: #{mini_unet_forward.1} parent=63 // pred_region
        %p6859 = scmp.lt.s32.totalorder %s23, 1
        %s6860 = scalar_select %p6859, %s23, 1
        %s6861 = smul.addr %s6860, 2
        %s6862 = scalar_lea.vmem %s9, %s6861
      $region68: #{mini_unet_forward.1} parent=63 // pred_fallthru
        _
    $region64: #{mini_unet_forward.1} parent=5 // pred_fallthru
      _
  $region6: #{mini_unet_forward.1} parent=0 // loop_footer
    %s21 = sadd.s32 1, %s17
  $region7: #{mini_unet_forward.1} parent=0 // loop_footer_branch
    %16 = sbr.rel target = $region3
  $region8: #{mini_unet_forward.1} parent=0 // loop_exit
    _

</llo_original>
